<compile_context>
chip_gen: v7x
topology: tpu7x:2x2x1
jax: 0.10.0
libtpu: 0.0.40
codegen_flags: <defaults>
</compile_context>

<pallas_src>
import functools

import jax
import jax.numpy as jnp
from jax import lax
from jax.experimental import pallas as pl
from jax.experimental.pallas import tpu as pltpu

EPS = 1e-5
_CPAD = 16   # channel padding granule: bf16 sublane tile is 16 rows, so every
             # channel block written into a bf16 scratch is tile-aligned.

# Per-axis (source parity q, low-res shift s) combos reachable by a 3x3 conv
# in the parity-plane layout (shared by the weight packer and the kernel).
_AX = ((1, -1), (0, 0), (1, 0), (0, 1))
# Low-res tap shifts (sy, sx) in a fixed order shared by packer and kernel.
_SHIFTS = tuple((sy, sx) for sy in (-1, 0, 1) for sx in (-1, 0, 1))


def _round_up(v, m):
  return (v + m - 1) // m * m


# --------------------------- in-kernel building blocks ----------------------
def _bn1_conv1_im2col(x, mall, s1, t1, lhs1_ref, rhs1_ref, W, cin_p):
  """BN1+ReLU on the low-res slab, then conv1(upsample(.)) as ONE
  parity-combined im2col matmul.

  The im2col blocks are written straight into the rhs1 VMEM scratch (bf16,
  no concatenates); returns c1 = (4*Cout_p, tile_m) f32."""
  m = x.shape[1]
  h = jnp.maximum(x * s1 + t1, 0.0)                       # f32 (Cin_p, tile_m)
  for t, (sy, sx) in enumerate(_SHIFTS):
    if sy == 0 and sx == 0:
      blk = h
    else:
      # roll wraps circularly; every wrapped / cross-row / cross-image lane
      # is exactly a lane whose (y+sy, x+sx) leaves the image -> masked to 0.
      blk = pltpu.roll(h, (-(sy * W + sx)) % m, axis=1) * mall[t:t + 1, :]
    rhs1_ref[t * cin_p:(t + 1) * cin_p, :] = blk.astype(jnp.bfloat16)
  return jnp.dot(lhs1_ref[...], rhs1_ref[...],
                 preferred_element_type=jnp.float32)


def _stats_kernel(W, cin_p, cout_p,
                  x_ref, m_ref, lhs1_ref, s1_ref, t1_ref,
                  mean_ref, var_ref, rhs1_ref):
  """Phase 1: per-tile BN2 partial statistics (mean + centred variance) of
  c1 = conv1(upsample(relu(bn1(x)))) over the 4 parity planes."""
  mall = m_ref[...]
  c1 = _bn1_conv1_im2col(x_ref[...], mall, s1_ref[...], t1_ref[...],
                         lhs1_ref, rhs1_ref, W, cin_p)
  m = c1.shape[1]
  inv = 1.0 / (4 * m)

  s = jnp.zeros((cout_p, 1), jnp.float32)
  for p in range(4):
    s = s + jnp.sum(c1[p * cout_p:(p + 1) * cout_p, :], axis=1, keepdims=True)
  mean_t = s * inv

  v = jnp.zeros((cout_p, 1), jnp.float32)
  for p in range(4):
    d = c1[p * cout_p:(p + 1) * cout_p, :] - mean_t
    v = v + jnp.sum(d * d, axis=1, keepdims=True)

  mean_ref[0, :, :] = mean_t
  var_ref[0, :, :] = v * inv


def _main_kernel(W, cin_p, cout_p,
                 x_ref, m_ref, lhs1_ref, lhs2_ref, wb_ref, bcomb_ref,
                 s1_ref, t1_ref, s2_ref, t2_ref,
                 out_ref,
                 rhs1_ref, h2_ref, rhs2_ref, acc_ref):
  """Phase 2: recompute c1, apply BN2+ReLU per parity plane, conv2 as a
  K-chunked plane-mixing matmul, add the low-res 1x1 bypass per plane."""
  mall = m_ref[...]
  x = x_ref[...]
  m = x.shape[1]

  # conv1 recomputed (cheaper than spilling the full-res c1 slab to HBM).
  c1 = _bn1_conv1_im2col(x, mall, s1_ref[...], t1_ref[...],
                         lhs1_ref, rhs1_ref, W, cin_p)

  # BN2 + ReLU applied per parity plane (no replicated scale/shift columns).
  s2 = s2_ref[...]
  t2 = t2_ref[...]
  for p in range(4):
    blk = c1[p * cout_p:(p + 1) * cout_p, :]
    h2_ref[p * cout_p:(p + 1) * cout_p, :] = jnp.maximum(blk * s2 + t2, 0.0)

  # conv2: contraction split into 4 K-chunks (K = 4*Cout_p each), one per
  # y-axis (source parity, shift) combo.  One (4*Cout_p, tile_m) bf16 rhs
  # scratch is reused for every chunk (no 16-block concatenate, bounded VMEM).
  for ay, (qy, sy) in enumerate(_AX):
    for ax, (qx, sx) in enumerate(_AX):
      q = 2 * qy + qx
      blk = h2_ref[q * cout_p:(q + 1) * cout_p, :]
      if sy != 0 or sx != 0:
        t = _SHIFTS.index((sy, sx))
        blk = pltpu.roll(blk, (-(sy * W + sx)) % m, axis=1) * mall[t:t + 1, :]
      rhs2_ref[ax * cout_p:(ax + 1) * cout_p, :] = blk.astype(jnp.bfloat16)
    part = jnp.dot(lhs2_ref[ay], rhs2_ref[...],
                   preferred_element_type=jnp.float32)
    if ay == 0:
      acc_ref[...] = part
    else:
      acc_ref[...] = acc_ref[...] + part

  # Bypass: Upsample(2x nearest) o (1x1 conv) == (1x1 conv) o Upsample, so do
  # it once at low res and add it to every parity plane while storing
  # (lane-dense unmasked stores; no 4x-replicated bypass slab).
  byp = jnp.dot(wb_ref[...], x.astype(jnp.bfloat16),
                preferred_element_type=jnp.float32) + bcomb_ref[...]
  for p in range(4):
    out_ref[p * cout_p:(p + 1) * cout_p, :] = (
        acc_ref[p * cout_p:(p + 1) * cout_p, :] + byp)


# ----------------------- trace-time weight packing --------------------------
def _pack_conv1(w1_oihw, cin_p, cout_p):
  """OIHW (Cout, Cin, 3, 3) -> (4*Cout_p, 9*Cin_p) parity-combined im2col LHS.

  Output plane (py, px), full-res tap (dy, dx) reads low-res h at shift
  (sy, sx) = ((py+dy)//2, (px+dx)//2); taps mapping to the same shift are
  summed (this is the fused 2x nearest-neighbour upsample)."""
  cout, cin = w1_oihw.shape[:2]
  lhs = jnp.zeros((4 * cout_p, 9 * cin_p), jnp.float32)
  for py in (0, 1):
    for px in (0, 1):
      pidx = 2 * py + px
      acc = {}
      for dy in (-1, 0, 1):
        sy = (py + dy) // 2
        for dx in (-1, 0, 1):
          sx = (px + dx) // 2
          acc[(sy, sx)] = acc.get((sy, sx), 0.0) + w1_oihw[:, :, dy + 1, dx + 1]
      for (sy, sx), blk in acc.items():
        t = _SHIFTS.index((sy, sx))
        lhs = lhs.at[pidx * cout_p:pidx * cout_p + cout,
                     t * cin_p:t * cin_p + cin].set(blk)
  return lhs


def _pack_conv2(w2_oihw, cout_p):
  """OIHW (Cout, Cout, 3, 3) -> (4*Cout_p, 16*Cout_p) plane-mixing im2col LHS.

  RHS block j = 4*ay + ax is input plane (qy, qx) shifted by (sy, sx) with
  (qy, sy) = _AX[ay], (qx, sx) = _AX[ax]; the matching full-res tap is
  dy = 2*sy + qy - py (zero block if outside [-1, 1])."""
  cout = w2_oihw.shape[0]
  lhs = jnp.zeros((4 * cout_p, 16 * cout_p), jnp.float32)
  for py in (0, 1):
    for px in (0, 1):
      pidx = 2 * py + px
      for ay, (qy, sy) in enumerate(_AX):
        dy = 2 * sy + qy - py
        if dy < -1 or dy > 1:
          continue
        for ax, (qx, sx) in enumerate(_AX):
          dx = 2 * sx + qx - px
          if dx < -1 or dx > 1:
            continue
          j = 4 * ay + ax
          lhs = lhs.at[pidx * cout_p:pidx * cout_p + cout,
                       j * cout_p:j * cout_p + cout].set(
                           w2_oihw[:, :, dy + 1, dx + 1])
  return lhs


def _col(v, rows):
  """(c,) -> zero-padded (rows, 1) f32 column."""
  v = jnp.asarray(v, jnp.float32).reshape(-1, 1)
  return jnp.pad(v, ((0, rows - v.shape[0]), (0, 0)))


def _pick_tile(n_images, hw):
  """Images-per-tile such that each lane tile is a whole number of images
  (keeps the roll+mask im2col exact) and a multiple of 128 lanes (BlockSpec
  constraint).  Prefer >=2 tiles (pipelining / v7x megacore), then the
  largest tile <= ~8192 lanes."""
  divs = [k for k in range(1, n_images + 1)
          if n_images % k == 0 and (k * hw) % 128 == 0]
  if not divs:
    return 1, n_images * hw            # single-tile fallback (full-dim block)
  multi = [k for k in divs if n_images // k >= 2]
  pool = multi if multi else divs
  small = [k for k in pool if k * hw <= 8192]
  k = max(small) if small else min(pool)
  return n_images // k, k * hw


# --------------------------------- wrapper ----------------------------------
def resblock_forward(x_nchw, p):
  """x_nchw: (N, Cin, H, W) f32 -> (N, Cout, 2H, 2W) f32 (PyTorch NCHW)."""
  N, Cin, H, W = x_nchw.shape
  Cout = p["w1_oihw"].shape[0]
  HW = H * W
  M0 = N * HW
  cin_p = _round_up(Cin, _CPAD)
  cout_p = _round_up(Cout, _CPAD)
  n_tiles, tile_m = _pick_tile(N, HW)

  xf = x_nchw.astype(jnp.float32)
  # Glue: NCHW -> lane-dense (Cin_p, N*H*W) low-res slab.
  x_cm = jnp.transpose(xf, (1, 0, 2, 3)).reshape(Cin, M0)
  x_cm = jnp.pad(x_cm, ((0, cin_p - Cin), (0, 0)))

  # Phase 0: BN1 batch stats (centred two-pass).  conv1 needs the *global*
  # BN1 scale/shift before it can run, so this tiny per-channel reduction is
  # left to XLA; the heavy conv work stays in the Pallas kernels.
  mean1 = jnp.mean(xf, axis=(0, 2, 3))
  var1 = jnp.mean(jnp.square(xf - mean1.reshape(1, Cin, 1, 1)), axis=(0, 2, 3))
  scale1 = p["g1"] * lax.rsqrt(var1 + EPS)
  shift1 = p["be1"] - mean1 * scale1
  s1c, t1c = _col(scale1, cin_p), _col(shift1, cin_p)

  # 9 boundary masks precomputed once here (no iota/div/mod in the kernel).
  # The pattern repeats every image and tiles are whole images, so a single
  # (16, tile_m) slab is VMEM-resident across every grid step.
  lane = jnp.arange(tile_m, dtype=jnp.int32)
  rem = lane % HW
  yy, xx = rem // W, rem % W
  rows = [((yy + sy >= 0) & (yy + sy < H) & (xx + sx >= 0) & (xx + sx < W))
          for (sy, sx) in _SHIFTS]
  masks = jnp.stack(rows).astype(jnp.float32)
  masks = jnp.pad(masks, ((0, 16 - masks.shape[0]), (0, 0)))     # (16, tile_m)

  # Weights packed at trace time; MXU operands in bf16, accumulation in f32.
  lhs1 = _pack_conv1(p["w1_oihw"], cin_p, cout_p).astype(jnp.bfloat16)
  lhs2 = _pack_conv2(p["w2_oihw"], cout_p)
  lhs2 = (lhs2.reshape(4 * cout_p, 4, 4 * cout_p)
          .transpose(1, 0, 2).astype(jnp.bfloat16))   # (4, 4*Cout_p, 4*Cout_p)
  wb = jnp.pad(p["wb_oihw"][:, :, 0, 0],
               ((0, cout_p - Cout), (0, cin_p - Cin))).astype(jnp.bfloat16)
  # conv1's bias b1 is dropped entirely: a per-channel constant is exactly
  # cancelled by BN2's mean subtraction (variance unaffected).
  bcomb = _col(p["b2"] + p["bb"], cout_p)             # conv2 + bypass biases
  g2c, be2c = _col(p["g2"], cout_p), _col(p["be2"], cout_p)

  cparams = pltpu.CompilerParams(
      # Tiles are independent (stats come from the separate phase), so the
      # lane-tile axis is legal to split across v7x's two TensorCores.
      dimension_semantics=("parallel",),
      # Above the 16/32 MiB default scoped limits, <= physical VMEM on v7x.
      vmem_limit_bytes=64 * 1024 * 1024)

  def resident(a):
    nd = a.ndim
    return pl.BlockSpec(a.shape, lambda i: (0,) * nd)

  x_spec = pl.BlockSpec((cin_p, tile_m), lambda i: (0, i))

  # ---- Phase 1: per-tile BN2 partial stats (needs conv1) ----
  stat_spec = pl.BlockSpec((1, cout_p, 1), lambda i: (i, 0, 0))
  mean_parts, var_parts = pl.pallas_call(
      functools.partial(_stats_kernel, W, cin_p, cout_p),
      grid=(n_tiles,),
      in_specs=[x_spec, resident(masks), resident(lhs1),
                resident(s1c), resident(t1c)],
      out_specs=(stat_spec, stat_spec),
      out_shape=(jax.ShapeDtypeStruct((n_tiles, cout_p, 1), jnp.float32),
                 jax.ShapeDtypeStruct((n_tiles, cout_p, 1), jnp.float32)),
      scratch_shapes=[pltpu.VMEM((9 * cin_p, tile_m), jnp.bfloat16)],
      compiler_params=cparams,
  )(x_cm, masks, lhs1, s1c, t1c)

  # Exact combination of equal-sized per-tile (mean, centred var) partials.
  mean2 = jnp.mean(mean_parts, axis=0)                           # (Cout_p, 1)
  var2 = (jnp.mean(var_parts, axis=0)
          + jnp.mean(jnp.square(mean_parts), axis=0) - jnp.square(mean2))
  scale2 = g2c * lax.rsqrt(var2 + EPS)
  shift2 = be2c - mean2 * scale2

  # ---- Phase 2: BN2 apply + conv2 (K-chunked) + bypass, per tile ----
  out2d = pl.pallas_call(
      functools.partial(_main_kernel, W, cin_p, cout_p),
      grid=(n_tiles,),
      in_specs=[x_spec, resident(masks), resident(lhs1), resident(lhs2),
                resident(wb), resident(bcomb), resident(s1c), resident(t1c),
                resident(scale2), resident(shift2)],
      out_specs=pl.BlockSpec((4 * cout_p, tile_m), lambda i: (0, i)),
      out_shape=jax.ShapeDtypeStruct((4 * cout_p, M0), jnp.float32),
      scratch_shapes=[pltpu.VMEM((9 * cin_p, tile_m), jnp.bfloat16),   # rhs1
                      pltpu.VMEM((4 * cout_p, tile_m), jnp.float32),   # h2
                      pltpu.VMEM((4 * cout_p, tile_m), jnp.bfloat16),  # rhs2
                      pltpu.VMEM((4 * cout_p, tile_m), jnp.float32)],  # c2 acc
      compiler_params=cparams,
  )(x_cm, masks, lhs1, lhs2, wb, bcomb, s1c, t1c, scale2, shift2)

  # Glue: parity-plane (4*Cout_p, M0) -> NCHW (N, Cout, 2H, 2W).
  out6 = out2d.reshape(2, 2, cout_p, N, H, W)[:, :, :Cout]   # (py,px,c,n,y,x)
  return jnp.transpose(out6, (3, 2, 4, 0, 5, 1)).reshape(N, Cout, 2 * H, 2 * W)


# ------------------------- deterministic parameters -------------------------
def init_params(key, cin, cout):
  ks = jax.random.split(key, 6)

  def kaiming_uniform(k, shape, fan_in):     # gain=sqrt(2) (relu), fan_in mode
    bound = (6.0 / fan_in) ** 0.5
    return jax.random.uniform(k, shape, jnp.float32, -bound, bound)

  def bias_uniform(k, shape, fan_in):        # PyTorch Conv2d default bias init
    bound = 1.0 / (fan_in ** 0.5)
    return jax.random.uniform(k, shape, jnp.float32, -bound, bound)

  return dict(
      w1_oihw=kaiming_uniform(ks[0], (cout, cin, 3, 3), cin * 9),
      w2_oihw=kaiming_uniform(ks[1], (cout, cout, 3, 3), cout * 9),
      wb_oihw=kaiming_uniform(ks[2], (cout, cin, 1, 1), cin),
      # b1 is kept for the reference (the Pallas path drops it — exactly
      # cancelled by BN2), b2/bb are folded into one combined bias.
      b1=bias_uniform(ks[3], (cout,), cin * 9),
      b2=bias_uniform(ks[4], (cout,), cout * 9),
      bb=bias_uniform(ks[5], (cout,), cin),
      g1=jnp.ones((cin,), jnp.float32), be1=jnp.zeros((cin,), jnp.float32),
      g2=jnp.ones((cout,), jnp.float32), be2=jnp.zeros((cout,), jnp.float32),
  )


# ------------------------- pure-JAX reference (NCHW) ------------------------
def ref_forward(x, p):
  def bn(v, g, b):
    mean = jnp.mean(v, axis=(0, 2, 3), keepdims=True)
    var = jnp.mean((v - mean) ** 2, axis=(0, 2, 3), keepdims=True)
    return ((v - mean) / jnp.sqrt(var + EPS) * g.reshape(1, -1, 1, 1)
            + b.reshape(1, -1, 1, 1))

  def up2(v):
    return jnp.repeat(jnp.repeat(v, 2, axis=2), 2, axis=3)

  def conv(v, w, b, pad):
    o = lax.conv_general_dilated(v, w, (1, 1), [(pad, pad), (pad, pad)],
                                 dimension_numbers=("NCHW", "OIHW", "NCHW"),
                                 precision=lax.Precision.HIGHEST)
    return o + b.reshape(1, -1, 1, 1)

  h = jnp.maximum(bn(x, p["g1"], p["be1"]), 0.0)
  h = up2(h)
  h = conv(h, p["w1_oihw"], p["b1"], 1)
  h = jnp.maximum(bn(h, p["g2"], p["be2"]), 0.0)
  h = conv(h, p["w2_oihw"], p["b2"], 1)
  byp = conv(up2(x), p["wb_oihw"], p["bb"], 0)
  return h + byp


if __name__ == "__main__":
  key = jax.random.PRNGKey(0)
  kx, kp = jax.random.split(key)

  # stride=1, out_channels != in_channels -> bypass = Upsample + 1x1 conv.
  N, Cin, Cout, H, W = 2, 4, 8, 16, 16
  x = jax.random.normal(kx, (N, Cin, H, W), dtype=jnp.float32)
  params = init_params(kp, Cin, Cout)

  fwd = jax.jit(resblock_forward)
  out = jax.block_until_ready(fwd(x, params))
  assert out.shape == (N, Cout, 2 * H, 2 * W), out.shape

  ref = jax.block_until_ready(ref_forward(x, params))
  err = float(jnp.max(jnp.abs(out - ref)))
  rel = float(jnp.linalg.norm(out - ref) / jnp.linalg.norm(ref))
  # Tolerances sized for bf16 MXU operands (per the perf review) against the
  # f32 "highest"-precision reference: ~2^-9 relative per operand across two
  # stacked 3x3 convs.  A real bug (wrong shift / plane mixing / stats) shows
  # up as O(1) relative error and still trips these bounds.
  if not (rel < 3e-2 and err < 2e-1):
    raise AssertionError(
        f"Pallas kernel mismatch vs reference: max|err|={err}, rel_fro={rel}")
  print("KERNEL_OK")
</pallas_src>

<mosaic_0001>
module attributes {stable_mosaic.version = 11 : i64} {
  func.func @_stats_kernel(%arg0: i32, %arg1: memref<16x256xf32, #tpu.memory_space<vmem>>, %arg2: memref<16x256xf32, #tpu.memory_space<vmem>>, %arg3: memref<64x144xbf16, #tpu.memory_space<vmem>>, %arg4: memref<16x1xf32, #tpu.memory_space<vmem>>, %arg5: memref<16x1xf32, #tpu.memory_space<vmem>>, %arg6: memref<1x16x1xf32, #tpu.memory_space<vmem>>, %arg7: memref<1x16x1xf32, #tpu.memory_space<vmem>>, %arg8: memref<144x256xbf16, #tpu.memory_space<vmem>>) attributes {dimension_semantics = [#tpu.dimension_semantics<parallel>], iteration_bounds = array<i64: 2>, scalar_prefetch = 0 : i64, scratch_operands = 1 : i64, tpu.core_type = #tpu.core_type<tc>, window_params = [{transform_indices = @transform_0, window_bounds = array<i64: 16, 256>}, {pipeline_mode = #tpu.pipeline_mode<synchronous>, transform_indices = @transform_1, window_bounds = array<i64: 16, 256>}, {pipeline_mode = #tpu.pipeline_mode<synchronous>, transform_indices = @transform_2, window_bounds = array<i64: 64, 144>}, {pipeline_mode = #tpu.pipeline_mode<synchronous>, transform_indices = @transform_3, window_bounds = array<i64: 16, 1>}, {pipeline_mode = #tpu.pipeline_mode<synchronous>, transform_indices = @transform_4, window_bounds = array<i64: 16, 1>}, {transform_indices = @transform_5, window_bounds = array<i64: 1, 16, 1>}, {transform_indices = @transform_6, window_bounds = array<i64: 1, 16, 1>}]} {
    %c0 = arith.constant 0 : index
    %c0_0 = arith.constant 0 : index
    %0 = vector.load %arg2[%c0, %c0_0] : memref<16x256xf32, #tpu.memory_space<vmem>>, vector<16x256xf32>
    %c0_1 = arith.constant 0 : index
    %c0_2 = arith.constant 0 : index
    %1 = vector.load %arg1[%c0_1, %c0_2] : memref<16x256xf32, #tpu.memory_space<vmem>>, vector<16x256xf32>
    %c0_3 = arith.constant 0 : index
    %c0_4 = arith.constant 0 : index
    %2 = vector.load %arg4[%c0_3, %c0_4] : memref<16x1xf32, #tpu.memory_space<vmem>>, vector<16x1xf32>
    %c0_5 = arith.constant 0 : index
    %c0_6 = arith.constant 0 : index
    %3 = vector.load %arg5[%c0_5, %c0_6] : memref<16x1xf32, #tpu.memory_space<vmem>>, vector<16x1xf32>
    %4 = vector.broadcast %2 : vector<16x1xf32> to vector<16x256xf32>
    %5 = arith.mulf %1, %4 : vector<16x256xf32>
    %6 = vector.broadcast %3 : vector<16x1xf32> to vector<16x256xf32>
    %7 = arith.addf %5, %6 : vector<16x256xf32>
    %cst = arith.constant 0.000000e+00 : f32
    %8 = vector.broadcast %cst : f32 to vector<16x256xf32>
    %9 = arith.maximumf %7, %8 : vector<16x256xf32>
    %c17_i32 = arith.constant 17 : i32
    %10 = tpu.dynamic_rotate %9 by %c17_i32 dim 1 : vector<16x256xf32>, i32 -> vector<16x256xf32>
    %11 = vector.extract_strided_slice %0 {offsets = [0, 0], sizes = [1, 256], strides = [1, 1]} : vector<16x256xf32> to vector<1x256xf32>
    %12 = vector.broadcast %11 : vector<1x256xf32> to vector<16x256xf32>
    %13 = arith.mulf %10, %12 : vector<16x256xf32>
    %14 = arith.truncf %13 : vector<16x256xf32> to vector<16x256xbf16>
    %c0_7 = arith.constant 0 : index
    %c0_8 = arith.constant 0 : index
    %15 = vector.load %arg8[%c0_7, %c0_8] : memref<144x256xbf16, #tpu.memory_space<vmem>>, vector<16x256xbf16>
    tpu.vector_store %arg8[%c0_7, %c0_8], %14 {strides = array<i32>} : memref<144x256xbf16, #tpu.memory_space<vmem>>, vector<16x256xbf16>,
    %c16_i32 = arith.constant 16 : i32
    %16 = tpu.dynamic_rotate %9 by %c16_i32 dim 1 : vector<16x256xf32>, i32 -> vector<16x256xf32>
    %17 = vector.extract_strided_slice %0 {offsets = [1, 0], sizes = [1, 256], strides = [1, 1]} : vector<16x256xf32> to vector<1x256xf32>
    %18 = vector.broadcast %17 : vector<1x256xf32> to vector<16x256xf32>
    %19 = arith.mulf %16, %18 : vector<16x256xf32>
    %20 = arith.truncf %19 : vector<16x256xf32> to vector<16x256xbf16>
    %c16 = arith.constant 16 : index
    %c0_9 = arith.constant 0 : index
    %21 = vector.load %arg8[%c16, %c0_9] : memref<144x256xbf16, #tpu.memory_space<vmem>>, vector<16x256xbf16>
    tpu.vector_store %arg8[%c16, %c0_9], %20 {strides = array<i32>} : memref<144x256xbf16, #tpu.memory_space<vmem>>, vector<16x256xbf16>,
    %c15_i32 = arith.constant 15 : i32
    %22 = tpu.dynamic_rotate %9 by %c15_i32 dim 1 : vector<16x256xf32>, i32 -> vector<16x256xf32>
    %23 = vector.extract_strided_slice %0 {offsets = [2, 0], sizes = [1, 256], strides = [1, 1]} : vector<16x256xf32> to vector<1x256xf32>
    %24 = vector.broadcast %23 : vector<1x256xf32> to vector<16x256xf32>
    %25 = arith.mulf %22, %24 : vector<16x256xf32>
    %26 = arith.truncf %25 : vector<16x256xf32> to vector<16x256xbf16>
    %c32 = arith.constant 32 : index
    %c0_10 = arith.constant 0 : index
    %27 = vector.load %arg8[%c32, %c0_10] : memref<144x256xbf16, #tpu.memory_space<vmem>>, vector<16x256xbf16>
    tpu.vector_store %arg8[%c32, %c0_10], %26 {strides = array<i32>} : memref<144x256xbf16, #tpu.memory_space<vmem>>, vector<16x256xbf16>,
    %c1_i32 = arith.constant 1 : i32
    %28 = tpu.dynamic_rotate %9 by %c1_i32 dim 1 : vector<16x256xf32>, i32 -> vector<16x256xf32>
    %29 = vector.extract_strided_slice %0 {offsets = [3, 0], sizes = [1, 256], strides = [1, 1]} : vector<16x256xf32> to vector<1x256xf32>
    %30 = vector.broadcast %29 : vector<1x256xf32> to vector<16x256xf32>
    %31 = arith.mulf %28, %30 : vector<16x256xf32>
    %32 = arith.truncf %31 : vector<16x256xf32> to vector<16x256xbf16>
    %c48 = arith.constant 48 : index
    %c0_11 = arith.constant 0 : index
    %33 = vector.load %arg8[%c48, %c0_11] : memref<144x256xbf16, #tpu.memory_space<vmem>>, vector<16x256xbf16>
    tpu.vector_store %arg8[%c48, %c0_11], %32 {strides = array<i32>} : memref<144x256xbf16, #tpu.memory_space<vmem>>, vector<16x256xbf16>,
    %34 = arith.truncf %9 : vector<16x256xf32> to vector<16x256xbf16>
    %c64 = arith.constant 64 : index
    %c0_12 = arith.constant 0 : index
    %35 = vector.load %arg8[%c64, %c0_12] : memref<144x256xbf16, #tpu.memory_space<vmem>>, vector<16x256xbf16>
    tpu.vector_store %arg8[%c64, %c0_12], %34 {strides = array<i32>} : memref<144x256xbf16, #tpu.memory_space<vmem>>, vector<16x256xbf16>,
    %c255_i32 = arith.constant 255 : i32
    %36 = tpu.dynamic_rotate %9 by %c255_i32 dim 1 : vector<16x256xf32>, i32 -> vector<16x256xf32>
    %37 = vector.extract_strided_slice %0 {offsets = [5, 0], sizes = [1, 256], strides = [1, 1]} : vector<16x256xf32> to vector<1x256xf32>
    %38 = vector.broadcast %37 : vector<1x256xf32> to vector<16x256xf32>
    %39 = arith.mulf %36, %38 : vector<16x256xf32>
    %40 = arith.truncf %39 : vector<16x256xf32> to vector<16x256xbf16>
    %c80 = arith.constant 80 : index
    %c0_13 = arith.constant 0 : index
    %41 = vector.load %arg8[%c80, %c0_13] : memref<144x256xbf16, #tpu.memory_space<vmem>>, vector<16x256xbf16>
    tpu.vector_store %arg8[%c80, %c0_13], %40 {strides = array<i32>} : memref<144x256xbf16, #tpu.memory_space<vmem>>, vector<16x256xbf16>,
    %c241_i32 = arith.constant 241 : i32
    %42 = tpu.dynamic_rotate %9 by %c241_i32 dim 1 : vector<16x256xf32>, i32 -> vector<16x256xf32>
    %43 = vector.extract_strided_slice %0 {offsets = [6, 0], sizes = [1, 256], strides = [1, 1]} : vector<16x256xf32> to vector<1x256xf32>
    %44 = vector.broadcast %43 : vector<1x256xf32> to vector<16x256xf32>
    %45 = arith.mulf %42, %44 : vector<16x256xf32>
    %46 = arith.truncf %45 : vector<16x256xf32> to vector<16x256xbf16>
    %c96 = arith.constant 96 : index
    %c0_14 = arith.constant 0 : index
    %47 = vector.load %arg8[%c96, %c0_14] : memref<144x256xbf16, #tpu.memory_space<vmem>>, vector<16x256xbf16>
    tpu.vector_store %arg8[%c96, %c0_14], %46 {strides = array<i32>} : memref<144x256xbf16, #tpu.memory_space<vmem>>, vector<16x256xbf16>,
    %c240_i32 = arith.constant 240 : i32
    %48 = tpu.dynamic_rotate %9 by %c240_i32 dim 1 : vector<16x256xf32>, i32 -> vector<16x256xf32>
    %49 = vector.extract_strided_slice %0 {offsets = [7, 0], sizes = [1, 256], strides = [1, 1]} : vector<16x256xf32> to vector<1x256xf32>
    %50 = vector.broadcast %49 : vector<1x256xf32> to vector<16x256xf32>
    %51 = arith.mulf %48, %50 : vector<16x256xf32>
    %52 = arith.truncf %51 : vector<16x256xf32> to vector<16x256xbf16>
    %c112 = arith.constant 112 : index
    %c0_15 = arith.constant 0 : index
    %53 = vector.load %arg8[%c112, %c0_15] : memref<144x256xbf16, #tpu.memory_space<vmem>>, vector<16x256xbf16>
    tpu.vector_store %arg8[%c112, %c0_15], %52 {strides = array<i32>} : memref<144x256xbf16, #tpu.memory_space<vmem>>, vector<16x256xbf16>,
    %c239_i32 = arith.constant 239 : i32
    %54 = tpu.dynamic_rotate %9 by %c239_i32 dim 1 : vector<16x256xf32>, i32 -> vector<16x256xf32>
    %55 = vector.extract_strided_slice %0 {offsets = [8, 0], sizes = [1, 256], strides = [1, 1]} : vector<16x256xf32> to vector<1x256xf32>
    %56 = vector.broadcast %55 : vector<1x256xf32> to vector<16x256xf32>
    %57 = arith.mulf %54, %56 : vector<16x256xf32>
    %58 = arith.truncf %57 : vector<16x256xf32> to vector<16x256xbf16>
    %c128 = arith.constant 128 : index
    %c0_16 = arith.constant 0 : index
    %59 = vector.load %arg8[%c128, %c0_16] : memref<144x256xbf16, #tpu.memory_space<vmem>>, vector<16x256xbf16>
    tpu.vector_store %arg8[%c128, %c0_16], %58 {strides = array<i32>} : memref<144x256xbf16, #tpu.memory_space<vmem>>, vector<16x256xbf16>,
    %c0_17 = arith.constant 0 : index
    %c0_18 = arith.constant 0 : index
    %60 = vector.load %arg3[%c0_17, %c0_18] : memref<64x144xbf16, #tpu.memory_space<vmem>>, vector<64x144xbf16>
    %c0_19 = arith.constant 0 : index
    %c0_20 = arith.constant 0 : index
    %61 = vector.load %arg8[%c0_19, %c0_20] : memref<144x256xbf16, #tpu.memory_space<vmem>>, vector<144x256xbf16>
    %cst_21 = arith.constant dense<0.000000e+00> : vector<64x256xf32>
    %62 = tpu.matmul %60, %61, %cst_21 {dimension_numbers = #tpu.dot_dimension_numbers<[1], [0], [0], [1], [0, 0, 1, 1], [], []>} : vector<64x144xbf16>, vector<144x256xbf16>, vector<64x256xf32> -> vector<64x256xf32>
    %cst_22 = arith.constant 0.000000e+00 : f32
    %63 = vector.broadcast %cst_22 : f32 to vector<16x1xf32>
    %64 = vector.extract_strided_slice %62 {offsets = [0, 0], sizes = [16, 256], strides = [1, 1]} : vector<64x256xf32> to vector<16x256xf32>
    %cst_23 = arith.constant dense<0.000000e+00> : vector<16xf32>
    %65 = vector.multi_reduction <add>, %64, %cst_23 [1] : vector<16x256xf32> to vector<16xf32>
    %66 = vector.shape_cast %65 : vector<16xf32> to vector<16x1xf32>
    %67 = arith.addf %63, %66 : vector<16x1xf32>
    %68 = vector.extract_strided_slice %62 {offsets = [16, 0], sizes = [16, 256], strides = [1, 1]} : vector<64x256xf32> to vector<16x256xf32>
    %cst_24 = arith.constant dense<0.000000e+00> : vector<16xf32>
    %69 = vector.multi_reduction <add>, %68, %cst_24 [1] : vector<16x256xf32> to vector<16xf32>
    %70 = vector.shape_cast %69 : vector<16xf32> to vector<16x1xf32>
    %71 = arith.addf %67, %70 : vector<16x1xf32>
    %72 = vector.extract_strided_slice %62 {offsets = [32, 0], sizes = [16, 256], strides = [1, 1]} : vector<64x256xf32> to vector<16x256xf32>
    %cst_25 = arith.constant dense<0.000000e+00> : vector<16xf32>
    %73 = vector.multi_reduction <add>, %72, %cst_25 [1] : vector<16x256xf32> to vector<16xf32>
    %74 = vector.shape_cast %73 : vector<16xf32> to vector<16x1xf32>
    %75 = arith.addf %71, %74 : vector<16x1xf32>
    %76 = vector.extract_strided_slice %62 {offsets = [48, 0], sizes = [16, 256], strides = [1, 1]} : vector<64x256xf32> to vector<16x256xf32>
    %cst_26 = arith.constant dense<0.000000e+00> : vector<16xf32>
    %77 = vector.multi_reduction <add>, %76, %cst_26 [1] : vector<16x256xf32> to vector<16xf32>
    %78 = vector.shape_cast %77 : vector<16xf32> to vector<16x1xf32>
    %79 = arith.addf %75, %78 : vector<16x1xf32>
    %cst_27 = arith.constant 9.765625E-4 : f32
    %80 = vector.broadcast %cst_27 : f32 to vector<16x1xf32>
    %81 = arith.mulf %79, %80 : vector<16x1xf32>
    %cst_28 = arith.constant 0.000000e+00 : f32
    %82 = vector.broadcast %cst_28 : f32 to vector<16x1xf32>
    %83 = vector.extract_strided_slice %62 {offsets = [0, 0], sizes = [16, 256], strides = [1, 1]} : vector<64x256xf32> to vector<16x256xf32>
    %84 = vector.broadcast %81 : vector<16x1xf32> to vector<16x256xf32>
    %85 = arith.subf %83, %84 : vector<16x256xf32>
    %86 = arith.mulf %85, %85 : vector<16x256xf32>
    %cst_29 = arith.constant dense<0.000000e+00> : vector<16xf32>
    %87 = vector.multi_reduction <add>, %86, %cst_29 [1] : vector<16x256xf32> to vector<16xf32>
    %88 = vector.shape_cast %87 : vector<16xf32> to vector<16x1xf32>
    %89 = arith.addf %82, %88 : vector<16x1xf32>
    %90 = vector.extract_strided_slice %62 {offsets = [16, 0], sizes = [16, 256], strides = [1, 1]} : vector<64x256xf32> to vector<16x256xf32>
    %91 = vector.broadcast %81 : vector<16x1xf32> to vector<16x256xf32>
    %92 = arith.subf %90, %91 : vector<16x256xf32>
    %93 = arith.mulf %92, %92 : vector<16x256xf32>
    %cst_30 = arith.constant dense<0.000000e+00> : vector<16xf32>
    %94 = vector.multi_reduction <add>, %93, %cst_30 [1] : vector<16x256xf32> to vector<16xf32>
    %95 = vector.shape_cast %94 : vector<16xf32> to vector<16x1xf32>
    %96 = arith.addf %89, %95 : vector<16x1xf32>
    %97 = vector.extract_strided_slice %62 {offsets = [32, 0], sizes = [16, 256], strides = [1, 1]} : vector<64x256xf32> to vector<16x256xf32>
    %98 = vector.broadcast %81 : vector<16x1xf32> to vector<16x256xf32>
    %99 = arith.subf %97, %98 : vector<16x256xf32>
    %100 = arith.mulf %99, %99 : vector<16x256xf32>
    %cst_31 = arith.constant dense<0.000000e+00> : vector<16xf32>
    %101 = vector.multi_reduction <add>, %100, %cst_31 [1] : vector<16x256xf32> to vector<16xf32>
    %102 = vector.shape_cast %101 : vector<16xf32> to vector<16x1xf32>
    %103 = arith.addf %96, %102 : vector<16x1xf32>
    %104 = vector.extract_strided_slice %62 {offsets = [48, 0], sizes = [16, 256], strides = [1, 1]} : vector<64x256xf32> to vector<16x256xf32>
    %105 = vector.broadcast %81 : vector<16x1xf32> to vector<16x256xf32>
    %106 = arith.subf %104, %105 : vector<16x256xf32>
    %107 = arith.mulf %106, %106 : vector<16x256xf32>
    %cst_32 = arith.constant dense<0.000000e+00> : vector<16xf32>
    %108 = vector.multi_reduction <add>, %107, %cst_32 [1] : vector<16x256xf32> to vector<16xf32>
    %109 = vector.shape_cast %108 : vector<16xf32> to vector<16x1xf32>
    %110 = arith.addf %103, %109 : vector<16x1xf32>
    %c0_33 = arith.constant 0 : index
    %c0_34 = arith.constant 0 : index
    %c0_35 = arith.constant 0 : index
    %111 = vector.load %arg6[%c0_33, %c0_34, %c0_35] : memref<1x16x1xf32, #tpu.memory_space<vmem>>, vector<1x16x1xf32>
    %112 = vector.shape_cast %111 : vector<1x16x1xf32> to vector<16x1xf32>
    %113 = vector.shape_cast %81 : vector<16x1xf32> to vector<1x16x1xf32>
    tpu.vector_store %arg6[%c0_33, %c0_34, %c0_35], %113 {strides = array<i32>} : memref<1x16x1xf32, #tpu.memory_space<vmem>>, vector<1x16x1xf32>,
    %cst_36 = arith.constant 9.765625E-4 : f32
    %114 = vector.broadcast %cst_36 : f32 to vector<16x1xf32>
    %115 = arith.mulf %110, %114 : vector<16x1xf32>
    %c0_37 = arith.constant 0 : index
    %c0_38 = arith.constant 0 : index
    %c0_39 = arith.constant 0 : index
    %116 = vector.load %arg7[%c0_37, %c0_38, %c0_39] : memref<1x16x1xf32, #tpu.memory_space<vmem>>, vector<1x16x1xf32>
    %117 = vector.shape_cast %116 : vector<1x16x1xf32> to vector<16x1xf32>
    %118 = vector.shape_cast %115 : vector<16x1xf32> to vector<1x16x1xf32>
    tpu.vector_store %arg7[%c0_37, %c0_38, %c0_39], %118 {strides = array<i32>} : memref<1x16x1xf32, #tpu.memory_space<vmem>>, vector<1x16x1xf32>,
    return
  }
  func.func @transform_0(%arg0: i32) -> (i32, i32) {
    %c0_i32 = arith.constant 0 : i32
    %c0_i32_0 = arith.constant 0 : i32
    return %c0_i32, %arg0 : i32, i32
  }
  func.func @transform_1(%arg0: i32) -> (i32, i32) {
    %c0_i32 = arith.constant 0 : i32
    %c0_i32_0 = arith.constant 0 : i32
    %c0_i32_1 = arith.constant 0 : i32
    return %c0_i32, %c0_i32_0 : i32, i32
  }
  func.func @transform_2(%arg0: i32) -> (i32, i32) {
    %c0_i32 = arith.constant 0 : i32
    %c0_i32_0 = arith.constant 0 : i32
    %c0_i32_1 = arith.constant 0 : i32
    return %c0_i32, %c0_i32_0 : i32, i32
  }
  func.func @transform_3(%arg0: i32) -> (i32, i32) {
    %c0_i32 = arith.constant 0 : i32
    %c0_i32_0 = arith.constant 0 : i32
    %c0_i32_1 = arith.constant 0 : i32
    return %c0_i32, %c0_i32_0 : i32, i32
  }
  func.func @transform_4(%arg0: i32) -> (i32, i32) {
    %c0_i32 = arith.constant 0 : i32
    %c0_i32_0 = arith.constant 0 : i32
    %c0_i32_1 = arith.constant 0 : i32
    return %c0_i32, %c0_i32_0 : i32, i32
  }
  func.func @transform_5(%arg0: i32) -> (i32, i32, i32) {
    %c0_i32 = arith.constant 0 : i32
    %c0_i32_0 = arith.constant 0 : i32
    %c0_i32_1 = arith.constant 0 : i32
    return %arg0, %c0_i32, %c0_i32_0 : i32, i32, i32
  }
  func.func @transform_6(%arg0: i32) -> (i32, i32, i32) {
    %c0_i32 = arith.constant 0 : i32
    %c0_i32_0 = arith.constant 0 : i32
    %c0_i32_1 = arith.constant 0 : i32
    return %arg0, %c0_i32, %c0_i32_0 : i32, i32, i32
  }
}

module attributes {stable_mosaic.version = 11 : i64} {
  func.func @_main_kernel(%arg0: i32, %arg1: memref<16x256xf32, #tpu.memory_space<vmem>>, %arg2: memref<16x256xf32, #tpu.memory_space<vmem>>, %arg3: memref<64x144xbf16, #tpu.memory_space<vmem>>, %arg4: memref<4x64x64xbf16, #tpu.memory_space<vmem>>, %arg5: memref<16x16xbf16, #tpu.memory_space<vmem>>, %arg6: memref<16x1xf32, #tpu.memory_space<vmem>>, %arg7: memref<16x1xf32, #tpu.memory_space<vmem>>, %arg8: memref<16x1xf32, #tpu.memory_space<vmem>>, %arg9: memref<16x1xf32, #tpu.memory_space<vmem>>, %arg10: memref<16x1xf32, #tpu.memory_space<vmem>>, %arg11: memref<64x256xf32, #tpu.memory_space<vmem>>, %arg12: memref<144x256xbf16, #tpu.memory_space<vmem>>, %arg13: memref<64x256xf32, #tpu.memory_space<vmem>>, %arg14: memref<64x256xbf16, #tpu.memory_space<vmem>>, %arg15: memref<64x256xf32, #tpu.memory_space<vmem>>) attributes {dimension_semantics = [#tpu.dimension_semantics<parallel>], iteration_bounds = array<i64: 2>, scalar_prefetch = 0 : i64, scratch_operands = 4 : i64, tpu.core_type = #tpu.core_type<tc>, window_params = [{transform_indices = @transform_0, window_bounds = array<i64: 16, 256>}, {pipeline_mode = #tpu.pipeline_mode<synchronous>, transform_indices = @transform_1, window_bounds = array<i64: 16, 256>}, {pipeline_mode = #tpu.pipeline_mode<synchronous>, transform_indices = @transform_2, window_bounds = array<i64: 64, 144>}, {pipeline_mode = #tpu.pipeline_mode<synchronous>, transform_indices = @transform_3, window_bounds = array<i64: 4, 64, 64>}, {pipeline_mode = #tpu.pipeline_mode<synchronous>, transform_indices = @transform_4, window_bounds = array<i64: 16, 16>}, {pipeline_mode = #tpu.pipeline_mode<synchronous>, transform_indices = @transform_5, window_bounds = array<i64: 16, 1>}, {pipeline_mode = #tpu.pipeline_mode<synchronous>, transform_indices = @transform_6, window_bounds = array<i64: 16, 1>}, {pipeline_mode = #tpu.pipeline_mode<synchronous>, transform_indices = @transform_7, window_bounds = array<i64: 16, 1>}, {pipeline_mode = #tpu.pipeline_mode<synchronous>, transform_indices = @transform_8, window_bounds = array<i64: 16, 1>}, {pipeline_mode = #tpu.pipeline_mode<synchronous>, transform_indices = @transform_9, window_bounds = array<i64: 16, 1>}, {transform_indices = @transform_10, window_bounds = array<i64: 64, 256>}]} {
    %c0 = arith.constant 0 : index
    %c0_0 = arith.constant 0 : index
    %0 = vector.load %arg2[%c0, %c0_0] : memref<16x256xf32, #tpu.memory_space<vmem>>, vector<16x256xf32>
    %c0_1 = arith.constant 0 : index
    %c0_2 = arith.constant 0 : index
    %1 = vector.load %arg1[%c0_1, %c0_2] : memref<16x256xf32, #tpu.memory_space<vmem>>, vector<16x256xf32>
    %c0_3 = arith.constant 0 : index
    %c0_4 = arith.constant 0 : index
    %2 = vector.load %arg7[%c0_3, %c0_4] : memref<16x1xf32, #tpu.memory_space<vmem>>, vector<16x1xf32>
    %c0_5 = arith.constant 0 : index
    %c0_6 = arith.constant 0 : index
    %3 = vector.load %arg8[%c0_5, %c0_6] : memref<16x1xf32, #tpu.memory_space<vmem>>, vector<16x1xf32>
    %4 = vector.broadcast %2 : vector<16x1xf32> to vector<16x256xf32>
    %5 = arith.mulf %1, %4 : vector<16x256xf32>
    %6 = vector.broadcast %3 : vector<16x1xf32> to vector<16x256xf32>
    %7 = arith.addf %5, %6 : vector<16x256xf32>
    %cst = arith.constant 0.000000e+00 : f32
    %8 = vector.broadcast %cst : f32 to vector<16x256xf32>
    %9 = arith.maximumf %7, %8 : vector<16x256xf32>
    %c17_i32 = arith.constant 17 : i32
    %10 = tpu.dynamic_rotate %9 by %c17_i32 dim 1 : vector<16x256xf32>, i32 -> vector<16x256xf32>
    %11 = vector.extract_strided_slice %0 {offsets = [0, 0], sizes = [1, 256], strides = [1, 1]} : vector<16x256xf32> to vector<1x256xf32>
    %12 = vector.broadcast %11 : vector<1x256xf32> to vector<16x256xf32>
    %13 = arith.mulf %10, %12 : vector<16x256xf32>
    %14 = arith.truncf %13 : vector<16x256xf32> to vector<16x256xbf16>
    %c0_7 = arith.constant 0 : index
    %c0_8 = arith.constant 0 : index
    %15 = vector.load %arg12[%c0_7, %c0_8] : memref<144x256xbf16, #tpu.memory_space<vmem>>, vector<16x256xbf16>
    tpu.vector_store %arg12[%c0_7, %c0_8], %14 {strides = array<i32>} : memref<144x256xbf16, #tpu.memory_space<vmem>>, vector<16x256xbf16>,
    %c16_i32 = arith.constant 16 : i32
    %16 = tpu.dynamic_rotate %9 by %c16_i32 dim 1 : vector<16x256xf32>, i32 -> vector<16x256xf32>
    %17 = vector.extract_strided_slice %0 {offsets = [1, 0], sizes = [1, 256], strides = [1, 1]} : vector<16x256xf32> to vector<1x256xf32>
    %18 = vector.broadcast %17 : vector<1x256xf32> to vector<16x256xf32>
    %19 = arith.mulf %16, %18 : vector<16x256xf32>
    %20 = arith.truncf %19 : vector<16x256xf32> to vector<16x256xbf16>
    %c16 = arith.constant 16 : index
    %c0_9 = arith.constant 0 : index
    %21 = vector.load %arg12[%c16, %c0_9] : memref<144x256xbf16, #tpu.memory_space<vmem>>, vector<16x256xbf16>
    tpu.vector_store %arg12[%c16, %c0_9], %20 {strides = array<i32>} : memref<144x256xbf16, #tpu.memory_space<vmem>>, vector<16x256xbf16>,
    %c15_i32 = arith.constant 15 : i32
    %22 = tpu.dynamic_rotate %9 by %c15_i32 dim 1 : vector<16x256xf32>, i32 -> vector<16x256xf32>
    %23 = vector.extract_strided_slice %0 {offsets = [2, 0], sizes = [1, 256], strides = [1, 1]} : vector<16x256xf32> to vector<1x256xf32>
    %24 = vector.broadcast %23 : vector<1x256xf32> to vector<16x256xf32>
    %25 = arith.mulf %22, %24 : vector<16x256xf32>
    %26 = arith.truncf %25 : vector<16x256xf32> to vector<16x256xbf16>
    %c32 = arith.constant 32 : index
    %c0_10 = arith.constant 0 : index
    %27 = vector.load %arg12[%c32, %c0_10] : memref<144x256xbf16, #tpu.memory_space<vmem>>, vector<16x256xbf16>
    tpu.vector_store %arg12[%c32, %c0_10], %26 {strides = array<i32>} : memref<144x256xbf16, #tpu.memory_space<vmem>>, vector<16x256xbf16>,
    %c1_i32 = arith.constant 1 : i32
    %28 = tpu.dynamic_rotate %9 by %c1_i32 dim 1 : vector<16x256xf32>, i32 -> vector<16x256xf32>
    %29 = vector.extract_strided_slice %0 {offsets = [3, 0], sizes = [1, 256], strides = [1, 1]} : vector<16x256xf32> to vector<1x256xf32>
    %30 = vector.broadcast %29 : vector<1x256xf32> to vector<16x256xf32>
    %31 = arith.mulf %28, %30 : vector<16x256xf32>
    %32 = arith.truncf %31 : vector<16x256xf32> to vector<16x256xbf16>
    %c48 = arith.constant 48 : index
    %c0_11 = arith.constant 0 : index
    %33 = vector.load %arg12[%c48, %c0_11] : memref<144x256xbf16, #tpu.memory_space<vmem>>, vector<16x256xbf16>
    tpu.vector_store %arg12[%c48, %c0_11], %32 {strides = array<i32>} : memref<144x256xbf16, #tpu.memory_space<vmem>>, vector<16x256xbf16>,
    %34 = arith.truncf %9 : vector<16x256xf32> to vector<16x256xbf16>
    %c64 = arith.constant 64 : index
    %c0_12 = arith.constant 0 : index
    %35 = vector.load %arg12[%c64, %c0_12] : memref<144x256xbf16, #tpu.memory_space<vmem>>, vector<16x256xbf16>
    tpu.vector_store %arg12[%c64, %c0_12], %34 {strides = array<i32>} : memref<144x256xbf16, #tpu.memory_space<vmem>>, vector<16x256xbf16>,
    %c255_i32 = arith.constant 255 : i32
    %36 = tpu.dynamic_rotate %9 by %c255_i32 dim 1 : vector<16x256xf32>, i32 -> vector<16x256xf32>
    %37 = vector.extract_strided_slice %0 {offsets = [5, 0], sizes = [1, 256], strides = [1, 1]} : vector<16x256xf32> to vector<1x256xf32>
    %38 = vector.broadcast %37 : vector<1x256xf32> to vector<16x256xf32>
    %39 = arith.mulf %36, %38 : vector<16x256xf32>
    %40 = arith.truncf %39 : vector<16x256xf32> to vector<16x256xbf16>
    %c80 = arith.constant 80 : index
    %c0_13 = arith.constant 0 : index
    %41 = vector.load %arg12[%c80, %c0_13] : memref<144x256xbf16, #tpu.memory_space<vmem>>, vector<16x256xbf16>
    tpu.vector_store %arg12[%c80, %c0_13], %40 {strides = array<i32>} : memref<144x256xbf16, #tpu.memory_space<vmem>>, vector<16x256xbf16>,
    %c241_i32 = arith.constant 241 : i32
    %42 = tpu.dynamic_rotate %9 by %c241_i32 dim 1 : vector<16x256xf32>, i32 -> vector<16x256xf32>
    %43 = vector.extract_strided_slice %0 {offsets = [6, 0], sizes = [1, 256], strides = [1, 1]} : vector<16x256xf32> to vector<1x256xf32>
    %44 = vector.broadcast %43 : vector<1x256xf32> to vector<16x256xf32>
    %45 = arith.mulf %42, %44 : vector<16x256xf32>
    %46 = arith.truncf %45 : vector<16x256xf32> to vector<16x256xbf16>
    %c96 = arith.constant 96 : index
    %c0_14 = arith.constant 0 : index
    %47 = vector.load %arg12[%c96, %c0_14] : memref<144x256xbf16, #tpu.memory_space<vmem>>, vector<16x256xbf16>
    tpu.vector_store %arg12[%c96, %c0_14], %46 {strides = array<i32>} : memref<144x256xbf16, #tpu.memory_space<vmem>>, vector<16x256xbf16>,
    %c240_i32 = arith.constant 240 : i32
    %48 = tpu.dynamic_rotate %9 by %c240_i32 dim 1 : vector<16x256xf32>, i32 -> vector<16x256xf32>
    %49 = vector.extract_strided_slice %0 {offsets = [7, 0], sizes = [1, 256], strides = [1, 1]} : vector<16x256xf32> to vector<1x256xf32>
    %50 = vector.broadcast %49 : vector<1x256xf32> to vector<16x256xf32>
    %51 = arith.mulf %48, %50 : vector<16x256xf32>
    %52 = arith.truncf %51 : vector<16x256xf32> to vector<16x256xbf16>
    %c112 = arith.constant 112 : index
    %c0_15 = arith.constant 0 : index
    %53 = vector.load %arg12[%c112, %c0_15] : memref<144x256xbf16, #tpu.memory_space<vmem>>, vector<16x256xbf16>
    tpu.vector_store %arg12[%c112, %c0_15], %52 {strides = array<i32>} : memref<144x256xbf16, #tpu.memory_space<vmem>>, vector<16x256xbf16>,
    %c239_i32 = arith.constant 239 : i32
    %54 = tpu.dynamic_rotate %9 by %c239_i32 dim 1 : vector<16x256xf32>, i32 -> vector<16x256xf32>
    %55 = vector.extract_strided_slice %0 {offsets = [8, 0], sizes = [1, 256], strides = [1, 1]} : vector<16x256xf32> to vector<1x256xf32>
    %56 = vector.broadcast %55 : vector<1x256xf32> to vector<16x256xf32>
    %57 = arith.mulf %54, %56 : vector<16x256xf32>
    %58 = arith.truncf %57 : vector<16x256xf32> to vector<16x256xbf16>
    %c128 = arith.constant 128 : index
    %c0_16 = arith.constant 0 : index
    %59 = vector.load %arg12[%c128, %c0_16] : memref<144x256xbf16, #tpu.memory_space<vmem>>, vector<16x256xbf16>
    tpu.vector_store %arg12[%c128, %c0_16], %58 {strides = array<i32>} : memref<144x256xbf16, #tpu.memory_space<vmem>>, vector<16x256xbf16>,
    %c0_17 = arith.constant 0 : index
    %c0_18 = arith.constant 0 : index
    %60 = vector.load %arg3[%c0_17, %c0_18] : memref<64x144xbf16, #tpu.memory_space<vmem>>, vector<64x144xbf16>
    %c0_19 = arith.constant 0 : index
    %c0_20 = arith.constant 0 : index
    %61 = vector.load %arg12[%c0_19, %c0_20] : memref<144x256xbf16, #tpu.memory_space<vmem>>, vector<144x256xbf16>
    %cst_21 = arith.constant dense<0.000000e+00> : vector<64x256xf32>
    %62 = tpu.matmul %60, %61, %cst_21 {dimension_numbers = #tpu.dot_dimension_numbers<[1], [0], [0], [1], [0, 0, 1, 1], [], []>} : vector<64x144xbf16>, vector<144x256xbf16>, vector<64x256xf32> -> vector<64x256xf32>
    %c0_22 = arith.constant 0 : index
    %c0_23 = arith.constant 0 : index
    %63 = vector.load %arg9[%c0_22, %c0_23] : memref<16x1xf32, #tpu.memory_space<vmem>>, vector<16x1xf32>
    %c0_24 = arith.constant 0 : index
    %c0_25 = arith.constant 0 : index
    %64 = vector.load %arg10[%c0_24, %c0_25] : memref<16x1xf32, #tpu.memory_space<vmem>>, vector<16x1xf32>
    %65 = vector.extract_strided_slice %62 {offsets = [0, 0], sizes = [16, 256], strides = [1, 1]} : vector<64x256xf32> to vector<16x256xf32>
    %66 = vector.broadcast %63 : vector<16x1xf32> to vector<16x256xf32>
    %67 = arith.mulf %65, %66 : vector<16x256xf32>
    %68 = vector.broadcast %64 : vector<16x1xf32> to vector<16x256xf32>
    %69 = arith.addf %67, %68 : vector<16x256xf32>
    %cst_26 = arith.constant 0.000000e+00 : f32
    %70 = vector.broadcast %cst_26 : f32 to vector<16x256xf32>
    %71 = arith.maximumf %69, %70 : vector<16x256xf32>
    %c0_27 = arith.constant 0 : index
    %c0_28 = arith.constant 0 : index
    %72 = vector.load %arg13[%c0_27, %c0_28] : memref<64x256xf32, #tpu.memory_space<vmem>>, vector<16x256xf32>
    tpu.vector_store %arg13[%c0_27, %c0_28], %71 {strides = array<i32>} : memref<64x256xf32, #tpu.memory_space<vmem>>, vector<16x256xf32>,
    %73 = vector.extract_strided_slice %62 {offsets = [16, 0], sizes = [16, 256], strides = [1, 1]} : vector<64x256xf32> to vector<16x256xf32>
    %74 = vector.broadcast %63 : vector<16x1xf32> to vector<16x256xf32>
    %75 = arith.mulf %73, %74 : vector<16x256xf32>
    %76 = vector.broadcast %64 : vector<16x1xf32> to vector<16x256xf32>
    %77 = arith.addf %75, %76 : vector<16x256xf32>
    %cst_29 = arith.constant 0.000000e+00 : f32
    %78 = vector.broadcast %cst_29 : f32 to vector<16x256xf32>
    %79 = arith.maximumf %77, %78 : vector<16x256xf32>
    %c16_30 = arith.constant 16 : index
    %c0_31 = arith.constant 0 : index
    %80 = vector.load %arg13[%c16_30, %c0_31] : memref<64x256xf32, #tpu.memory_space<vmem>>, vector<16x256xf32>
    tpu.vector_store %arg13[%c16_30, %c0_31], %79 {strides = array<i32>} : memref<64x256xf32, #tpu.memory_space<vmem>>, vector<16x256xf32>,
    %81 = vector.extract_strided_slice %62 {offsets = [32, 0], sizes = [16, 256], strides = [1, 1]} : vector<64x256xf32> to vector<16x256xf32>
    %82 = vector.broadcast %63 : vector<16x1xf32> to vector<16x256xf32>
    %83 = arith.mulf %81, %82 : vector<16x256xf32>
    %84 = vector.broadcast %64 : vector<16x1xf32> to vector<16x256xf32>
    %85 = arith.addf %83, %84 : vector<16x256xf32>
    %cst_32 = arith.constant 0.000000e+00 : f32
    %86 = vector.broadcast %cst_32 : f32 to vector<16x256xf32>
    %87 = arith.maximumf %85, %86 : vector<16x256xf32>
    %c32_33 = arith.constant 32 : index
    %c0_34 = arith.constant 0 : index
    %88 = vector.load %arg13[%c32_33, %c0_34] : memref<64x256xf32, #tpu.memory_space<vmem>>, vector<16x256xf32>
    tpu.vector_store %arg13[%c32_33, %c0_34], %87 {strides = array<i32>} : memref<64x256xf32, #tpu.memory_space<vmem>>, vector<16x256xf32>,
    %89 = vector.extract_strided_slice %62 {offsets = [48, 0], sizes = [16, 256], strides = [1, 1]} : vector<64x256xf32> to vector<16x256xf32>
    %90 = vector.broadcast %63 : vector<16x1xf32> to vector<16x256xf32>
    %91 = arith.mulf %89, %90 : vector<16x256xf32>
    %92 = vector.broadcast %64 : vector<16x1xf32> to vector<16x256xf32>
    %93 = arith.addf %91, %92 : vector<16x256xf32>
    %cst_35 = arith.constant 0.000000e+00 : f32
    %94 = vector.broadcast %cst_35 : f32 to vector<16x256xf32>
    %95 = arith.maximumf %93, %94 : vector<16x256xf32>
    %c48_36 = arith.constant 48 : index
    %c0_37 = arith.constant 0 : index
    %96 = vector.load %arg13[%c48_36, %c0_37] : memref<64x256xf32, #tpu.memory_space<vmem>>, vector<16x256xf32>
    tpu.vector_store %arg13[%c48_36, %c0_37], %95 {strides = array<i32>} : memref<64x256xf32, #tpu.memory_space<vmem>>, vector<16x256xf32>,
    %c48_38 = arith.constant 48 : index
    %c0_39 = arith.constant 0 : index
    %97 = vector.load %arg13[%c48_38, %c0_39] : memref<64x256xf32, #tpu.memory_space<vmem>>, vector<16x256xf32>
    %c17_i32_40 = arith.constant 17 : i32
    %98 = tpu.dynamic_rotate %97 by %c17_i32_40 dim 1 : vector<16x256xf32>, i32 -> vector<16x256xf32>
    %99 = vector.extract_strided_slice %0 {offsets = [0, 0], sizes = [1, 256], strides = [1, 1]} : vector<16x256xf32> to vector<1x256xf32>
    %100 = vector.broadcast %99 : vector<1x256xf32> to vector<16x256xf32>
    %101 = arith.mulf %98, %100 : vector<16x256xf32>
    %102 = arith.truncf %101 : vector<16x256xf32> to vector<16x256xbf16>
    %c0_41 = arith.constant 0 : index
    %c0_42 = arith.constant 0 : index
    %103 = vector.load %arg14[%c0_41, %c0_42] : memref<64x256xbf16, #tpu.memory_space<vmem>>, vector<16x256xbf16>
    tpu.vector_store %arg14[%c0_41, %c0_42], %102 {strides = array<i32>} : memref<64x256xbf16, #tpu.memory_space<vmem>>, vector<16x256xbf16>,
    %c32_43 = arith.constant 32 : index
    %c0_44 = arith.constant 0 : index
    %104 = vector.load %arg13[%c32_43, %c0_44] : memref<64x256xf32, #tpu.memory_space<vmem>>, vector<16x256xf32>
    %c16_i32_45 = arith.constant 16 : i32
    %105 = tpu.dynamic_rotate %104 by %c16_i32_45 dim 1 : vector<16x256xf32>, i32 -> vector<16x256xf32>
    %106 = vector.extract_strided_slice %0 {offsets = [1, 0], sizes = [1, 256], strides = [1, 1]} : vector<16x256xf32> to vector<1x256xf32>
    %107 = vector.broadcast %106 : vector<1x256xf32> to vector<16x256xf32>
    %108 = arith.mulf %105, %107 : vector<16x256xf32>
    %109 = arith.truncf %108 : vector<16x256xf32> to vector<16x256xbf16>
    %c16_46 = arith.constant 16 : index
    %c0_47 = arith.constant 0 : index
    %110 = vector.load %arg14[%c16_46, %c0_47] : memref<64x256xbf16, #tpu.memory_space<vmem>>, vector<16x256xbf16>
    tpu.vector_store %arg14[%c16_46, %c0_47], %109 {strides = array<i32>} : memref<64x256xbf16, #tpu.memory_space<vmem>>, vector<16x256xbf16>,
    %c48_48 = arith.constant 48 : index
    %c0_49 = arith.constant 0 : index
    %111 = vector.load %arg13[%c48_48, %c0_49] : memref<64x256xf32, #tpu.memory_space<vmem>>, vector<16x256xf32>
    %c16_i32_50 = arith.constant 16 : i32
    %112 = tpu.dynamic_rotate %111 by %c16_i32_50 dim 1 : vector<16x256xf32>, i32 -> vector<16x256xf32>
    %113 = vector.extract_strided_slice %0 {offsets = [1, 0], sizes = [1, 256], strides = [1, 1]} : vector<16x256xf32> to vector<1x256xf32>
    %114 = vector.broadcast %113 : vector<1x256xf32> to vector<16x256xf32>
    %115 = arith.mulf %112, %114 : vector<16x256xf32>
    %116 = arith.truncf %115 : vector<16x256xf32> to vector<16x256xbf16>
    %c32_51 = arith.constant 32 : index
    %c0_52 = arith.constant 0 : index
    %117 = vector.load %arg14[%c32_51, %c0_52] : memref<64x256xbf16, #tpu.memory_space<vmem>>, vector<16x256xbf16>
    tpu.vector_store %arg14[%c32_51, %c0_52], %116 {strides = array<i32>} : memref<64x256xbf16, #tpu.memory_space<vmem>>, vector<16x256xbf16>,
    %c32_53 = arith.constant 32 : index
    %c0_54 = arith.constant 0 : index
    %118 = vector.load %arg13[%c32_53, %c0_54] : memref<64x256xf32, #tpu.memory_space<vmem>>, vector<16x256xf32>
    %c15_i32_55 = arith.constant 15 : i32
    %119 = tpu.dynamic_rotate %118 by %c15_i32_55 dim 1 : vector<16x256xf32>, i32 -> vector<16x256xf32>
    %120 = vector.extract_strided_slice %0 {offsets = [2, 0], sizes = [1, 256], strides = [1, 1]} : vector<16x256xf32> to vector<1x256xf32>
    %121 = vector.broadcast %120 : vector<1x256xf32> to vector<16x256xf32>
    %122 = arith.mulf %119, %121 : vector<16x256xf32>
    %123 = arith.truncf %122 : vector<16x256xf32> to vector<16x256xbf16>
    %c48_56 = arith.constant 48 : index
    %c0_57 = arith.constant 0 : index
    %124 = vector.load %arg14[%c48_56, %c0_57] : memref<64x256xbf16, #tpu.memory_space<vmem>>, vector<16x256xbf16>
    tpu.vector_store %arg14[%c48_56, %c0_57], %123 {strides = array<i32>} : memref<64x256xbf16, #tpu.memory_space<vmem>>, vector<16x256xbf16>,
    %c0_58 = arith.constant 0 : index
    %c0_59 = arith.constant 0 : index
    %c0_60 = arith.constant 0 : index
    %125 = vector.load %arg4[%c0_58, %c0_59, %c0_60] : memref<4x64x64xbf16, #tpu.memory_space<vmem>>, vector<1x64x64xbf16>
    %126 = vector.shape_cast %125 : vector<1x64x64xbf16> to vector<64x64xbf16>
    %c0_61 = arith.constant 0 : index
    %c0_62 = arith.constant 0 : index
    %127 = vector.load %arg14[%c0_61, %c0_62] : memref<64x256xbf16, #tpu.memory_space<vmem>>, vector<64x256xbf16>
    %cst_63 = arith.constant dense<0.000000e+00> : vector<64x256xf32>
    %128 = tpu.matmul %126, %127, %cst_63 {dimension_numbers = #tpu.dot_dimension_numbers<[1], [0], [0], [1], [0, 0, 1, 1], [], []>} : vector<64x64xbf16>, vector<64x256xbf16>, vector<64x256xf32> -> vector<64x256xf32>
    %c0_64 = arith.constant 0 : index
    %c0_65 = arith.constant 0 : index
    %129 = vector.load %arg15[%c0_64, %c0_65] : memref<64x256xf32, #tpu.memory_space<vmem>>, vector<64x256xf32>
    tpu.vector_store %arg15[%c0_64, %c0_65], %128 {strides = array<i32>} : memref<64x256xf32, #tpu.memory_space<vmem>>, vector<64x256xf32>,
    %c16_66 = arith.constant 16 : index
    %c0_67 = arith.constant 0 : index
    %130 = vector.load %arg13[%c16_66, %c0_67] : memref<64x256xf32, #tpu.memory_space<vmem>>, vector<16x256xf32>
    %c1_i32_68 = arith.constant 1 : i32
    %131 = tpu.dynamic_rotate %130 by %c1_i32_68 dim 1 : vector<16x256xf32>, i32 -> vector<16x256xf32>
    %132 = vector.extract_strided_slice %0 {offsets = [3, 0], sizes = [1, 256], strides = [1, 1]} : vector<16x256xf32> to vector<1x256xf32>
    %133 = vector.broadcast %132 : vector<1x256xf32> to vector<16x256xf32>
    %134 = arith.mulf %131, %133 : vector<16x256xf32>
    %135 = arith.truncf %134 : vector<16x256xf32> to vector<16x256xbf16>
    %c0_69 = arith.constant 0 : index
    %c0_70 = arith.constant 0 : index
    %136 = vector.load %arg14[%c0_69, %c0_70] : memref<64x256xbf16, #tpu.memory_space<vmem>>, vector<16x256xbf16>
    tpu.vector_store %arg14[%c0_69, %c0_70], %135 {strides = array<i32>} : memref<64x256xbf16, #tpu.memory_space<vmem>>, vector<16x256xbf16>,
    %c0_71 = arith.constant 0 : index
    %c0_72 = arith.constant 0 : index
    %137 = vector.load %arg13[%c0_71, %c0_72] : memref<64x256xf32, #tpu.memory_space<vmem>>, vector<16x256xf32>
    %138 = arith.truncf %137 : vector<16x256xf32> to vector<16x256xbf16>
    %c16_73 = arith.constant 16 : index
    %c0_74 = arith.constant 0 : index
    %139 = vector.load %arg14[%c16_73, %c0_74] : memref<64x256xbf16, #tpu.memory_space<vmem>>, vector<16x256xbf16>
    tpu.vector_store %arg14[%c16_73, %c0_74], %138 {strides = array<i32>} : memref<64x256xbf16, #tpu.memory_space<vmem>>, vector<16x256xbf16>,
    %c16_75 = arith.constant 16 : index
    %c0_76 = arith.constant 0 : index
    %140 = vector.load %arg13[%c16_75, %c0_76] : memref<64x256xf32, #tpu.memory_space<vmem>>, vector<16x256xf32>
    %141 = arith.truncf %140 : vector<16x256xf32> to vector<16x256xbf16>
    %c32_77 = arith.constant 32 : index
    %c0_78 = arith.constant 0 : index
    %142 = vector.load %arg14[%c32_77, %c0_78] : memref<64x256xbf16, #tpu.memory_space<vmem>>, vector<16x256xbf16>
    tpu.vector_store %arg14[%c32_77, %c0_78], %141 {strides = array<i32>} : memref<64x256xbf16, #tpu.memory_space<vmem>>, vector<16x256xbf16>,
    %c0_79 = arith.constant 0 : index
    %c0_80 = arith.constant 0 : index
    %143 = vector.load %arg13[%c0_79, %c0_80] : memref<64x256xf32, #tpu.memory_space<vmem>>, vector<16x256xf32>
    %c255_i32_81 = arith.constant 255 : i32
    %144 = tpu.dynamic_rotate %143 by %c255_i32_81 dim 1 : vector<16x256xf32>, i32 -> vector<16x256xf32>
    %145 = vector.extract_strided_slice %0 {offsets = [5, 0], sizes = [1, 256], strides = [1, 1]} : vector<16x256xf32> to vector<1x256xf32>
    %146 = vector.broadcast %145 : vector<1x256xf32> to vector<16x256xf32>
    %147 = arith.mulf %144, %146 : vector<16x256xf32>
    %148 = arith.truncf %147 : vector<16x256xf32> to vector<16x256xbf16>
    %c48_82 = arith.constant 48 : index
    %c0_83 = arith.constant 0 : index
    %149 = vector.load %arg14[%c48_82, %c0_83] : memref<64x256xbf16, #tpu.memory_space<vmem>>, vector<16x256xbf16>
    tpu.vector_store %arg14[%c48_82, %c0_83], %148 {strides = array<i32>} : memref<64x256xbf16, #tpu.memory_space<vmem>>, vector<16x256xbf16>,
    %c1 = arith.constant 1 : index
    %c0_84 = arith.constant 0 : index
    %c0_85 = arith.constant 0 : index
    %150 = vector.load %arg4[%c1, %c0_84, %c0_85] : memref<4x64x64xbf16, #tpu.memory_space<vmem>>, vector<1x64x64xbf16>
    %151 = vector.shape_cast %150 : vector<1x64x64xbf16> to vector<64x64xbf16>
    %c0_86 = arith.constant 0 : index
    %c0_87 = arith.constant 0 : index
    %152 = vector.load %arg14[%c0_86, %c0_87] : memref<64x256xbf16, #tpu.memory_space<vmem>>, vector<64x256xbf16>
    %cst_88 = arith.constant dense<0.000000e+00> : vector<64x256xf32>
    %153 = tpu.matmul %151, %152, %cst_88 {dimension_numbers = #tpu.dot_dimension_numbers<[1], [0], [0], [1], [0, 0, 1, 1], [], []>} : vector<64x64xbf16>, vector<64x256xbf16>, vector<64x256xf32> -> vector<64x256xf32>
    %c0_89 = arith.constant 0 : index
    %c0_90 = arith.constant 0 : index
    %154 = vector.load %arg15[%c0_89, %c0_90] : memref<64x256xf32, #tpu.memory_space<vmem>>, vector<64x256xf32>
    %155 = arith.addf %154, %153 : vector<64x256xf32>
    %c0_91 = arith.constant 0 : index
    %c0_92 = arith.constant 0 : index
    %156 = vector.load %arg15[%c0_91, %c0_92] : memref<64x256xf32, #tpu.memory_space<vmem>>, vector<64x256xf32>
    tpu.vector_store %arg15[%c0_91, %c0_92], %155 {strides = array<i32>} : memref<64x256xf32, #tpu.memory_space<vmem>>, vector<64x256xf32>,
    %c48_93 = arith.constant 48 : index
    %c0_94 = arith.constant 0 : index
    %157 = vector.load %arg13[%c48_93, %c0_94] : memref<64x256xf32, #tpu.memory_space<vmem>>, vector<16x256xf32>
    %c1_i32_95 = arith.constant 1 : i32
    %158 = tpu.dynamic_rotate %157 by %c1_i32_95 dim 1 : vector<16x256xf32>, i32 -> vector<16x256xf32>
    %159 = vector.extract_strided_slice %0 {offsets = [3, 0], sizes = [1, 256], strides = [1, 1]} : vector<16x256xf32> to vector<1x256xf32>
    %160 = vector.broadcast %159 : vector<1x256xf32> to vector<16x256xf32>
    %161 = arith.mulf %158, %160 : vector<16x256xf32>
    %162 = arith.truncf %161 : vector<16x256xf32> to vector<16x256xbf16>
    %c0_96 = arith.constant 0 : index
    %c0_97 = arith.constant 0 : index
    %163 = vector.load %arg14[%c0_96, %c0_97] : memref<64x256xbf16, #tpu.memory_space<vmem>>, vector<16x256xbf16>
    tpu.vector_store %arg14[%c0_96, %c0_97], %162 {strides = array<i32>} : memref<64x256xbf16, #tpu.memory_space<vmem>>, vector<16x256xbf16>,
    %c32_98 = arith.constant 32 : index
    %c0_99 = arith.constant 0 : index
    %164 = vector.load %arg13[%c32_98, %c0_99] : memref<64x256xf32, #tpu.memory_space<vmem>>, vector<16x256xf32>
    %165 = arith.truncf %164 : vector<16x256xf32> to vector<16x256xbf16>
    %c16_100 = arith.constant 16 : index
    %c0_101 = arith.constant 0 : index
    %166 = vector.load %arg14[%c16_100, %c0_101] : memref<64x256xbf16, #tpu.memory_space<vmem>>, vector<16x256xbf16>
    tpu.vector_store %arg14[%c16_100, %c0_101], %165 {strides = array<i32>} : memref<64x256xbf16, #tpu.memory_space<vmem>>, vector<16x256xbf16>,
    %c48_102 = arith.constant 48 : index
    %c0_103 = arith.constant 0 : index
    %167 = vector.load %arg13[%c48_102, %c0_103] : memref<64x256xf32, #tpu.memory_space<vmem>>, vector<16x256xf32>
    %168 = arith.truncf %167 : vector<16x256xf32> to vector<16x256xbf16>
    %c32_104 = arith.constant 32 : index
    %c0_105 = arith.constant 0 : index
    %169 = vector.load %arg14[%c32_104, %c0_105] : memref<64x256xbf16, #tpu.memory_space<vmem>>, vector<16x256xbf16>
    tpu.vector_store %arg14[%c32_104, %c0_105], %168 {strides = array<i32>} : memref<64x256xbf16, #tpu.memory_space<vmem>>, vector<16x256xbf16>,
    %c32_106 = arith.constant 32 : index
    %c0_107 = arith.constant 0 : index
    %170 = vector.load %arg13[%c32_106, %c0_107] : memref<64x256xf32, #tpu.memory_space<vmem>>, vector<16x256xf32>
    %c255_i32_108 = arith.constant 255 : i32
    %171 = tpu.dynamic_rotate %170 by %c255_i32_108 dim 1 : vector<16x256xf32>, i32 -> vector<16x256xf32>
    %172 = vector.extract_strided_slice %0 {offsets = [5, 0], sizes = [1, 256], strides = [1, 1]} : vector<16x256xf32> to vector<1x256xf32>
    %173 = vector.broadcast %172 : vector<1x256xf32> to vector<16x256xf32>
    %174 = arith.mulf %171, %173 : vector<16x256xf32>
    %175 = arith.truncf %174 : vector<16x256xf32> to vector<16x256xbf16>
    %c48_109 = arith.constant 48 : index
    %c0_110 = arith.constant 0 : index
    %176 = vector.load %arg14[%c48_109, %c0_110] : memref<64x256xbf16, #tpu.memory_space<vmem>>, vector<16x256xbf16>
    tpu.vector_store %arg14[%c48_109, %c0_110], %175 {strides = array<i32>} : memref<64x256xbf16, #tpu.memory_space<vmem>>, vector<16x256xbf16>,
    %c2 = arith.constant 2 : index
    %c0_111 = arith.constant 0 : index
    %c0_112 = arith.constant 0 : index
    %177 = vector.load %arg4[%c2, %c0_111, %c0_112] : memref<4x64x64xbf16, #tpu.memory_space<vmem>>, vector<1x64x64xbf16>
    %178 = vector.shape_cast %177 : vector<1x64x64xbf16> to vector<64x64xbf16>
    %c0_113 = arith.constant 0 : index
    %c0_114 = arith.constant 0 : index
    %179 = vector.load %arg14[%c0_113, %c0_114] : memref<64x256xbf16, #tpu.memory_space<vmem>>, vector<64x256xbf16>
    %cst_115 = arith.constant dense<0.000000e+00> : vector<64x256xf32>
    %180 = tpu.matmul %178, %179, %cst_115 {dimension_numbers = #tpu.dot_dimension_numbers<[1], [0], [0], [1], [0, 0, 1, 1], [], []>} : vector<64x64xbf16>, vector<64x256xbf16>, vector<64x256xf32> -> vector<64x256xf32>
    %c0_116 = arith.constant 0 : index
    %c0_117 = arith.constant 0 : index
    %181 = vector.load %arg15[%c0_116, %c0_117] : memref<64x256xf32, #tpu.memory_space<vmem>>, vector<64x256xf32>
    %182 = arith.addf %181, %180 : vector<64x256xf32>
    %c0_118 = arith.constant 0 : index
    %c0_119 = arith.constant 0 : index
    %183 = vector.load %arg15[%c0_118, %c0_119] : memref<64x256xf32, #tpu.memory_space<vmem>>, vector<64x256xf32>
    tpu.vector_store %arg15[%c0_118, %c0_119], %182 {strides = array<i32>} : memref<64x256xf32, #tpu.memory_space<vmem>>, vector<64x256xf32>,
    %c16_120 = arith.constant 16 : index
    %c0_121 = arith.constant 0 : index
    %184 = vector.load %arg13[%c16_120, %c0_121] : memref<64x256xf32, #tpu.memory_space<vmem>>, vector<16x256xf32>
    %c241_i32_122 = arith.constant 241 : i32
    %185 = tpu.dynamic_rotate %184 by %c241_i32_122 dim 1 : vector<16x256xf32>, i32 -> vector<16x256xf32>
    %186 = vector.extract_strided_slice %0 {offsets = [6, 0], sizes = [1, 256], strides = [1, 1]} : vector<16x256xf32> to vector<1x256xf32>
    %187 = vector.broadcast %186 : vector<1x256xf32> to vector<16x256xf32>
    %188 = arith.mulf %185, %187 : vector<16x256xf32>
    %189 = arith.truncf %188 : vector<16x256xf32> to vector<16x256xbf16>
    %c0_123 = arith.constant 0 : index
    %c0_124 = arith.constant 0 : index
    %190 = vector.load %arg14[%c0_123, %c0_124] : memref<64x256xbf16, #tpu.memory_space<vmem>>, vector<16x256xbf16>
    tpu.vector_store %arg14[%c0_123, %c0_124], %189 {strides = array<i32>} : memref<64x256xbf16, #tpu.memory_space<vmem>>, vector<16x256xbf16>,
    %c0_125 = arith.constant 0 : index
    %c0_126 = arith.constant 0 : index
    %191 = vector.load %arg13[%c0_125, %c0_126] : memref<64x256xf32, #tpu.memory_space<vmem>>, vector<16x256xf32>
    %c240_i32_127 = arith.constant 240 : i32
    %192 = tpu.dynamic_rotate %191 by %c240_i32_127 dim 1 : vector<16x256xf32>, i32 -> vector<16x256xf32>
    %193 = vector.extract_strided_slice %0 {offsets = [7, 0], sizes = [1, 256], strides = [1, 1]} : vector<16x256xf32> to vector<1x256xf32>
    %194 = vector.broadcast %193 : vector<1x256xf32> to vector<16x256xf32>
    %195 = arith.mulf %192, %194 : vector<16x256xf32>
    %196 = arith.truncf %195 : vector<16x256xf32> to vector<16x256xbf16>
    %c16_128 = arith.constant 16 : index
    %c0_129 = arith.constant 0 : index
    %197 = vector.load %arg14[%c16_128, %c0_129] : memref<64x256xbf16, #tpu.memory_space<vmem>>, vector<16x256xbf16>
    tpu.vector_store %arg14[%c16_128, %c0_129], %196 {strides = array<i32>} : memref<64x256xbf16, #tpu.memory_space<vmem>>, vector<16x256xbf16>,
    %c16_130 = arith.constant 16 : index
    %c0_131 = arith.constant 0 : index
    %198 = vector.load %arg13[%c16_130, %c0_131] : memref<64x256xf32, #tpu.memory_space<vmem>>, vector<16x256xf32>
    %c240_i32_132 = arith.constant 240 : i32
    %199 = tpu.dynamic_rotate %198 by %c240_i32_132 dim 1 : vector<16x256xf32>, i32 -> vector<16x256xf32>
    %200 = vector.extract_strided_slice %0 {offsets = [7, 0], sizes = [1, 256], strides = [1, 1]} : vector<16x256xf32> to vector<1x256xf32>
    %201 = vector.broadcast %200 : vector<1x256xf32> to vector<16x256xf32>
    %202 = arith.mulf %199, %201 : vector<16x256xf32>
    %203 = arith.truncf %202 : vector<16x256xf32> to vector<16x256xbf16>
    %c32_133 = arith.constant 32 : index
    %c0_134 = arith.constant 0 : index
    %204 = vector.load %arg14[%c32_133, %c0_134] : memref<64x256xbf16, #tpu.memory_space<vmem>>, vector<16x256xbf16>
    tpu.vector_store %arg14[%c32_133, %c0_134], %203 {strides = array<i32>} : memref<64x256xbf16, #tpu.memory_space<vmem>>, vector<16x256xbf16>,
    %c0_135 = arith.constant 0 : index
    %c0_136 = arith.constant 0 : index
    %205 = vector.load %arg13[%c0_135, %c0_136] : memref<64x256xf32, #tpu.memory_space<vmem>>, vector<16x256xf32>
    %c239_i32_137 = arith.constant 239 : i32
    %206 = tpu.dynamic_rotate %205 by %c239_i32_137 dim 1 : vector<16x256xf32>, i32 -> vector<16x256xf32>
    %207 = vector.extract_strided_slice %0 {offsets = [8, 0], sizes = [1, 256], strides = [1, 1]} : vector<16x256xf32> to vector<1x256xf32>
    %208 = vector.broadcast %207 : vector<1x256xf32> to vector<16x256xf32>
    %209 = arith.mulf %206, %208 : vector<16x256xf32>
    %210 = arith.truncf %209 : vector<16x256xf32> to vector<16x256xbf16>
    %c48_138 = arith.constant 48 : index
    %c0_139 = arith.constant 0 : index
    %211 = vector.load %arg14[%c48_138, %c0_139] : memref<64x256xbf16, #tpu.memory_space<vmem>>, vector<16x256xbf16>
    tpu.vector_store %arg14[%c48_138, %c0_139], %210 {strides = array<i32>} : memref<64x256xbf16, #tpu.memory_space<vmem>>, vector<16x256xbf16>,
    %c3 = arith.constant 3 : index
    %c0_140 = arith.constant 0 : index
    %c0_141 = arith.constant 0 : index
    %212 = vector.load %arg4[%c3, %c0_140, %c0_141] : memref<4x64x64xbf16, #tpu.memory_space<vmem>>, vector<1x64x64xbf16>
    %213 = vector.shape_cast %212 : vector<1x64x64xbf16> to vector<64x64xbf16>
    %c0_142 = arith.constant 0 : index
    %c0_143 = arith.constant 0 : index
    %214 = vector.load %arg14[%c0_142, %c0_143] : memref<64x256xbf16, #tpu.memory_space<vmem>>, vector<64x256xbf16>
    %cst_144 = arith.constant dense<0.000000e+00> : vector<64x256xf32>
    %215 = tpu.matmul %213, %214, %cst_144 {dimension_numbers = #tpu.dot_dimension_numbers<[1], [0], [0], [1], [0, 0, 1, 1], [], []>} : vector<64x64xbf16>, vector<64x256xbf16>, vector<64x256xf32> -> vector<64x256xf32>
    %c0_145 = arith.constant 0 : index
    %c0_146 = arith.constant 0 : index
    %216 = vector.load %arg15[%c0_145, %c0_146] : memref<64x256xf32, #tpu.memory_space<vmem>>, vector<64x256xf32>
    %217 = arith.addf %216, %215 : vector<64x256xf32>
    %c0_147 = arith.constant 0 : index
    %c0_148 = arith.constant 0 : index
    %218 = vector.load %arg15[%c0_147, %c0_148] : memref<64x256xf32, #tpu.memory_space<vmem>>, vector<64x256xf32>
    tpu.vector_store %arg15[%c0_147, %c0_148], %217 {strides = array<i32>} : memref<64x256xf32, #tpu.memory_space<vmem>>, vector<64x256xf32>,
    %c0_149 = arith.constant 0 : index
    %c0_150 = arith.constant 0 : index
    %219 = vector.load %arg5[%c0_149, %c0_150] : memref<16x16xbf16, #tpu.memory_space<vmem>>, vector<16x16xbf16>
    %220 = arith.truncf %1 : vector<16x256xf32> to vector<16x256xbf16>
    %cst_151 = arith.constant dense<0.000000e+00> : vector<16x256xf32>
    %221 = tpu.matmul %219, %220, %cst_151 {dimension_numbers = #tpu.dot_dimension_numbers<[1], [0], [0], [1], [0, 0, 1, 1], [], []>} : vector<16x16xbf16>, vector<16x256xbf16>, vector<16x256xf32> -> vector<16x256xf32>
    %c0_152 = arith.constant 0 : index
    %c0_153 = arith.constant 0 : index
    %222 = vector.load %arg6[%c0_152, %c0_153] : memref<16x1xf32, #tpu.memory_space<vmem>>, vector<16x1xf32>
    %223 = vector.broadcast %222 : vector<16x1xf32> to vector<16x256xf32>
    %224 = arith.addf %221, %223 : vector<16x256xf32>
    %c0_154 = arith.constant 0 : index
    %c0_155 = arith.constant 0 : index
    %225 = vector.load %arg15[%c0_154, %c0_155] : memref<64x256xf32, #tpu.memory_space<vmem>>, vector<16x256xf32>
    %226 = arith.addf %225, %224 : vector<16x256xf32>
    %c0_156 = arith.constant 0 : index
    %c0_157 = arith.constant 0 : index
    %227 = vector.load %arg11[%c0_156, %c0_157] : memref<64x256xf32, #tpu.memory_space<vmem>>, vector<16x256xf32>
    tpu.vector_store %arg11[%c0_156, %c0_157], %226 {strides = array<i32>} : memref<64x256xf32, #tpu.memory_space<vmem>>, vector<16x256xf32>,
    %c16_158 = arith.constant 16 : index
    %c0_159 = arith.constant 0 : index
    %228 = vector.load %arg15[%c16_158, %c0_159] : memref<64x256xf32, #tpu.memory_space<vmem>>, vector<16x256xf32>
    %229 = arith.addf %228, %224 : vector<16x256xf32>
    %c16_160 = arith.constant 16 : index
    %c0_161 = arith.constant 0 : index
    %230 = vector.load %arg11[%c16_160, %c0_161] : memref<64x256xf32, #tpu.memory_space<vmem>>, vector<16x256xf32>
    tpu.vector_store %arg11[%c16_160, %c0_161], %229 {strides = array<i32>} : memref<64x256xf32, #tpu.memory_space<vmem>>, vector<16x256xf32>,
    %c32_162 = arith.constant 32 : index
    %c0_163 = arith.constant 0 : index
    %231 = vector.load %arg15[%c32_162, %c0_163] : memref<64x256xf32, #tpu.memory_space<vmem>>, vector<16x256xf32>
    %232 = arith.addf %231, %224 : vector<16x256xf32>
    %c32_164 = arith.constant 32 : index
    %c0_165 = arith.constant 0 : index
    %233 = vector.load %arg11[%c32_164, %c0_165] : memref<64x256xf32, #tpu.memory_space<vmem>>, vector<16x256xf32>
    tpu.vector_store %arg11[%c32_164, %c0_165], %232 {strides = array<i32>} : memref<64x256xf32, #tpu.memory_space<vmem>>, vector<16x256xf32>,
    %c48_166 = arith.constant 48 : index
    %c0_167 = arith.constant 0 : index
    %234 = vector.load %arg15[%c48_166, %c0_167] : memref<64x256xf32, #tpu.memory_space<vmem>>, vector<16x256xf32>
    %235 = arith.addf %234, %224 : vector<16x256xf32>
    %c48_168 = arith.constant 48 : index
    %c0_169 = arith.constant 0 : index
    %236 = vector.load %arg11[%c48_168, %c0_169] : memref<64x256xf32, #tpu.memory_space<vmem>>, vector<16x256xf32>
    tpu.vector_store %arg11[%c48_168, %c0_169], %235 {strides = array<i32>} : memref<64x256xf32, #tpu.memory_space<vmem>>, vector<16x256xf32>,
    return
  }
  func.func @transform_0(%arg0: i32) -> (i32, i32) {
    %c0_i32 = arith.constant 0 : i32
    %c0_i32_0 = arith.constant 0 : i32
    return %c0_i32, %arg0 : i32, i32
  }
  func.func @transform_1(%arg0: i32) -> (i32, i32) {
    %c0_i32 = arith.constant 0 : i32
    %c0_i32_0 = arith.constant 0 : i32
    %c0_i32_1 = arith.constant 0 : i32
    return %c0_i32, %c0_i32_0 : i32, i32
  }
  func.func @transform_2(%arg0: i32) -> (i32, i32) {
    %c0_i32 = arith.constant 0 : i32
    %c0_i32_0 = arith.constant 0 : i32
    %c0_i32_1 = arith.constant 0 : i32
    return %c0_i32, %c0_i32_0 : i32, i32
  }
  func.func @transform_3(%arg0: i32) -> (i32, i32, i32) {
    %c0_i32 = arith.constant 0 : i32
    %c0_i32_0 = arith.constant 0 : i32
    %c0_i32_1 = arith.constant 0 : i32
    %c0_i32_2 = arith.constant 0 : i32
    return %c0_i32, %c0_i32_0, %c0_i32_1 : i32, i32, i32
  }
  func.func @transform_4(%arg0: i32) -> (i32, i32) {
    %c0_i32 = arith.constant 0 : i32
    %c0_i32_0 = arith.constant 0 : i32
    %c0_i32_1 = arith.constant 0 : i32
    return %c0_i32, %c0_i32_0 : i32, i32
  }
  func.func @transform_5(%arg0: i32) -> (i32, i32) {
    %c0_i32 = arith.constant 0 : i32
    %c0_i32_0 = arith.constant 0 : i32
    %c0_i32_1 = arith.constant 0 : i32
    return %c0_i32, %c0_i32_0 : i32, i32
  }
  func.func @transform_6(%arg0: i32) -> (i32, i32) {
    %c0_i32 = arith.constant 0 : i32
    %c0_i32_0 = arith.constant 0 : i32
    %c0_i32_1 = arith.constant 0 : i32
    return %c0_i32, %c0_i32_0 : i32, i32
  }
  func.func @transform_7(%arg0: i32) -> (i32, i32) {
    %c0_i32 = arith.constant 0 : i32
    %c0_i32_0 = arith.constant 0 : i32
    %c0_i32_1 = arith.constant 0 : i32
    return %c0_i32, %c0_i32_0 : i32, i32
  }
  func.func @transform_8(%arg0: i32) -> (i32, i32) {
    %c0_i32 = arith.constant 0 : i32
    %c0_i32_0 = arith.constant 0 : i32
    %c0_i32_1 = arith.constant 0 : i32
    return %c0_i32, %c0_i32_0 : i32, i32
  }
  func.func @transform_9(%arg0: i32) -> (i32, i32) {
    %c0_i32 = arith.constant 0 : i32
    %c0_i32_0 = arith.constant 0 : i32
    %c0_i32_1 = arith.constant 0 : i32
    return %c0_i32, %c0_i32_0 : i32, i32
  }
  func.func @transform_10(%arg0: i32) -> (i32, i32) {
    %c0_i32 = arith.constant 0 : i32
    %c0_i32_0 = arith.constant 0 : i32
    return %c0_i32, %arg0 : i32, i32
  }
}

</mosaic_0001>

<llo_original>
// kernel: resblock_forward.2
$region0: #{resblock_forward.2}
  #allocation0 [shape = 'u32[]', space=smem, size = 0x4, offset = 0x4, fixed_abs, tag = 'smem constant byte address 0x4 - core index']
  #allocation1 [shape = 'u32[144,128]{1,0:T(1,128)}', space=vmem, size = 0x12000, scoped, tag = 'internal scratch']
  #allocation2 [shape = 'bf16[144,256]{1,0:T(16,128)(2,1)}', space=vmem, size = 0x12000, scoped, tag = 'scratch operand']
  %s0 = inlined_call_operand.hbm [shape: f32[16,512], index: 0, kind: input, shape index: {}]
  %s1 = inlined_call_operand.hbm [shape: f32[16,256], index: 1, kind: input, shape index: {}]
  %s2 = inlined_call_operand.hbm [shape: bf16[64,144], index: 2, kind: input, shape index: {}]
  %s3 = inlined_call_operand.hbm [shape: f32[16,1], index: 3, kind: input, shape index: {}]
  %s4 = inlined_call_operand.hbm [shape: f32[16,1], index: 4, kind: input, shape index: {}]
  %s5 = inlined_call_operand.hbm [shape: f32[2,16,1], index: 5, kind: output, shape index: {0}]
  %s6 = inlined_call_operand.hbm [shape: f32[2,16,1], index: 6, kind: output, shape index: {1}]
  %7 = xla_tuple %s5, %s6
  %s8 = sld [smem:[#allocation0]]
  $region81: #{resblock_forward.2} parent=0
    _
  %s10 = ssub.s32 1, %s8
  %s11 = scalar_select 0, %s10, %s8
  $region1: #{resblock_forward.2} parent=0
    #allocation3 [shape = 'u8[32768]{0}', space=vmem, size = 0x8000, scoped, tag = 'input window, operand 0']
    #allocation4 [shape = 's32[2]{0}', space=sflag, size = 0x8, scoped, tag = 'scoped memory for resblock_forward.2']
    #allocation5 [shape = 's32[2]{0}', space=sflag, size = 0x8, scoped, tag = 'scoped memory for resblock_forward.2']
    #allocation6 [shape = 'u8[16384]{0}', space=vmem, size = 0x4000, scoped, tag = 'input window, operand 1, single buffered']
    #allocation7 [shape = 's32[1]{0}', space=sflag, size = 0x4, scoped, tag = 'scoped memory for resblock_forward.2']
    #allocation8 [shape = 'u8[32768]{0}', space=vmem, size = 0x8000, scoped, tag = 'input window, operand 2, single buffered']
    #allocation9 [shape = 'u8[8192]{0}', space=vmem, size = 0x2000, scoped, tag = 'input window, operand 3, single buffered']
    #allocation10 [shape = 's32[1]{0}', space=sflag, size = 0x4, scoped, tag = 'scoped memory for resblock_forward.2']
    #allocation11 [shape = 'u8[8192]{0}', space=vmem, size = 0x2000, scoped, tag = 'input window, operand 4, single buffered']
    #allocation12 [shape = 'u8[16384]{0}', space=vmem, size = 0x4000, scoped, tag = 'output window, operand 0']
    #allocation13 [shape = 'u8[16384]{0}', space=vmem, size = 0x4000, scoped, tag = 'output window, operand 1']
    #allocation14 [shape = 's32[2]{0}', space=sflag, size = 0x8, scoped, tag = 'scoped memory for resblock_forward.2']
    %12 = vsyncpa [#allocation4], 0
    %s13 = scalar_lea.sflag [#allocation4], 1
    %14 = vsyncpa %s13, 0
    %15 = vsyncpa [#allocation7], 0
    %16 = vsyncpa [#allocation10], 0
    %17 = vsyncpa [#allocation5], 0
    %s18 = scalar_lea.sflag [#allocation5], 1
    %19 = vsyncpa %s18, 0
    %20 = vsyncpa [#allocation14], 0
    %s21 = scalar_lea.sflag [#allocation14], 1
    %22 = vsyncpa %s21, 0
    loop: start=0, step=1, limit=4
    $region2: #{resblock_forward.2} parent=1 // loop_pre_header
      _
    $region3: #{resblock_forward.2} parent=1 // loop_header
      %s24 = sphi 0, %s28
      %p25 = scmp.ge.s32.totalorder %s24, 4
      %s34 = sphi 0, %s36
      %s37 = sphi 0, %s34
      %s38 = sphi 0, %s37
      %s54 = sphi 0, %s38
      %s58 = sphi 0, %s58
      %s60 = sphi 0, %s58
      %s61 = sphi 0, %s60
      %s75 = sphi 0, %s61
      %s79 = sphi 0, %s79
      %s81 = sphi 0, %s79
      %s82 = sphi 0, %s81
      %s96 = sphi 0, %s82
      %s100 = sphi 0, %s100
      %s102 = sphi 0, %s100
      %s103 = sphi 0, %s102
      %s117 = sphi 0, %s103
      %s121 = sphi 0, %s121
      %s123 = sphi 0, %s121
      %s124 = sphi 0, %s123
      %s138 = sphi 0, %s124
      %s144 = sphi 0, %s146
      %s147 = sphi 0, %s144
      %s148 = sphi 0, %s147
      %s164 = sphi 0, %s148
      %s170 = sphi 0, %s172
      %s173 = sphi 0, %s170
      %s174 = sphi 0, %s173
      %s190 = sphi 0, %s174
    $region4: #{resblock_forward.2} parent=1 // loop_header_branch
      %27 = sbr.rel (%p25) target = $region8
    $region5: #{resblock_forward.2} parent=1 // loop_body
      %s29 = ssub.s32 %s24, 1
      %s30 = ssub.s32 %s24, 2
      %s31 = sadd.s32 %s24, 1
      %s32 = ssub.s32 %s24, %s31
      %p33 = scmp.eq.s32.totalorder %s32, 0
      %s35 = sadd.s32 %s34, 1
      %s36 = scalar_select %p33, %s34, %s35
      %p39 = pneg %p33
      %p40 = scmp.eq.s32.totalorder %s24, 1
      %p41 = por %p39, %p40
      %p42 = scmp.ne.s32.totalorder %s34, %s37
      %p43 = scmp.eq.s32.totalorder %s24, 0
      %p44 = por %p42, %p43
      %p45 = scmp.ne.s32.totalorder %s34, %s37
      %p46 = scmp.eq.s32.totalorder %s29, 1
      %p47 = por %p45, %p46
      %p48 = scmp.ne.s32.totalorder %s37, %s38
      %p49 = scmp.eq.s32.totalorder %s29, 0
      %p50 = por %p48, %p49
      %p51 = scmp.ne.s32.totalorder %s37, %s38
      %p52 = scmp.eq.s32.totalorder %s30, 1
      %p53 = por %p51, %p52
      %p55 = scmp.ne.s32.totalorder %s38, %s54
      %p56 = scmp.eq.s32.totalorder %s30, 0
      %p57 = por %p55, %p56
      %s59 = sadd.s32 %s58, 1
      %p62 = scmp.eq.s32.totalorder %s24, 1
      %p63 = scmp.ne.s32.totalorder %s58, %s60
      %p64 = scmp.eq.s32.totalorder %s24, 0
      %p65 = por %p63, %p64
      %p66 = scmp.ne.s32.totalorder %s58, %s60
      %p67 = scmp.eq.s32.totalorder %s29, 1
      %p68 = por %p66, %p67
      %p69 = scmp.ne.s32.totalorder %s60, %s61
      %p70 = scmp.eq.s32.totalorder %s29, 0
      %p71 = por %p69, %p70
      %p72 = scmp.ne.s32.totalorder %s60, %s61
      %p73 = scmp.eq.s32.totalorder %s30, 1
      %p74 = por %p72, %p73
      %p76 = scmp.ne.s32.totalorder %s61, %s75
      %p77 = scmp.eq.s32.totalorder %s30, 0
      %p78 = por %p76, %p77
      %s80 = sadd.s32 %s79, 1
      %p83 = scmp.eq.s32.totalorder %s24, 1
      %p84 = scmp.ne.s32.totalorder %s79, %s81
      %p85 = scmp.eq.s32.totalorder %s24, 0
      %p86 = por %p84, %p85
      %p87 = scmp.ne.s32.totalorder %s79, %s81
      %p88 = scmp.eq.s32.totalorder %s29, 1
      %p89 = por %p87, %p88
      %p90 = scmp.ne.s32.totalorder %s81, %s82
      %p91 = scmp.eq.s32.totalorder %s29, 0
      %p92 = por %p90, %p91
      %p93 = scmp.ne.s32.totalorder %s81, %s82
      %p94 = scmp.eq.s32.totalorder %s30, 1
      %p95 = por %p93, %p94
      %p97 = scmp.ne.s32.totalorder %s82, %s96
      %p98 = scmp.eq.s32.totalorder %s30, 0
      %p99 = por %p97, %p98
      %s101 = sadd.s32 %s100, 1
      %p104 = scmp.eq.s32.totalorder %s24, 1
      %p105 = scmp.ne.s32.totalorder %s100, %s102
      %p106 = scmp.eq.s32.totalorder %s24, 0
      %p107 = por %p105, %p106
      %p108 = scmp.ne.s32.totalorder %s100, %s102
      %p109 = scmp.eq.s32.totalorder %s29, 1
      %p110 = por %p108, %p109
      %p111 = scmp.ne.s32.totalorder %s102, %s103
      %p112 = scmp.eq.s32.totalorder %s29, 0
      %p113 = por %p111, %p112
      %p114 = scmp.ne.s32.totalorder %s102, %s103
      %p115 = scmp.eq.s32.totalorder %s30, 1
      %p116 = por %p114, %p115
      %p118 = scmp.ne.s32.totalorder %s103, %s117
      %p119 = scmp.eq.s32.totalorder %s30, 0
      %p120 = por %p118, %p119
      %s122 = sadd.s32 %s121, 1
      %p125 = scmp.eq.s32.totalorder %s24, 1
      %p126 = scmp.ne.s32.totalorder %s121, %s123
      %p127 = scmp.eq.s32.totalorder %s24, 0
      %p128 = por %p126, %p127
      %p129 = scmp.ne.s32.totalorder %s121, %s123
      %p130 = scmp.eq.s32.totalorder %s29, 1
      %p131 = por %p129, %p130
      %p132 = scmp.ne.s32.totalorder %s123, %s124
      %p133 = scmp.eq.s32.totalorder %s29, 0
      %p134 = por %p132, %p133
      %p135 = scmp.ne.s32.totalorder %s123, %s124
      %p136 = scmp.eq.s32.totalorder %s30, 1
      %p137 = por %p135, %p136
      %p139 = scmp.ne.s32.totalorder %s124, %s138
      %p140 = scmp.eq.s32.totalorder %s30, 0
      %p141 = por %p139, %p140
      %s142 = ssub.s32 %s24, %s31
      %p143 = scmp.eq.s32.totalorder %s142, 0
      %s145 = sadd.s32 %s144, 1
      %s146 = scalar_select %p143, %s144, %s145
      %p149 = pneg %p143
      %p150 = scmp.eq.s32.totalorder %s24, 1
      %p151 = por %p149, %p150
      %p152 = scmp.ne.s32.totalorder %s144, %s147
      %p153 = scmp.eq.s32.totalorder %s24, 0
      %p154 = por %p152, %p153
      %p155 = scmp.ne.s32.totalorder %s144, %s147
      %p156 = scmp.eq.s32.totalorder %s29, 1
      %p157 = por %p155, %p156
      %p158 = scmp.ne.s32.totalorder %s147, %s148
      %p159 = scmp.eq.s32.totalorder %s29, 0
      %p160 = por %p158, %p159
      %p161 = scmp.ne.s32.totalorder %s147, %s148
      %p162 = scmp.eq.s32.totalorder %s30, 1
      %p163 = por %p161, %p162
      %p165 = scmp.ne.s32.totalorder %s148, %s164
      %p166 = scmp.eq.s32.totalorder %s30, 0
      %p167 = por %p165, %p166
      %s168 = ssub.s32 %s24, %s31
      %p169 = scmp.eq.s32.totalorder %s168, 0
      %s171 = sadd.s32 %s170, 1
      %s172 = scalar_select %p169, %s170, %s171
      %p175 = pneg %p169
      %p176 = scmp.eq.s32.totalorder %s24, 1
      %p177 = por %p175, %p176
      %p178 = scmp.ne.s32.totalorder %s170, %s173
      %p179 = scmp.eq.s32.totalorder %s24, 0
      %p180 = por %p178, %p179
      %p181 = scmp.ne.s32.totalorder %s170, %s173
      %p182 = scmp.eq.s32.totalorder %s29, 1
      %p183 = por %p181, %p182
      %p184 = scmp.ne.s32.totalorder %s173, %s174
      %p185 = scmp.eq.s32.totalorder %s29, 0
      %p186 = por %p184, %p185
      %p187 = scmp.ne.s32.totalorder %s173, %s174
      %p188 = scmp.eq.s32.totalorder %s30, 1
      %p189 = por %p187, %p188
      %p191 = scmp.ne.s32.totalorder %s174, %s190
      %p192 = scmp.eq.s32.totalorder %s30, 0
      %p193 = por %p191, %p192
      %p194 = scmp.le.s32.totalorder 1, %s24
      %p195 = scmp.lt.s32.totalorder %s24, 3
      %p196 = pnand %p194, %p195
      %p197 = pneg %p196
      // Predicated region
      $region9: #{resblock_forward.2} parent=5 // pred_check
        _
      $region10: #{resblock_forward.2} parent=5 // pred_check_branch
        %199 = sbr.rel (%p196) target = $region12
      $region11: #{resblock_forward.2} parent=5 // pred_region
        %s200 = ssub.s32 %s24, 1
        // Predicated region
        $region13: #{resblock_forward.2} parent=11 // pred_check
          %p201 = pneg %p71
        $region14: #{resblock_forward.2} parent=11 // pred_check_branch
          %203 = sbr.rel (%p201) target = $region16
        $region15: #{resblock_forward.2} parent=11 // pred_region
          %s205 = ssub.s32 512, 512
          %206 = vsyncadd [#allocation7], %s205
          %s207 = sshll.u32 [#allocation6], 4
          %s208 = int_to_ptr.vmem [resolvable:$true] %s207
          %213 = dma.hbm_to_vmem [thread:$0]  %s1, 512, %s208, [#allocation7], 256, 256, 16
        $region16: #{resblock_forward.2} parent=11 // pred_fallthru
          _
        // Predicated region
        $region17: #{resblock_forward.2} parent=11 // pred_check
          %p214 = pneg %p92
        $region18: #{resblock_forward.2} parent=11 // pred_check_branch
          %216 = sbr.rel (%p214) target = $region20
        $region19: #{resblock_forward.2} parent=11 // pred_region
          %s218 = ssub.s32 1024, 1024
          %219 = vsyncadd [#allocation7], %s218
          %s220 = sshll.u32 [#allocation8], 4
          %s221 = int_to_ptr.vmem [resolvable:$true] %s220
          %226 = dma.hbm_to_vmem [thread:$0]  %s2, 1024, %s221, [#allocation7], 128, 128, 8
        $region20: #{resblock_forward.2} parent=11 // pred_fallthru
          _
        // Predicated region
        $region21: #{resblock_forward.2} parent=11 // pred_check
          %p227 = pneg %p113
        $region22: #{resblock_forward.2} parent=11 // pred_check_branch
          %229 = sbr.rel (%p227) target = $region24
        $region23: #{resblock_forward.2} parent=11 // pred_region
          %s231 = ssub.s32 256, 256
          %232 = vsyncadd [#allocation10], %s231
          %s233 = sshll.u32 [#allocation9], 4
          %s234 = int_to_ptr.vmem [resolvable:$true] %s233
          %239 = dma.hbm_to_vmem [thread:$0]  %s3, 256, %s234, [#allocation10], 128, 128, 8
        $region24: #{resblock_forward.2} parent=11 // pred_fallthru
          _
        // Predicated region
        $region25: #{resblock_forward.2} parent=11 // pred_check
          %p240 = pneg %p134
        $region26: #{resblock_forward.2} parent=11 // pred_check_branch
          %242 = sbr.rel (%p240) target = $region28
        $region27: #{resblock_forward.2} parent=11 // pred_region
          %s244 = ssub.s32 256, 256
          %245 = vsyncadd [#allocation10], %s244
          %s246 = sshll.u32 [#allocation11], 4
          %s247 = int_to_ptr.vmem [resolvable:$true] %s246
          %252 = dma.hbm_to_vmem [thread:$0]  %s4, 256, %s247, [#allocation10], 128, 128, 8
        $region28: #{resblock_forward.2} parent=11 // pred_fallthru
          _
      $region12: #{resblock_forward.2} parent=5 // pred_fallthru
        _
      %p253 = scmp.lt.s32.totalorder %s24, 2
      // Predicated region
      $region29: #{resblock_forward.2} parent=5 // pred_check
        %p254 = pneg %p253
      $region30: #{resblock_forward.2} parent=5 // pred_check_branch
        %256 = sbr.rel (%p254) target = $region32
      $region31: #{resblock_forward.2} parent=5 // pred_region
        // Predicated region
        $region33: #{resblock_forward.2} parent=31 // pred_check
          %p257 = pneg %p44
        $region34: #{resblock_forward.2} parent=31 // pred_check_branch
          %259 = sbr.rel (%p257) target = $region36
        $region35: #{resblock_forward.2} parent=31 // pred_region
          %s260 = sand.u32 %s34, 1
          %s261 = scalar_lea.sflag [#allocation4], %s260
          %s262 = sand.u32 %s34, 1
          %s263 = smul.addr %s262, 32
          %s264 = scalar_lea.vmem [#allocation3], %s263
          %s265 = smul.u32 2, %s24
          %s267 = ssub.s32 512, 512
          %268 = vsyncadd %s261, %s267
          %s269 = smul.addr %s265, 128
          %s270 = scalar_lea.hbm %s0, %s269
          %s271 = sshll.u32 %s264, 4
          %s272 = int_to_ptr.vmem [resolvable:$true] %s271
          %277 = dma.hbm_to_vmem [thread:$0]  %s270, 512, %s272, %s261, 512, 256, 16
        $region36: #{resblock_forward.2} parent=31 // pred_fallthru
          _
      $region32: #{resblock_forward.2} parent=5 // pred_fallthru
        _
      %p278 = scmp.le.s32.totalorder 1, %s24
      %p279 = scmp.lt.s32.totalorder %s24, 3
      %p280 = pnand %p278, %p279
      %p281 = pneg %p280
      // Predicated region
      $region37: #{resblock_forward.2} parent=5 // pred_check
        _
      $region38: #{resblock_forward.2} parent=5 // pred_check_branch
        %283 = sbr.rel (%p280) target = $region40
      $region39: #{resblock_forward.2} parent=5 // pred_region
        %s284 = ssub.s32 %s24, 1
        %s285 = sand.u32 %s37, 1
        %s286 = scalar_lea.sflag [#allocation4], %s285
        %s287 = sand.u32 %s37, 1
        %s288 = smul.addr %s287, 32
        %s289 = scalar_lea.vmem [#allocation3], %s288
        // Predicated region
        $region41: #{resblock_forward.2} parent=39 // pred_check
          %p290 = pneg %p50
        $region42: #{resblock_forward.2} parent=39 // pred_check_branch
          %292 = sbr.rel (%p290) target = $region44
        $region43: #{resblock_forward.2} parent=39 // pred_region
          %293 = dma.done %s286, 512
        $region44: #{resblock_forward.2} parent=39 // pred_fallthru
          _
        // Predicated region
        $region45: #{resblock_forward.2} parent=39 // pred_check
          %p294 = pneg %p71
        $region46: #{resblock_forward.2} parent=39 // pred_check_branch
          %296 = sbr.rel (%p294) target = $region48
        $region47: #{resblock_forward.2} parent=39 // pred_region
          %297 = dma.done [#allocation7], 512
        $region48: #{resblock_forward.2} parent=39 // pred_fallthru
          _
        // Predicated region
        $region49: #{resblock_forward.2} parent=39 // pred_check
          %p298 = pneg %p92
        $region50: #{resblock_forward.2} parent=39 // pred_check_branch
          %300 = sbr.rel (%p298) target = $region52
        $region51: #{resblock_forward.2} parent=39 // pred_region
          %301 = dma.done [#allocation7], 1024
        $region52: #{resblock_forward.2} parent=39 // pred_fallthru
          _
        // Predicated region
        $region53: #{resblock_forward.2} parent=39 // pred_check
          %p302 = pneg %p113
        $region54: #{resblock_forward.2} parent=39 // pred_check_branch
          %304 = sbr.rel (%p302) target = $region56
        $region55: #{resblock_forward.2} parent=39 // pred_region
          %305 = dma.done [#allocation10], 256
        $region56: #{resblock_forward.2} parent=39 // pred_fallthru
          _
        // Predicated region
        $region57: #{resblock_forward.2} parent=39 // pred_check
          %p306 = pneg %p134
        $region58: #{resblock_forward.2} parent=39 // pred_check_branch
          %308 = sbr.rel (%p306) target = $region60
        $region59: #{resblock_forward.2} parent=39 // pred_region
          %309 = dma.done [#allocation10], 256
        $region60: #{resblock_forward.2} parent=39 // pred_fallthru
          _
        %s310 = sand.u32 %s37, 1
        %s311 = scalar_lea.sflag [#allocation4], %s310
        %s312 = sand.u32 %s37, 1
        %s313 = smul.addr %s312, 32
        %s314 = scalar_lea.vmem [#allocation3], %s313
        %p315 = pneg %p50
        %p316 = pneg %p47
        %p317 = pneg %p71
        %p318 = pneg %p68
        %p319 = pneg %p92
        %p320 = pneg %p89
        %p321 = pneg %p113
        %p322 = pneg %p110
        %p323 = pneg %p134
        %p324 = pneg %p131
        %p325 = pneg %p160
        %p326 = pneg %p157
        %s327 = sand.u32 %s147, 1
        %s328 = scalar_lea.sflag [#allocation5], %s327
        %s329 = sand.u32 %s147, 1
        %s330 = smul.addr %s329, 16
        %s331 = scalar_lea.vmem [#allocation12], %s330
        %p332 = pneg %p186
        %p333 = pneg %p183
        %s334 = sand.u32 %s173, 1
        %s335 = scalar_lea.sflag [#allocation14], %s334
        %s336 = sand.u32 %s173, 1
        %s337 = smul.addr %s336, 16
        %s338 = scalar_lea.vmem [#allocation13], %s337
        %s339 = smul.u32 2, %s29
        %v341 = vld [vmem:[#allocation6] sm:$0xff]
        %v342 = vld [vmem:[#allocation6 + $0x8] sm:$0xff]
        %v343 = vld [vmem:[#allocation6 + $0x10] sm:$0xff]
        %v344 = vld [vmem:[#allocation6 + $0x18] sm:$0xff]
        %v345 = vld [vmem:[%s289] sm:$0xff]
        %v346 = vld [vmem:[%s289 + $0x8] sm:$0xff]
        %v347 = vld [vmem:[%s289 + $0x10] sm:$0xff]
        %v348 = vld [vmem:[%s289 + $0x18] sm:$0xff]
        %v349 = vld [vmem:[#allocation9] sm:$0xff]
        %v350 = vld [vmem:[#allocation9 + $0x8] sm:$0xff]
        %v351 = vld [vmem:[#allocation11] sm:$0xff]
        %v352 = vld [vmem:[#allocation11 + $0x8] sm:$0xff]
        %354 = vset.pattern.permute.xlu0 0
        %355 = vperm.xlu0 %354, %v349
        %v356 = vpop.permute.xlu0 %355
        %359 = vset.pattern.permute.xlu0 0
        %360 = vperm.xlu0 %359, %v350
        %v361 = vpop.permute.xlu0 %360
        %v363 = vmul.f32 %v345, %v356
        %v364 = vmul.f32 %v346, %v356
        %v365 = vmul.f32 %v347, %v361
        %v366 = vmul.f32 %v348, %v361
        %368 = vset.pattern.permute.xlu0 0
        %369 = vperm.xlu0 %368, %v351
        %v370 = vpop.permute.xlu0 %369
        %373 = vset.pattern.permute.xlu0 0
        %374 = vperm.xlu0 %373, %v352
        %v375 = vpop.permute.xlu0 %374
        %v377 = vadd.f32 %v363, %v370
        %v378 = vadd.f32 %v364, %v370
        %v379 = vadd.f32 %v365, %v375
        %v380 = vadd.f32 %v366, %v375
        %v381 = vmax.f32 %v377, 0.0
        %v382 = vmax.f32 %v378, 0.0
        %v383 = vmax.f32 %v379, 0.0
        %v384 = vmax.f32 %v380, 0.0
        %385 = vrot.lane.b32.xlu0 %v381, 17
        %v386 = vpop.permute.xlu0 %385
        %387 = vrot.lane.b32.xlu0 %v383, 17
        %v388 = vpop.permute.xlu0 %387
        %389 = vrot.lane.b32.xlu0 %v382, 17
        %v390 = vpop.permute.xlu0 %389
        %391 = vrot.lane.b32.xlu0 %v384, 17
        %v392 = vpop.permute.xlu0 %391
        %v393 = vlaneseq
        %v394 = vand.u32 %v393, 127
        %vm395 = vcmp.lt.s32.totalorder %v394, 17
        %v396 = vsel %vm395, %v386, %v390
        %v397 = vsel %vm395, %v388, %v392
        %v398 = vsel %vm395, %v390, %v386
        %v399 = vsel %vm395, %v392, %v388
        %v400 = vlaneseq
        %v401 = vshrl.u32 %v400, 7
        %v402 = vsub.s32 0, %v401
        %v403 = vrot.slane %v341, %v402
        %v404 = vlaneseq
        %v405 = vshrl.u32 %v404, 7
        %v406 = vsub.s32 0, %v405
        %v407 = vrot.slane %v342, %v406
        %v408 = vmul.f32 %v398, %v403
        %v409 = vmul.f32 %v396, %v407
        %v410 = vmul.f32 %v399, %v403
        %v411 = vmul.f32 %v397, %v407
        %v412 = vpack.c.bf16 %v410, %v408
        %v413 = vpack.c.bf16 %v411, %v409
        %414 = vst [vmem:[#allocation2] sm:$0xff] %v412
        %415 = vst [vmem:[#allocation2 + $0x8] sm:$0xff] %v413
        %416 = vrot.lane.b32.xlu0 %v381, 16
        %v417 = vpop.permute.xlu0 %416
        %418 = vrot.lane.b32.xlu0 %v383, 16
        %v419 = vpop.permute.xlu0 %418
        %420 = vrot.lane.b32.xlu0 %v382, 16
        %v421 = vpop.permute.xlu0 %420
        %422 = vrot.lane.b32.xlu0 %v384, 16
        %v423 = vpop.permute.xlu0 %422
        %vm424 = vcmp.lt.s32.totalorder %v394, 16
        %v425 = vsel %vm424, %v417, %v421
        %v426 = vsel %vm424, %v419, %v423
        %v427 = vsel %vm424, %v421, %v417
        %v428 = vsel %vm424, %v423, %v419
        %v429 = vlaneseq
        %v430 = vshrl.u32 %v429, 7
        %v431 = vsub.s32 1, %v430
        %v432 = vrot.slane %v341, %v431
        %v433 = vlaneseq
        %v434 = vshrl.u32 %v433, 7
        %v435 = vsub.s32 1, %v434
        %v436 = vrot.slane %v342, %v435
        %v437 = vmul.f32 %v427, %v432
        %v438 = vmul.f32 %v425, %v436
        %v439 = vmul.f32 %v428, %v432
        %v440 = vmul.f32 %v426, %v436
        %v441 = vpack.c.bf16 %v439, %v437
        %v442 = vpack.c.bf16 %v440, %v438
        %443 = vst [vmem:[#allocation2 + $0x10] sm:$0xff] %v441
        %444 = vst [vmem:[#allocation2 + $0x18] sm:$0xff] %v442
        %445 = vrot.lane.b32.xlu0 %v381, 15
        %v446 = vpop.permute.xlu0 %445
        %447 = vrot.lane.b32.xlu0 %v383, 15
        %v448 = vpop.permute.xlu0 %447
        %449 = vrot.lane.b32.xlu0 %v382, 15
        %v450 = vpop.permute.xlu0 %449
        %451 = vrot.lane.b32.xlu0 %v384, 15
        %v452 = vpop.permute.xlu0 %451
        %vm453 = vcmp.lt.s32.totalorder %v394, 15
        %v454 = vsel %vm453, %v446, %v450
        %v455 = vsel %vm453, %v448, %v452
        %v456 = vsel %vm453, %v450, %v446
        %v457 = vsel %vm453, %v452, %v448
        %v458 = vlaneseq
        %v459 = vshrl.u32 %v458, 7
        %v460 = vsub.s32 2, %v459
        %v461 = vrot.slane %v341, %v460
        %v462 = vlaneseq
        %v463 = vshrl.u32 %v462, 7
        %v464 = vsub.s32 2, %v463
        %v465 = vrot.slane %v342, %v464
        %v466 = vmul.f32 %v456, %v461
        %v467 = vmul.f32 %v454, %v465
        %v468 = vmul.f32 %v457, %v461
        %v469 = vmul.f32 %v455, %v465
        %v470 = vpack.c.bf16 %v468, %v466
        %v471 = vpack.c.bf16 %v469, %v467
        %472 = vst [vmem:[#allocation2 + $0x20] sm:$0xff] %v470
        %473 = vst [vmem:[#allocation2 + $0x28] sm:$0xff] %v471
        %474 = vrot.lane.b32.xlu0 %v381, 1
        %v475 = vpop.permute.xlu0 %474
        %476 = vrot.lane.b32.xlu0 %v383, 1
        %v477 = vpop.permute.xlu0 %476
        %478 = vrot.lane.b32.xlu0 %v382, 1
        %v479 = vpop.permute.xlu0 %478
        %480 = vrot.lane.b32.xlu0 %v384, 1
        %v481 = vpop.permute.xlu0 %480
        %vm482 = vcmp.lt.s32.totalorder %v394, 1
        %v483 = vsel %vm482, %v475, %v479
        %v484 = vsel %vm482, %v477, %v481
        %v485 = vsel %vm482, %v479, %v475
        %v486 = vsel %vm482, %v481, %v477
        %v487 = vlaneseq
        %v488 = vshrl.u32 %v487, 7
        %v489 = vsub.s32 3, %v488
        %v490 = vrot.slane %v341, %v489
        %v491 = vlaneseq
        %v492 = vshrl.u32 %v491, 7
        %v493 = vsub.s32 3, %v492
        %v494 = vrot.slane %v342, %v493
        %v495 = vmul.f32 %v485, %v490
        %v496 = vmul.f32 %v483, %v494
        %v497 = vmul.f32 %v486, %v490
        %v498 = vmul.f32 %v484, %v494
        %v499 = vpack.c.bf16 %v497, %v495
        %v500 = vpack.c.bf16 %v498, %v496
        %501 = vst [vmem:[#allocation2 + $0x30] sm:$0xff] %v499
        %502 = vst [vmem:[#allocation2 + $0x38] sm:$0xff] %v500
        %v503 = vpack.c.bf16 %v383, %v381
        %v504 = vpack.c.bf16 %v384, %v382
        %505 = vst [vmem:[#allocation2 + $0x40] sm:$0xff] %v503
        %506 = vst [vmem:[#allocation2 + $0x48] sm:$0xff] %v504
        %507 = vrot.lane.b32.xlu0 %v381, 127
        %v508 = vpop.permute.xlu0 %507
        %509 = vrot.lane.b32.xlu0 %v383, 127
        %v510 = vpop.permute.xlu0 %509
        %511 = vrot.lane.b32.xlu0 %v382, 127
        %v512 = vpop.permute.xlu0 %511
        %513 = vrot.lane.b32.xlu0 %v384, 127
        %v514 = vpop.permute.xlu0 %513
        %vm515 = vcmp.lt.s32.totalorder %v394, 127
        %v516 = vsel %vm515, %v508, %v512
        %v517 = vsel %vm515, %v510, %v514
        %v518 = vsel %vm515, %v512, %v508
        %v519 = vsel %vm515, %v514, %v510
        %v520 = vlaneseq
        %v521 = vshrl.u32 %v520, 7
        %v522 = vsub.s32 5, %v521
        %v523 = vrot.slane %v341, %v522
        %v524 = vlaneseq
        %v525 = vshrl.u32 %v524, 7
        %v526 = vsub.s32 5, %v525
        %v527 = vrot.slane %v342, %v526
        %v528 = vmul.f32 %v516, %v523
        %v529 = vmul.f32 %v518, %v527
        %v530 = vmul.f32 %v517, %v523
        %v531 = vmul.f32 %v519, %v527
        %v532 = vpack.c.bf16 %v530, %v528
        %v533 = vpack.c.bf16 %v531, %v529
        %534 = vst [vmem:[#allocation2 + $0x50] sm:$0xff] %v532
        %535 = vst [vmem:[#allocation2 + $0x58] sm:$0xff] %v533
        %536 = vrot.lane.b32.xlu0 %v381, 113
        %v537 = vpop.permute.xlu0 %536
        %538 = vrot.lane.b32.xlu0 %v383, 113
        %v539 = vpop.permute.xlu0 %538
        %540 = vrot.lane.b32.xlu0 %v382, 113
        %v541 = vpop.permute.xlu0 %540
        %542 = vrot.lane.b32.xlu0 %v384, 113
        %v543 = vpop.permute.xlu0 %542
        %vm544 = vcmp.lt.s32.totalorder %v394, 113
        %v545 = vsel %vm544, %v537, %v541
        %v546 = vsel %vm544, %v539, %v543
        %v547 = vsel %vm544, %v541, %v537
        %v548 = vsel %vm544, %v543, %v539
        %v549 = vlaneseq
        %v550 = vshrl.u32 %v549, 7
        %v551 = vsub.s32 6, %v550
        %v552 = vrot.slane %v341, %v551
        %v553 = vlaneseq
        %v554 = vshrl.u32 %v553, 7
        %v555 = vsub.s32 6, %v554
        %v556 = vrot.slane %v342, %v555
        %v557 = vmul.f32 %v545, %v552
        %v558 = vmul.f32 %v547, %v556
        %v559 = vmul.f32 %v546, %v552
        %v560 = vmul.f32 %v548, %v556
        %v561 = vpack.c.bf16 %v559, %v557
        %v562 = vpack.c.bf16 %v560, %v558
        %563 = vst [vmem:[#allocation2 + $0x60] sm:$0xff] %v561
        %564 = vst [vmem:[#allocation2 + $0x68] sm:$0xff] %v562
        %565 = vrot.lane.b32.xlu0 %v381, 112
        %v566 = vpop.permute.xlu0 %565
        %567 = vrot.lane.b32.xlu0 %v383, 112
        %v568 = vpop.permute.xlu0 %567
        %569 = vrot.lane.b32.xlu0 %v382, 112
        %v570 = vpop.permute.xlu0 %569
        %571 = vrot.lane.b32.xlu0 %v384, 112
        %v572 = vpop.permute.xlu0 %571
        %vm573 = vcmp.lt.s32.totalorder %v394, 112
        %v574 = vsel %vm573, %v566, %v570
        %v575 = vsel %vm573, %v568, %v572
        %v576 = vsel %vm573, %v570, %v566
        %v577 = vsel %vm573, %v572, %v568
        %v578 = vlaneseq
        %v579 = vshrl.u32 %v578, 7
        %v580 = vsub.s32 7, %v579
        %v581 = vrot.slane %v341, %v580
        %v582 = vlaneseq
        %v583 = vshrl.u32 %v582, 7
        %v584 = vsub.s32 7, %v583
        %v585 = vrot.slane %v342, %v584
        %v586 = vmul.f32 %v574, %v581
        %v587 = vmul.f32 %v576, %v585
        %v588 = vmul.f32 %v575, %v581
        %v589 = vmul.f32 %v577, %v585
        %v590 = vpack.c.bf16 %v588, %v586
        %v591 = vpack.c.bf16 %v589, %v587
        %592 = vst [vmem:[#allocation2 + $0x70] sm:$0xff] %v590
        %593 = vst [vmem:[#allocation2 + $0x78] sm:$0xff] %v591
        %594 = vrot.lane.b32.xlu0 %v381, 111
        %v595 = vpop.permute.xlu0 %594
        %596 = vrot.lane.b32.xlu0 %v383, 111
        %v597 = vpop.permute.xlu0 %596
        %598 = vrot.lane.b32.xlu0 %v382, 111
        %v599 = vpop.permute.xlu0 %598
        %600 = vrot.lane.b32.xlu0 %v384, 111
        %v601 = vpop.permute.xlu0 %600
        %vm602 = vcmp.lt.s32.totalorder %v394, 111
        %v603 = vsel %vm602, %v595, %v599
        %v604 = vsel %vm602, %v597, %v601
        %v605 = vsel %vm602, %v599, %v595
        %v606 = vsel %vm602, %v601, %v597
        %v607 = vlaneseq
        %v608 = vshrl.u32 %v607, 7
        %v609 = vsub.s32 0, %v608
        %v610 = vrot.slane %v343, %v609
        %v611 = vlaneseq
        %v612 = vshrl.u32 %v611, 7
        %v613 = vsub.s32 0, %v612
        %v614 = vrot.slane %v344, %v613
        %v615 = vmul.f32 %v603, %v610
        %v616 = vmul.f32 %v605, %v614
        %v617 = vmul.f32 %v604, %v610
        %v618 = vmul.f32 %v606, %v614
        %v619 = vpack.c.bf16 %v617, %v615
        %v620 = vpack.c.bf16 %v618, %v616
        %621 = vst [vmem:[#allocation2 + $0x80] sm:$0xff] %v619
        %622 = vst [vmem:[#allocation2 + $0x88] sm:$0xff] %v620
        %v623 = vld [vmem:[#allocation8] sm:$0xff]
        %v624 = vld [vmem:[#allocation8 + $0x8] sm:$0xff]
        %v625 = vld [vmem:[#allocation8 + $0x10] sm:$0xff]
        %v626 = vld [vmem:[#allocation8 + $0x18] sm:$0xff]
        %v627 = vld [vmem:[#allocation8 + $0x20] sm:$0xff]
        %v628 = vld [vmem:[#allocation8 + $0x28] sm:$0xff]
        %v629 = vld [vmem:[#allocation8 + $0x30] sm:$0xff]
        %v630 = vld [vmem:[#allocation8 + $0x38] sm:$0xff]
        %v631 = vld [vmem:[#allocation2] sm:$0xff]
        %v632 = vld [vmem:[#allocation2 + $0x8] sm:$0xff]
        %v633 = vld [vmem:[#allocation2 + $0x10] sm:$0xff]
        %v634 = vld [vmem:[#allocation2 + $0x18] sm:$0xff]
        %v635 = vld [vmem:[#allocation2 + $0x20] sm:$0xff]
        %v636 = vld [vmem:[#allocation2 + $0x28] sm:$0xff]
        %v637 = vld [vmem:[#allocation2 + $0x30] sm:$0xff]
        %v638 = vld [vmem:[#allocation2 + $0x38] sm:$0xff]
        %v639 = vld [vmem:[#allocation2 + $0x40] sm:$0xff]
        %v640 = vld [vmem:[#allocation2 + $0x48] sm:$0xff]
        %v641 = vld [vmem:[#allocation2 + $0x50] sm:$0xff]
        %v642 = vld [vmem:[#allocation2 + $0x58] sm:$0xff]
        %v643 = vld [vmem:[#allocation2 + $0x60] sm:$0xff]
        %v644 = vld [vmem:[#allocation2 + $0x68] sm:$0xff]
        %v645 = vld [vmem:[#allocation2 + $0x70] sm:$0xff]
        %v646 = vld [vmem:[#allocation2 + $0x78] sm:$0xff]
        %v647 = vld [vmem:[#allocation2 + $0x80] sm:$0xff]
        %v648 = vld [vmem:[#allocation2 + $0x88] sm:$0xff]
        %v657 = vunpack.c.l.b16 %v623
        %v658 = vunpack.c.h.b16 %v623
        %v659 = vunpack.c.l.b16 %v624
        %v660 = vunpack.c.h.b16 %v624
        %v661 = vunpack.c.l.b16 %v625
        %v662 = vunpack.c.h.b16 %v625
        %v663 = vunpack.c.l.b16 %v626
        %v664 = vunpack.c.h.b16 %v626
        %v665 = vunpack.c.l.b16 %v627
        %v666 = vunpack.c.h.b16 %v627
        %v667 = vunpack.c.l.b16 %v628
        %v668 = vunpack.c.h.b16 %v628
        %v669 = vunpack.c.l.b16 %v629
        %v670 = vunpack.c.h.b16 %v629
        %v671 = vunpack.c.l.b16 %v630
        %v672 = vunpack.c.h.b16 %v630
        %v673 = vpack.c.b16 %v659, %v657
        %v674 = vpack.c.b16 %v660, %v658
        %v675 = vpack.c.b16 %v663, %v661
        %v676 = vpack.c.b16 %v664, %v662
        %v677 = vpack.c.b16 %v667, %v665
        %v678 = vpack.c.b16 %v668, %v666
        %v679 = vpack.c.b16 %v671, %v669
        %v680 = vpack.c.b16 %v672, %v670
        %vm685 = vcmask 130048
        %v687 = vsel %vm685, %v674, 0
        %v690 = vsel %vm685, %v676, 0
        %v693 = vsel %vm685, %v678, 0
        %v696 = vsel %vm685, %v680, 0
        %698 = vmatprep.subr.bf16.mxu0 %v632
        %699 = vmatpush1.bf16.msra.mxu0 %v631
        %700 = vmatprep.subr.bf16.mxu0 %v634
        %701 = vmatpush1.bf16.msra.mxu0 %v633
        %702 = vmatprep.subr.bf16.mxu0 %v636
        %703 = vmatpush1.bf16.msra.mxu0 %v635
        %704 = vmatprep.subr.bf16.mxu0 %v638
        %705 = vmatpush1.bf16.msra.mxu0 %v637
        %706 = vmatprep.subr.bf16.mxu0 %v640
        %707 = vmatpush1.bf16.msra.mxu0 %v639
        %708 = vmatprep.subr.bf16.mxu0 %v642
        %709 = vmatpush1.bf16.msra.mxu0 %v641
        %710 = vmatprep.subr.bf16.mxu0 %v644
        %711 = vmatpush1.bf16.msra.mxu0 %v643
        %712 = vmatprep.subr.bf16.mxu0 %v646
        %713 = vmatpush1.bf16.msra.mxu0 %v645
        %714 = vmatprep.subr.bf16.mxu0 %v648
        %715 = vmatpush1.bf16.msra.mxu0 %v647
        %716 = vmatprep.subr.bf16.mxu0 0
        %717 = vmatpush1.bf16.msra.mxu0 0
        %718 = vmatprep.subr.bf16.mxu0 0
        %719 = vmatpush1.bf16.msra.mxu0 0
        %720 = vmatprep.subr.bf16.mxu0 0
        %721 = vmatpush1.bf16.msra.mxu0 0
        %722 = vmatprep.subr.bf16.mxu0 0
        %723 = vmatpush1.bf16.msra.mxu0 0
        %724 = vmatprep.subr.bf16.mxu0 0
        %725 = vmatpush1.bf16.msra.mxu0 0
        %726 = vmatprep.subr.bf16.mxu0 0
        %727 = vmatpush1.bf16.msra.mxu0 0
        %728 = vmatprep.subr.bf16.mxu0 0
        %729 = vmatpush1.bf16.msra.mxu0 0
        %730 = vmatprep.mubr.bf16.mxu0 %v687
        %731 = vmatmul.mubr.bf16.gmra.mrb[0].mxu0 %v673
        %v732 = vpop.f32.mrb[0].mxu0
        %v733 = vadd.f32 0.0, %v732
        %v734 = vpop.f32.mrb[0].mxu0
        %v735 = vadd.f32 0.0, %v734
        %v736 = vpop.f32.mrb[0].mxu0
        %v737 = vadd.f32 0.0, %v736
        %v738 = vpop.f32.mrb[0].mxu0
        %v739 = vadd.f32 0.0, %v738
        %740 = vmatprep.mubr.bf16.mxu0 %v690
        %741 = vmatmul.mubr.bf16.gmra.mrb[0].mxu0 %v675
        %v742 = vpop.f32.mrb[0].mxu0
        %v743 = vadd.f32 0.0, %v742
        %v744 = vpop.f32.mrb[0].mxu0
        %v745 = vadd.f32 0.0, %v744
        %v746 = vpop.f32.mrb[0].mxu0
        %v747 = vadd.f32 0.0, %v746
        %v748 = vpop.f32.mrb[0].mxu0
        %v749 = vadd.f32 0.0, %v748
        %750 = vmatprep.mubr.bf16.mxu0 %v693
        %751 = vmatmul.mubr.bf16.gmra.mrb[0].mxu0 %v677
        %v752 = vpop.f32.mrb[0].mxu0
        %v753 = vadd.f32 0.0, %v752
        %v754 = vpop.f32.mrb[0].mxu0
        %v755 = vadd.f32 0.0, %v754
        %v756 = vpop.f32.mrb[0].mxu0
        %v757 = vadd.f32 0.0, %v756
        %v758 = vpop.f32.mrb[0].mxu0
        %v759 = vadd.f32 0.0, %v758
        %760 = vmatprep.mubr.bf16.mxu0 %v696
        %761 = vmatmul.mubr.bf16.gmra.mrb[0].mxu0 %v679
        %v762 = vpop.f32.mrb[0].mxu0
        %v763 = vadd.f32 0.0, %v762
        %v764 = vpop.f32.mrb[0].mxu0
        %v765 = vadd.f32 0.0, %v764
        %v766 = vpop.f32.mrb[0].mxu0
        %v767 = vadd.f32 0.0, %v766
        %v768 = vpop.f32.mrb[0].mxu0
        %v769 = vadd.f32 0.0, %v768
        %770 = vdwg.mxu0
        %v771 = vadd.f32 %v733, %v735
        %772 = vadd.xlane.f32.xlu0 %v771
        %v773 = vpop.xlane.xlu0 %772
        %v774 = vadd.f32 %v737, %v739
        %775 = vadd.xlane.f32.xlu0 %v774
        %v776 = vpop.xlane.xlu0 %775
        %v777 = vadd.f32 %v773, 0.0
        %v778 = vadd.f32 %v776, 0.0
        %v779 = vadd.f32 %v743, %v745
        %780 = vadd.xlane.f32.xlu0 %v779
        %v781 = vpop.xlane.xlu0 %780
        %v782 = vadd.f32 %v747, %v749
        %783 = vadd.xlane.f32.xlu0 %v782
        %v784 = vpop.xlane.xlu0 %783
        %v785 = vadd.f32 %v777, %v781
        %v786 = vadd.f32 %v778, %v784
        %v787 = vadd.f32 %v753, %v755
        %788 = vadd.xlane.f32.xlu0 %v787
        %v789 = vpop.xlane.xlu0 %788
        %v790 = vadd.f32 %v757, %v759
        %791 = vadd.xlane.f32.xlu0 %v790
        %v792 = vpop.xlane.xlu0 %791
        %v793 = vadd.f32 %v785, %v789
        %v794 = vadd.f32 %v786, %v792
        %v795 = vadd.f32 %v763, %v765
        %796 = vadd.xlane.f32.xlu0 %v795
        %v797 = vpop.xlane.xlu0 %796
        %v798 = vadd.f32 %v767, %v769
        %799 = vadd.xlane.f32.xlu0 %v798
        %v800 = vpop.xlane.xlu0 %799
        %v801 = vadd.f32 %v793, %v797
        %v802 = vadd.f32 %v794, %v800
        %v803 = vmul.f32 %v801, 0.0009765625
        %v804 = vmul.f32 %v802, 0.0009765625
        %v805 = vsub.f32 %v733, %v803
        %v806 = vsub.f32 %v735, %v803
        %v807 = vsub.f32 %v737, %v804
        %v808 = vsub.f32 %v739, %v804
        %v809 = vmul.f32 %v805, %v805
        %v810 = vmul.f32 %v806, %v806
        %v811 = vmul.f32 %v807, %v807
        %v812 = vmul.f32 %v808, %v808
        %v813 = vadd.f32 %v809, %v810
        %814 = vadd.xlane.f32.xlu0 %v813
        %v815 = vpop.xlane.xlu0 %814
        %v816 = vadd.f32 %v811, %v812
        %817 = vadd.xlane.f32.xlu0 %v816
        %v818 = vpop.xlane.xlu0 %817
        %v819 = vadd.f32 %v815, 0.0
        %v820 = vadd.f32 %v818, 0.0
        %v821 = vsub.f32 %v743, %v803
        %v822 = vsub.f32 %v745, %v803
        %v823 = vsub.f32 %v747, %v804
        %v824 = vsub.f32 %v749, %v804
        %v825 = vmul.f32 %v821, %v821
        %v826 = vmul.f32 %v822, %v822
        %v827 = vmul.f32 %v823, %v823
        %v828 = vmul.f32 %v824, %v824
        %v829 = vadd.f32 %v825, %v826
        %830 = vadd.xlane.f32.xlu0 %v829
        %v831 = vpop.xlane.xlu0 %830
        %v832 = vadd.f32 %v827, %v828
        %833 = vadd.xlane.f32.xlu0 %v832
        %v834 = vpop.xlane.xlu0 %833
        %v835 = vadd.f32 %v819, %v831
        %v836 = vadd.f32 %v820, %v834
        %v837 = vsub.f32 %v753, %v803
        %v838 = vsub.f32 %v755, %v803
        %v839 = vsub.f32 %v757, %v804
        %v840 = vsub.f32 %v759, %v804
        %v841 = vmul.f32 %v837, %v837
        %v842 = vmul.f32 %v838, %v838
        %v843 = vmul.f32 %v839, %v839
        %v844 = vmul.f32 %v840, %v840
        %v845 = vadd.f32 %v841, %v842
        %846 = vadd.xlane.f32.xlu0 %v845
        %v847 = vpop.xlane.xlu0 %846
        %v848 = vadd.f32 %v843, %v844
        %849 = vadd.xlane.f32.xlu0 %v848
        %v850 = vpop.xlane.xlu0 %849
        %v851 = vadd.f32 %v835, %v847
        %v852 = vadd.f32 %v836, %v850
        %v853 = vsub.f32 %v763, %v803
        %v854 = vsub.f32 %v765, %v803
        %v855 = vsub.f32 %v767, %v804
        %v856 = vsub.f32 %v769, %v804
        %v857 = vmul.f32 %v853, %v853
        %v858 = vmul.f32 %v854, %v854
        %v859 = vmul.f32 %v855, %v855
        %v860 = vmul.f32 %v856, %v856
        %v861 = vadd.f32 %v857, %v858
        %862 = vadd.xlane.f32.xlu0 %v861
        %v863 = vpop.xlane.xlu0 %862
        %v864 = vadd.f32 %v859, %v860
        %865 = vadd.xlane.f32.xlu0 %v864
        %v866 = vpop.xlane.xlu0 %865
        %v867 = vadd.f32 %v851, %v863
        %v868 = vadd.f32 %v852, %v866
        %vm869 = vcmask 7168
        %870 = vst.msk [vmem:[%s331] sm:$0xff] %vm869, %v803
        %871 = vst.msk [vmem:[%s331 + $0x8] sm:$0xff] %vm869, %v804
        %v872 = vmul.f32 %v867, 0.0009765625
        %v873 = vmul.f32 %v868, 0.0009765625
        %874 = vst.msk [vmem:[%s338] sm:$0xff] %vm869, %v872
        %875 = vst.msk [vmem:[%s338 + $0x8] sm:$0xff] %vm869, %v873
        %s876 = sand.u32 %s147, 1
        %s877 = scalar_lea.sflag [#allocation5], %s876
        %s878 = sand.u32 %s147, 1
        %s879 = smul.addr %s878, 16
        %s880 = scalar_lea.vmem [#allocation12], %s879
        %s881 = sand.u32 %s173, 1
        %s882 = scalar_lea.sflag [#allocation14], %s881
        %s883 = sand.u32 %s173, 1
        %s884 = smul.addr %s883, 16
        %s885 = scalar_lea.vmem [#allocation13], %s884
        // Predicated region
        $region61: #{resblock_forward.2} parent=39 // pred_check
          %p886 = pneg %p157
        $region62: #{resblock_forward.2} parent=39 // pred_check_branch
          %888 = sbr.rel (%p886) target = $region64
        $region63: #{resblock_forward.2} parent=39 // pred_region
          %s890 = ssub.s32 256, 256
          %891 = vsyncadd %s877, %s890
          %s892 = smul.addr %s29, 2
          %s893 = smul.addr %s892, 128
          %s894 = scalar_lea.hbm %s5, %s893
          %s895 = sshll.u32 %s880, 4
          %s896 = int_to_ptr.vmem [resolvable:$true] %s895
          %901 = dma.vmem_to_hbm [thread:$0]  %s896, 256, %s894, %s877, 128, 128, 8
        $region64: #{resblock_forward.2} parent=39 // pred_fallthru
          _
        // Predicated region
        $region65: #{resblock_forward.2} parent=39 // pred_check
          %p902 = pneg %p183
        $region66: #{resblock_forward.2} parent=39 // pred_check_branch
          %904 = sbr.rel (%p902) target = $region68
        $region67: #{resblock_forward.2} parent=39 // pred_region
          %s906 = ssub.s32 256, 256
          %907 = vsyncadd %s882, %s906
          %s908 = smul.addr %s29, 2
          %s909 = smul.addr %s908, 128
          %s910 = scalar_lea.hbm %s6, %s909
          %s911 = sshll.u32 %s885, 4
          %s912 = int_to_ptr.vmem [resolvable:$true] %s911
          %917 = dma.vmem_to_hbm [thread:$0]  %s912, 256, %s910, %s882, 128, 128, 8
        $region68: #{resblock_forward.2} parent=39 // pred_fallthru
          _
      $region40: #{resblock_forward.2} parent=5 // pred_fallthru
        _
      %p918 = scmp.le.s32.totalorder 2, %s24
      // Predicated region
      $region69: #{resblock_forward.2} parent=5 // pred_check
        %p919 = pneg %p918
      $region70: #{resblock_forward.2} parent=5 // pred_check_branch
        %921 = sbr.rel (%p919) target = $region72
      $region71: #{resblock_forward.2} parent=5 // pred_region
        %s922 = ssub.s32 %s24, 2
        // Predicated region
        $region73: #{resblock_forward.2} parent=71 // pred_check
          %p923 = pneg %p163
        $region74: #{resblock_forward.2} parent=71 // pred_check_branch
          %925 = sbr.rel (%p923) target = $region76
        $region75: #{resblock_forward.2} parent=71 // pred_region
          %s926 = sand.u32 %s148, 1
          %s927 = scalar_lea.sflag [#allocation5], %s926
          %s928 = sand.u32 %s148, 1
          %s929 = smul.addr %s928, 16
          %s930 = scalar_lea.vmem [#allocation12], %s929
          %931 = dma.done %s927, 256
        $region76: #{resblock_forward.2} parent=71 // pred_fallthru
          _
        // Predicated region
        $region77: #{resblock_forward.2} parent=71 // pred_check
          %p932 = pneg %p189
        $region78: #{resblock_forward.2} parent=71 // pred_check_branch
          %934 = sbr.rel (%p932) target = $region80
        $region79: #{resblock_forward.2} parent=71 // pred_region
          %s935 = sand.u32 %s174, 1
          %s936 = scalar_lea.sflag [#allocation14], %s935
          %s937 = sand.u32 %s174, 1
          %s938 = smul.addr %s937, 16
          %s939 = scalar_lea.vmem [#allocation13], %s938
          %940 = dma.done %s936, 256
        $region80: #{resblock_forward.2} parent=71 // pred_fallthru
          _
      $region72: #{resblock_forward.2} parent=5 // pred_fallthru
        _
    $region6: #{resblock_forward.2} parent=1 // loop_footer
      %s28 = sadd.s32 1, %s24
    $region7: #{resblock_forward.2} parent=1 // loop_footer_branch
      %23 = sbr.rel target = $region3
    $region8: #{resblock_forward.2} parent=1 // loop_exit
      _
    %941 = vsyncpa [#allocation4], 1
    %s942 = scalar_lea.sflag [#allocation4], 1
    %943 = vsyncpa %s942, 1
    %944 = vsyncpa [#allocation7], 1
    %945 = vsyncpa [#allocation10], 1
    %946 = vsyncpa [#allocation5], 1
    %s947 = scalar_lea.sflag [#allocation5], 1
    %948 = vsyncpa %s947, 1
    %949 = vsyncpa [#allocation14], 1
    %s950 = scalar_lea.sflag [#allocation14], 1
    %951 = vsyncpa %s950, 1

// kernel: resblock_forward.3
$region0: #{resblock_forward.3}
  #allocation0 [shape = 'u32[]', space=smem, size = 0x4, offset = 0x4, fixed_abs, tag = 'smem constant byte address 0x4 - core index']
  #allocation1 [shape = 'u32[144,128]{1,0:T(1,128)}', space=vmem, size = 0x12000, scoped, tag = 'internal scratch']
  #allocation2 [shape = 'bf16[144,256]{1,0:T(16,128)(2,1)}', space=vmem, size = 0x12000, scoped, tag = 'scratch operand']
  #allocation3 [shape = 'f32[64,256]{1,0:T(8,128)}', space=vmem, size = 0x10000, scoped, tag = 'scratch operand']
  #allocation4 [shape = 'bf16[64,256]{1,0:T(16,128)(2,1)}', space=vmem, size = 0x8000, scoped, tag = 'scratch operand']
  #allocation5 [shape = 'f32[64,256]{1,0:T(8,128)}', space=vmem, size = 0x10000, scoped, tag = 'scratch operand']
  %s0 = inlined_call_operand.hbm [shape: f32[16,512], index: 0, kind: input, shape index: {}]
  %s1 = inlined_call_operand.hbm [shape: f32[16,256], index: 1, kind: input, shape index: {}]
  %s2 = inlined_call_operand.hbm [shape: bf16[64,144], index: 2, kind: input, shape index: {}]
  %s3 = inlined_call_operand.hbm [shape: bf16[4,64,64], index: 3, kind: input, shape index: {}]
  %s4 = inlined_call_operand.hbm [shape: bf16[16,16], index: 4, kind: input, shape index: {}]
  %s5 = inlined_call_operand.hbm [shape: f32[16,1], index: 5, kind: input, shape index: {}]
  %s6 = inlined_call_operand.hbm [shape: f32[16,1], index: 6, kind: input, shape index: {}]
  %s7 = inlined_call_operand.hbm [shape: f32[16,1], index: 7, kind: input, shape index: {}]
  %s8 = inlined_call_operand.hbm [shape: f32[16,1], index: 8, kind: input, shape index: {}]
  %s9 = inlined_call_operand.hbm [shape: f32[16,1], index: 9, kind: input, shape index: {}]
  %s10 = inlined_call_operand.hbm [shape: f32[64,512], index: 10, kind: output, shape index: {}]
  %s11 = sld [smem:[#allocation0]]
  $region113: #{resblock_forward.3} parent=0
    _
  %s13 = ssub.s32 1, %s11
  %s14 = scalar_select 0, %s13, %s11
  $region1: #{resblock_forward.3} parent=0
    #allocation6 [shape = 'u8[32768]{0}', space=vmem, size = 0x8000, scoped, tag = 'input window, operand 0']
    #allocation7 [shape = 's32[2]{0}', space=sflag, size = 0x8, scoped, tag = 'scoped memory for resblock_forward.3']
    #allocation8 [shape = 's32[2]{0}', space=sflag, size = 0x8, scoped, tag = 'scoped memory for resblock_forward.3']
    #allocation9 [shape = 'u8[16384]{0}', space=vmem, size = 0x4000, scoped, tag = 'input window, operand 1, single buffered']
    #allocation10 [shape = 's32[1]{0}', space=sflag, size = 0x4, scoped, tag = 'scoped memory for resblock_forward.3']
    #allocation11 [shape = 'u8[32768]{0}', space=vmem, size = 0x8000, scoped, tag = 'input window, operand 2, single buffered']
    #allocation12 [shape = 'u8[65536]{0}', space=vmem, size = 0x10000, scoped, tag = 'input window, operand 3, single buffered']
    #allocation13 [shape = 's32[1]{0}', space=sflag, size = 0x4, scoped, tag = 'scoped memory for resblock_forward.3']
    #allocation14 [shape = 'u8[4096]{0}', space=vmem, size = 0x1000, scoped, tag = 'input window, operand 4, single buffered']
    #allocation15 [shape = 'u8[8192]{0}', space=vmem, size = 0x2000, scoped, tag = 'input window, operand 5, single buffered']
    #allocation16 [shape = 's32[1]{0}', space=sflag, size = 0x4, scoped, tag = 'scoped memory for resblock_forward.3']
    #allocation17 [shape = 'u8[8192]{0}', space=vmem, size = 0x2000, scoped, tag = 'input window, operand 6, single buffered']
    #allocation18 [shape = 'u8[8192]{0}', space=vmem, size = 0x2000, scoped, tag = 'input window, operand 7, single buffered']
    #allocation19 [shape = 's32[1]{0}', space=sflag, size = 0x4, scoped, tag = 'scoped memory for resblock_forward.3']
    #allocation20 [shape = 'u8[8192]{0}', space=vmem, size = 0x2000, scoped, tag = 'input window, operand 8, single buffered']
    #allocation21 [shape = 'u8[8192]{0}', space=vmem, size = 0x2000, scoped, tag = 'input window, operand 9, single buffered']
    #allocation22 [shape = 's32[1]{0}', space=sflag, size = 0x4, scoped, tag = 'scoped memory for resblock_forward.3']
    #allocation23 [shape = 'u8[131072]{0}', space=vmem, size = 0x20000, scoped, tag = 'output window, operand 0']
    %15 = vsyncpa [#allocation7], 0
    %s16 = scalar_lea.sflag [#allocation7], 1
    %17 = vsyncpa %s16, 0
    %18 = vsyncpa [#allocation10], 0
    %19 = vsyncpa [#allocation13], 0
    %20 = vsyncpa [#allocation16], 0
    %21 = vsyncpa [#allocation19], 0
    %22 = vsyncpa [#allocation22], 0
    %23 = vsyncpa [#allocation8], 0
    %s24 = scalar_lea.sflag [#allocation8], 1
    %25 = vsyncpa %s24, 0
    loop: start=0, step=1, limit=4
    $region2: #{resblock_forward.3} parent=1 // loop_pre_header
      _
    $region3: #{resblock_forward.3} parent=1 // loop_header
      %s27 = sphi 0, %s31
      %p28 = scmp.ge.s32.totalorder %s27, 4
      %s37 = sphi 0, %s39
      %s40 = sphi 0, %s37
      %s41 = sphi 0, %s40
      %s57 = sphi 0, %s41
      %s61 = sphi 0, %s61
      %s63 = sphi 0, %s61
      %s64 = sphi 0, %s63
      %s78 = sphi 0, %s64
      %s82 = sphi 0, %s82
      %s84 = sphi 0, %s82
      %s85 = sphi 0, %s84
      %s99 = sphi 0, %s85
      %s103 = sphi 0, %s103
      %s105 = sphi 0, %s103
      %s106 = sphi 0, %s105
      %s120 = sphi 0, %s106
      %s124 = sphi 0, %s124
      %s126 = sphi 0, %s124
      %s127 = sphi 0, %s126
      %s141 = sphi 0, %s127
      %s145 = sphi 0, %s145
      %s147 = sphi 0, %s145
      %s148 = sphi 0, %s147
      %s162 = sphi 0, %s148
      %s166 = sphi 0, %s166
      %s168 = sphi 0, %s166
      %s169 = sphi 0, %s168
      %s183 = sphi 0, %s169
      %s187 = sphi 0, %s187
      %s189 = sphi 0, %s187
      %s190 = sphi 0, %s189
      %s204 = sphi 0, %s190
      %s208 = sphi 0, %s208
      %s210 = sphi 0, %s208
      %s211 = sphi 0, %s210
      %s225 = sphi 0, %s211
      %s229 = sphi 0, %s229
      %s231 = sphi 0, %s229
      %s232 = sphi 0, %s231
      %s246 = sphi 0, %s232
      %s252 = sphi 0, %s254
      %s255 = sphi 0, %s252
      %s256 = sphi 0, %s255
      %s272 = sphi 0, %s256
    $region4: #{resblock_forward.3} parent=1 // loop_header_branch
      %30 = sbr.rel (%p28) target = $region8
    $region5: #{resblock_forward.3} parent=1 // loop_body
      %s32 = ssub.s32 %s27, 1
      %s33 = ssub.s32 %s27, 2
      %s34 = sadd.s32 %s27, 1
      %s35 = ssub.s32 %s27, %s34
      %p36 = scmp.eq.s32.totalorder %s35, 0
      %s38 = sadd.s32 %s37, 1
      %s39 = scalar_select %p36, %s37, %s38
      %p42 = pneg %p36
      %p43 = scmp.eq.s32.totalorder %s27, 1
      %p44 = por %p42, %p43
      %p45 = scmp.ne.s32.totalorder %s37, %s40
      %p46 = scmp.eq.s32.totalorder %s27, 0
      %p47 = por %p45, %p46
      %p48 = scmp.ne.s32.totalorder %s37, %s40
      %p49 = scmp.eq.s32.totalorder %s32, 1
      %p50 = por %p48, %p49
      %p51 = scmp.ne.s32.totalorder %s40, %s41
      %p52 = scmp.eq.s32.totalorder %s32, 0
      %p53 = por %p51, %p52
      %p54 = scmp.ne.s32.totalorder %s40, %s41
      %p55 = scmp.eq.s32.totalorder %s33, 1
      %p56 = por %p54, %p55
      %p58 = scmp.ne.s32.totalorder %s41, %s57
      %p59 = scmp.eq.s32.totalorder %s33, 0
      %p60 = por %p58, %p59
      %s62 = sadd.s32 %s61, 1
      %p65 = scmp.eq.s32.totalorder %s27, 1
      %p66 = scmp.ne.s32.totalorder %s61, %s63
      %p67 = scmp.eq.s32.totalorder %s27, 0
      %p68 = por %p66, %p67
      %p69 = scmp.ne.s32.totalorder %s61, %s63
      %p70 = scmp.eq.s32.totalorder %s32, 1
      %p71 = por %p69, %p70
      %p72 = scmp.ne.s32.totalorder %s63, %s64
      %p73 = scmp.eq.s32.totalorder %s32, 0
      %p74 = por %p72, %p73
      %p75 = scmp.ne.s32.totalorder %s63, %s64
      %p76 = scmp.eq.s32.totalorder %s33, 1
      %p77 = por %p75, %p76
      %p79 = scmp.ne.s32.totalorder %s64, %s78
      %p80 = scmp.eq.s32.totalorder %s33, 0
      %p81 = por %p79, %p80
      %s83 = sadd.s32 %s82, 1
      %p86 = scmp.eq.s32.totalorder %s27, 1
      %p87 = scmp.ne.s32.totalorder %s82, %s84
      %p88 = scmp.eq.s32.totalorder %s27, 0
      %p89 = por %p87, %p88
      %p90 = scmp.ne.s32.totalorder %s82, %s84
      %p91 = scmp.eq.s32.totalorder %s32, 1
      %p92 = por %p90, %p91
      %p93 = scmp.ne.s32.totalorder %s84, %s85
      %p94 = scmp.eq.s32.totalorder %s32, 0
      %p95 = por %p93, %p94
      %p96 = scmp.ne.s32.totalorder %s84, %s85
      %p97 = scmp.eq.s32.totalorder %s33, 1
      %p98 = por %p96, %p97
      %p100 = scmp.ne.s32.totalorder %s85, %s99
      %p101 = scmp.eq.s32.totalorder %s33, 0
      %p102 = por %p100, %p101
      %s104 = sadd.s32 %s103, 1
      %p107 = scmp.eq.s32.totalorder %s27, 1
      %p108 = scmp.ne.s32.totalorder %s103, %s105
      %p109 = scmp.eq.s32.totalorder %s27, 0
      %p110 = por %p108, %p109
      %p111 = scmp.ne.s32.totalorder %s103, %s105
      %p112 = scmp.eq.s32.totalorder %s32, 1
      %p113 = por %p111, %p112
      %p114 = scmp.ne.s32.totalorder %s105, %s106
      %p115 = scmp.eq.s32.totalorder %s32, 0
      %p116 = por %p114, %p115
      %p117 = scmp.ne.s32.totalorder %s105, %s106
      %p118 = scmp.eq.s32.totalorder %s33, 1
      %p119 = por %p117, %p118
      %p121 = scmp.ne.s32.totalorder %s106, %s120
      %p122 = scmp.eq.s32.totalorder %s33, 0
      %p123 = por %p121, %p122
      %s125 = sadd.s32 %s124, 1
      %p128 = scmp.eq.s32.totalorder %s27, 1
      %p129 = scmp.ne.s32.totalorder %s124, %s126
      %p130 = scmp.eq.s32.totalorder %s27, 0
      %p131 = por %p129, %p130
      %p132 = scmp.ne.s32.totalorder %s124, %s126
      %p133 = scmp.eq.s32.totalorder %s32, 1
      %p134 = por %p132, %p133
      %p135 = scmp.ne.s32.totalorder %s126, %s127
      %p136 = scmp.eq.s32.totalorder %s32, 0
      %p137 = por %p135, %p136
      %p138 = scmp.ne.s32.totalorder %s126, %s127
      %p139 = scmp.eq.s32.totalorder %s33, 1
      %p140 = por %p138, %p139
      %p142 = scmp.ne.s32.totalorder %s127, %s141
      %p143 = scmp.eq.s32.totalorder %s33, 0
      %p144 = por %p142, %p143
      %s146 = sadd.s32 %s145, 1
      %p149 = scmp.eq.s32.totalorder %s27, 1
      %p150 = scmp.ne.s32.totalorder %s145, %s147
      %p151 = scmp.eq.s32.totalorder %s27, 0
      %p152 = por %p150, %p151
      %p153 = scmp.ne.s32.totalorder %s145, %s147
      %p154 = scmp.eq.s32.totalorder %s32, 1
      %p155 = por %p153, %p154
      %p156 = scmp.ne.s32.totalorder %s147, %s148
      %p157 = scmp.eq.s32.totalorder %s32, 0
      %p158 = por %p156, %p157
      %p159 = scmp.ne.s32.totalorder %s147, %s148
      %p160 = scmp.eq.s32.totalorder %s33, 1
      %p161 = por %p159, %p160
      %p163 = scmp.ne.s32.totalorder %s148, %s162
      %p164 = scmp.eq.s32.totalorder %s33, 0
      %p165 = por %p163, %p164
      %s167 = sadd.s32 %s166, 1
      %p170 = scmp.eq.s32.totalorder %s27, 1
      %p171 = scmp.ne.s32.totalorder %s166, %s168
      %p172 = scmp.eq.s32.totalorder %s27, 0
      %p173 = por %p171, %p172
      %p174 = scmp.ne.s32.totalorder %s166, %s168
      %p175 = scmp.eq.s32.totalorder %s32, 1
      %p176 = por %p174, %p175
      %p177 = scmp.ne.s32.totalorder %s168, %s169
      %p178 = scmp.eq.s32.totalorder %s32, 0
      %p179 = por %p177, %p178
      %p180 = scmp.ne.s32.totalorder %s168, %s169
      %p181 = scmp.eq.s32.totalorder %s33, 1
      %p182 = por %p180, %p181
      %p184 = scmp.ne.s32.totalorder %s169, %s183
      %p185 = scmp.eq.s32.totalorder %s33, 0
      %p186 = por %p184, %p185
      %s188 = sadd.s32 %s187, 1
      %p191 = scmp.eq.s32.totalorder %s27, 1
      %p192 = scmp.ne.s32.totalorder %s187, %s189
      %p193 = scmp.eq.s32.totalorder %s27, 0
      %p194 = por %p192, %p193
      %p195 = scmp.ne.s32.totalorder %s187, %s189
      %p196 = scmp.eq.s32.totalorder %s32, 1
      %p197 = por %p195, %p196
      %p198 = scmp.ne.s32.totalorder %s189, %s190
      %p199 = scmp.eq.s32.totalorder %s32, 0
      %p200 = por %p198, %p199
      %p201 = scmp.ne.s32.totalorder %s189, %s190
      %p202 = scmp.eq.s32.totalorder %s33, 1
      %p203 = por %p201, %p202
      %p205 = scmp.ne.s32.totalorder %s190, %s204
      %p206 = scmp.eq.s32.totalorder %s33, 0
      %p207 = por %p205, %p206
      %s209 = sadd.s32 %s208, 1
      %p212 = scmp.eq.s32.totalorder %s27, 1
      %p213 = scmp.ne.s32.totalorder %s208, %s210
      %p214 = scmp.eq.s32.totalorder %s27, 0
      %p215 = por %p213, %p214
      %p216 = scmp.ne.s32.totalorder %s208, %s210
      %p217 = scmp.eq.s32.totalorder %s32, 1
      %p218 = por %p216, %p217
      %p219 = scmp.ne.s32.totalorder %s210, %s211
      %p220 = scmp.eq.s32.totalorder %s32, 0
      %p221 = por %p219, %p220
      %p222 = scmp.ne.s32.totalorder %s210, %s211
      %p223 = scmp.eq.s32.totalorder %s33, 1
      %p224 = por %p222, %p223
      %p226 = scmp.ne.s32.totalorder %s211, %s225
      %p227 = scmp.eq.s32.totalorder %s33, 0
      %p228 = por %p226, %p227
      %s230 = sadd.s32 %s229, 1
      %p233 = scmp.eq.s32.totalorder %s27, 1
      %p234 = scmp.ne.s32.totalorder %s229, %s231
      %p235 = scmp.eq.s32.totalorder %s27, 0
      %p236 = por %p234, %p235
      %p237 = scmp.ne.s32.totalorder %s229, %s231
      %p238 = scmp.eq.s32.totalorder %s32, 1
      %p239 = por %p237, %p238
      %p240 = scmp.ne.s32.totalorder %s231, %s232
      %p241 = scmp.eq.s32.totalorder %s32, 0
      %p242 = por %p240, %p241
      %p243 = scmp.ne.s32.totalorder %s231, %s232
      %p244 = scmp.eq.s32.totalorder %s33, 1
      %p245 = por %p243, %p244
      %p247 = scmp.ne.s32.totalorder %s232, %s246
      %p248 = scmp.eq.s32.totalorder %s33, 0
      %p249 = por %p247, %p248
      %s250 = ssub.s32 %s27, %s34
      %p251 = scmp.eq.s32.totalorder %s250, 0
      %s253 = sadd.s32 %s252, 1
      %s254 = scalar_select %p251, %s252, %s253
      %p257 = pneg %p251
      %p258 = scmp.eq.s32.totalorder %s27, 1
      %p259 = por %p257, %p258
      %p260 = scmp.ne.s32.totalorder %s252, %s255
      %p261 = scmp.eq.s32.totalorder %s27, 0
      %p262 = por %p260, %p261
      %p263 = scmp.ne.s32.totalorder %s252, %s255
      %p264 = scmp.eq.s32.totalorder %s32, 1
      %p265 = por %p263, %p264
      %p266 = scmp.ne.s32.totalorder %s255, %s256
      %p267 = scmp.eq.s32.totalorder %s32, 0
      %p268 = por %p266, %p267
      %p269 = scmp.ne.s32.totalorder %s255, %s256
      %p270 = scmp.eq.s32.totalorder %s33, 1
      %p271 = por %p269, %p270
      %p273 = scmp.ne.s32.totalorder %s256, %s272
      %p274 = scmp.eq.s32.totalorder %s33, 0
      %p275 = por %p273, %p274
      %p276 = scmp.le.s32.totalorder 1, %s27
      %p277 = scmp.lt.s32.totalorder %s27, 3
      %p278 = pnand %p276, %p277
      %p279 = pneg %p278
      // Predicated region
      $region9: #{resblock_forward.3} parent=5 // pred_check
        _
      $region10: #{resblock_forward.3} parent=5 // pred_check_branch
        %281 = sbr.rel (%p278) target = $region12
      $region11: #{resblock_forward.3} parent=5 // pred_region
        %s282 = ssub.s32 %s27, 1
        // Predicated region
        $region13: #{resblock_forward.3} parent=11 // pred_check
          %p283 = pneg %p74
        $region14: #{resblock_forward.3} parent=11 // pred_check_branch
          %285 = sbr.rel (%p283) target = $region16
        $region15: #{resblock_forward.3} parent=11 // pred_region
          %s287 = ssub.s32 512, 512
          %288 = vsyncadd [#allocation10], %s287
          %s289 = sshll.u32 [#allocation9], 4
          %s290 = int_to_ptr.vmem [resolvable:$true] %s289
          %295 = dma.hbm_to_vmem [thread:$0]  %s1, 512, %s290, [#allocation10], 256, 256, 16
        $region16: #{resblock_forward.3} parent=11 // pred_fallthru
          _
        // Predicated region
        $region17: #{resblock_forward.3} parent=11 // pred_check
          %p296 = pneg %p95
        $region18: #{resblock_forward.3} parent=11 // pred_check_branch
          %298 = sbr.rel (%p296) target = $region20
        $region19: #{resblock_forward.3} parent=11 // pred_region
          %s300 = ssub.s32 1024, 1024
          %301 = vsyncadd [#allocation10], %s300
          %s302 = sshll.u32 [#allocation11], 4
          %s303 = int_to_ptr.vmem [resolvable:$true] %s302
          %308 = dma.hbm_to_vmem [thread:$0]  %s2, 1024, %s303, [#allocation10], 128, 128, 8
        $region20: #{resblock_forward.3} parent=11 // pred_fallthru
          _
        // Predicated region
        $region21: #{resblock_forward.3} parent=11 // pred_check
          %p309 = pneg %p116
        $region22: #{resblock_forward.3} parent=11 // pred_check_branch
          %311 = sbr.rel (%p309) target = $region24
        $region23: #{resblock_forward.3} parent=11 // pred_region
          %s313 = ssub.s32 2048, 2048
          %314 = vsyncadd [#allocation13], %s313
          %s315 = sshll.u32 [#allocation12], 4
          %s316 = int_to_ptr.vmem [resolvable:$true] %s315
          %321 = dma.hbm_to_vmem [thread:$0]  %s3, 2048, %s316, [#allocation13], 64, 64, 4
        $region24: #{resblock_forward.3} parent=11 // pred_fallthru
          _
        // Predicated region
        $region25: #{resblock_forward.3} parent=11 // pred_check
          %p322 = pneg %p137
        $region26: #{resblock_forward.3} parent=11 // pred_check_branch
          %324 = sbr.rel (%p322) target = $region28
        $region27: #{resblock_forward.3} parent=11 // pred_region
          %s326 = ssub.s32 128, 128
          %327 = vsyncadd [#allocation13], %s326
          %s328 = sshll.u32 [#allocation14], 4
          %s329 = int_to_ptr.vmem [resolvable:$true] %s328
          %334 = dma.hbm_to_vmem [thread:$0]  %s4, 128, %s329, [#allocation13], 64, 64, 4
        $region28: #{resblock_forward.3} parent=11 // pred_fallthru
          _
        // Predicated region
        $region29: #{resblock_forward.3} parent=11 // pred_check
          %p335 = pneg %p158
        $region30: #{resblock_forward.3} parent=11 // pred_check_branch
          %337 = sbr.rel (%p335) target = $region32
        $region31: #{resblock_forward.3} parent=11 // pred_region
          %s339 = ssub.s32 256, 256
          %340 = vsyncadd [#allocation16], %s339
          %s341 = sshll.u32 [#allocation15], 4
          %s342 = int_to_ptr.vmem [resolvable:$true] %s341
          %347 = dma.hbm_to_vmem [thread:$0]  %s5, 256, %s342, [#allocation16], 128, 128, 8
        $region32: #{resblock_forward.3} parent=11 // pred_fallthru
          _
        // Predicated region
        $region33: #{resblock_forward.3} parent=11 // pred_check
          %p348 = pneg %p179
        $region34: #{resblock_forward.3} parent=11 // pred_check_branch
          %350 = sbr.rel (%p348) target = $region36
        $region35: #{resblock_forward.3} parent=11 // pred_region
          %s352 = ssub.s32 256, 256
          %353 = vsyncadd [#allocation16], %s352
          %s354 = sshll.u32 [#allocation17], 4
          %s355 = int_to_ptr.vmem [resolvable:$true] %s354
          %360 = dma.hbm_to_vmem [thread:$0]  %s6, 256, %s355, [#allocation16], 128, 128, 8
        $region36: #{resblock_forward.3} parent=11 // pred_fallthru
          _
        // Predicated region
        $region37: #{resblock_forward.3} parent=11 // pred_check
          %p361 = pneg %p200
        $region38: #{resblock_forward.3} parent=11 // pred_check_branch
          %363 = sbr.rel (%p361) target = $region40
        $region39: #{resblock_forward.3} parent=11 // pred_region
          %s365 = ssub.s32 256, 256
          %366 = vsyncadd [#allocation19], %s365
          %s367 = sshll.u32 [#allocation18], 4
          %s368 = int_to_ptr.vmem [resolvable:$true] %s367
          %373 = dma.hbm_to_vmem [thread:$0]  %s7, 256, %s368, [#allocation19], 128, 128, 8
        $region40: #{resblock_forward.3} parent=11 // pred_fallthru
          _
        // Predicated region
        $region41: #{resblock_forward.3} parent=11 // pred_check
          %p374 = pneg %p221
        $region42: #{resblock_forward.3} parent=11 // pred_check_branch
          %376 = sbr.rel (%p374) target = $region44
        $region43: #{resblock_forward.3} parent=11 // pred_region
          %s378 = ssub.s32 256, 256
          %379 = vsyncadd [#allocation19], %s378
          %s380 = sshll.u32 [#allocation20], 4
          %s381 = int_to_ptr.vmem [resolvable:$true] %s380
          %386 = dma.hbm_to_vmem [thread:$0]  %s8, 256, %s381, [#allocation19], 128, 128, 8
        $region44: #{resblock_forward.3} parent=11 // pred_fallthru
          _
        // Predicated region
        $region45: #{resblock_forward.3} parent=11 // pred_check
          %p387 = pneg %p242
        $region46: #{resblock_forward.3} parent=11 // pred_check_branch
          %389 = sbr.rel (%p387) target = $region48
        $region47: #{resblock_forward.3} parent=11 // pred_region
          %s391 = ssub.s32 256, 256
          %392 = vsyncadd [#allocation22], %s391
          %s393 = sshll.u32 [#allocation21], 4
          %s394 = int_to_ptr.vmem [resolvable:$true] %s393
          %399 = dma.hbm_to_vmem [thread:$0]  %s9, 256, %s394, [#allocation22], 128, 128, 8
        $region48: #{resblock_forward.3} parent=11 // pred_fallthru
          _
      $region12: #{resblock_forward.3} parent=5 // pred_fallthru
        _
      %p400 = scmp.lt.s32.totalorder %s27, 2
      // Predicated region
      $region49: #{resblock_forward.3} parent=5 // pred_check
        %p401 = pneg %p400
      $region50: #{resblock_forward.3} parent=5 // pred_check_branch
        %403 = sbr.rel (%p401) target = $region52
      $region51: #{resblock_forward.3} parent=5 // pred_region
        // Predicated region
        $region53: #{resblock_forward.3} parent=51 // pred_check
          %p404 = pneg %p47
        $region54: #{resblock_forward.3} parent=51 // pred_check_branch
          %406 = sbr.rel (%p404) target = $region56
        $region55: #{resblock_forward.3} parent=51 // pred_region
          %s407 = sand.u32 %s37, 1
          %s408 = scalar_lea.sflag [#allocation7], %s407
          %s409 = sand.u32 %s37, 1
          %s410 = smul.addr %s409, 32
          %s411 = scalar_lea.vmem [#allocation6], %s410
          %s412 = smul.u32 2, %s27
          %s414 = ssub.s32 512, 512
          %415 = vsyncadd %s408, %s414
          %s416 = smul.addr %s412, 128
          %s417 = scalar_lea.hbm %s0, %s416
          %s418 = sshll.u32 %s411, 4
          %s419 = int_to_ptr.vmem [resolvable:$true] %s418
          %424 = dma.hbm_to_vmem [thread:$0]  %s417, 512, %s419, %s408, 512, 256, 16
        $region56: #{resblock_forward.3} parent=51 // pred_fallthru
          _
      $region52: #{resblock_forward.3} parent=5 // pred_fallthru
        _
      %p425 = scmp.le.s32.totalorder 1, %s27
      %p426 = scmp.lt.s32.totalorder %s27, 3
      %p427 = pnand %p425, %p426
      %p428 = pneg %p427
      // Predicated region
      $region57: #{resblock_forward.3} parent=5 // pred_check
        _
      $region58: #{resblock_forward.3} parent=5 // pred_check_branch
        %430 = sbr.rel (%p427) target = $region60
      $region59: #{resblock_forward.3} parent=5 // pred_region
        %s431 = ssub.s32 %s27, 1
        %s432 = sand.u32 %s40, 1
        %s433 = scalar_lea.sflag [#allocation7], %s432
        %s434 = sand.u32 %s40, 1
        %s435 = smul.addr %s434, 32
        %s436 = scalar_lea.vmem [#allocation6], %s435
        // Predicated region
        $region61: #{resblock_forward.3} parent=59 // pred_check
          %p437 = pneg %p53
        $region62: #{resblock_forward.3} parent=59 // pred_check_branch
          %439 = sbr.rel (%p437) target = $region64
        $region63: #{resblock_forward.3} parent=59 // pred_region
          %440 = dma.done %s433, 512
        $region64: #{resblock_forward.3} parent=59 // pred_fallthru
          _
        // Predicated region
        $region65: #{resblock_forward.3} parent=59 // pred_check
          %p441 = pneg %p74
        $region66: #{resblock_forward.3} parent=59 // pred_check_branch
          %443 = sbr.rel (%p441) target = $region68
        $region67: #{resblock_forward.3} parent=59 // pred_region
          %444 = dma.done [#allocation10], 512
        $region68: #{resblock_forward.3} parent=59 // pred_fallthru
          _
        // Predicated region
        $region69: #{resblock_forward.3} parent=59 // pred_check
          %p445 = pneg %p95
        $region70: #{resblock_forward.3} parent=59 // pred_check_branch
          %447 = sbr.rel (%p445) target = $region72
        $region71: #{resblock_forward.3} parent=59 // pred_region
          %448 = dma.done [#allocation10], 1024
        $region72: #{resblock_forward.3} parent=59 // pred_fallthru
          _
        // Predicated region
        $region73: #{resblock_forward.3} parent=59 // pred_check
          %p449 = pneg %p116
        $region74: #{resblock_forward.3} parent=59 // pred_check_branch
          %451 = sbr.rel (%p449) target = $region76
        $region75: #{resblock_forward.3} parent=59 // pred_region
          %452 = dma.done [#allocation13], 2048
        $region76: #{resblock_forward.3} parent=59 // pred_fallthru
          _
        // Predicated region
        $region77: #{resblock_forward.3} parent=59 // pred_check
          %p453 = pneg %p137
        $region78: #{resblock_forward.3} parent=59 // pred_check_branch
          %455 = sbr.rel (%p453) target = $region80
        $region79: #{resblock_forward.3} parent=59 // pred_region
          %456 = dma.done [#allocation13], 128
        $region80: #{resblock_forward.3} parent=59 // pred_fallthru
          _
        // Predicated region
        $region81: #{resblock_forward.3} parent=59 // pred_check
          %p457 = pneg %p158
        $region82: #{resblock_forward.3} parent=59 // pred_check_branch
          %459 = sbr.rel (%p457) target = $region84
        $region83: #{resblock_forward.3} parent=59 // pred_region
          %460 = dma.done [#allocation16], 256
        $region84: #{resblock_forward.3} parent=59 // pred_fallthru
          _
        // Predicated region
        $region85: #{resblock_forward.3} parent=59 // pred_check
          %p461 = pneg %p179
        $region86: #{resblock_forward.3} parent=59 // pred_check_branch
          %463 = sbr.rel (%p461) target = $region88
        $region87: #{resblock_forward.3} parent=59 // pred_region
          %464 = dma.done [#allocation16], 256
        $region88: #{resblock_forward.3} parent=59 // pred_fallthru
          _
        // Predicated region
        $region89: #{resblock_forward.3} parent=59 // pred_check
          %p465 = pneg %p200
        $region90: #{resblock_forward.3} parent=59 // pred_check_branch
          %467 = sbr.rel (%p465) target = $region92
        $region91: #{resblock_forward.3} parent=59 // pred_region
          %468 = dma.done [#allocation19], 256
        $region92: #{resblock_forward.3} parent=59 // pred_fallthru
          _
        // Predicated region
        $region93: #{resblock_forward.3} parent=59 // pred_check
          %p469 = pneg %p221
        $region94: #{resblock_forward.3} parent=59 // pred_check_branch
          %471 = sbr.rel (%p469) target = $region96
        $region95: #{resblock_forward.3} parent=59 // pred_region
          %472 = dma.done [#allocation19], 256
        $region96: #{resblock_forward.3} parent=59 // pred_fallthru
          _
        // Predicated region
        $region97: #{resblock_forward.3} parent=59 // pred_check
          %p473 = pneg %p242
        $region98: #{resblock_forward.3} parent=59 // pred_check_branch
          %475 = sbr.rel (%p473) target = $region100
        $region99: #{resblock_forward.3} parent=59 // pred_region
          %476 = dma.done [#allocation22], 256
        $region100: #{resblock_forward.3} parent=59 // pred_fallthru
          _
        %s477 = sand.u32 %s40, 1
        %s478 = scalar_lea.sflag [#allocation7], %s477
        %s479 = sand.u32 %s40, 1
        %s480 = smul.addr %s479, 32
        %s481 = scalar_lea.vmem [#allocation6], %s480
        %p482 = pneg %p53
        %p483 = pneg %p50
        %p484 = pneg %p74
        %p485 = pneg %p71
        %p486 = pneg %p95
        %p487 = pneg %p92
        %p488 = pneg %p116
        %p489 = pneg %p113
        %p490 = pneg %p137
        %p491 = pneg %p134
        %p492 = pneg %p158
        %p493 = pneg %p155
        %p494 = pneg %p179
        %p495 = pneg %p176
        %p496 = pneg %p200
        %p497 = pneg %p197
        %p498 = pneg %p221
        %p499 = pneg %p218
        %p500 = pneg %p242
        %p501 = pneg %p239
        %p502 = pneg %p268
        %p503 = pneg %p265
        %s504 = sand.u32 %s255, 1
        %s505 = scalar_lea.sflag [#allocation8], %s504
        %s506 = sand.u32 %s255, 1
        %s507 = smul.addr %s506, 128
        %s508 = scalar_lea.vmem [#allocation23], %s507
        %s509 = smul.u32 2, %s32
        %s510 = smul.u32 2, %s32
        %v512 = vld [vmem:[#allocation9] sm:$0xff]
        %v513 = vld [vmem:[#allocation9 + $0x8] sm:$0xff]
        %v514 = vld [vmem:[#allocation9 + $0x10] sm:$0xff]
        %v515 = vld [vmem:[#allocation9 + $0x18] sm:$0xff]
        %v516 = vld [vmem:[%s436] sm:$0xff]
        %v517 = vld [vmem:[%s436 + $0x8] sm:$0xff]
        %v518 = vld [vmem:[%s436 + $0x10] sm:$0xff]
        %v519 = vld [vmem:[%s436 + $0x18] sm:$0xff]
        %v520 = vld [vmem:[#allocation17] sm:$0xff]
        %v521 = vld [vmem:[#allocation17 + $0x8] sm:$0xff]
        %v522 = vld [vmem:[#allocation18] sm:$0xff]
        %v523 = vld [vmem:[#allocation18 + $0x8] sm:$0xff]
        %525 = vset.pattern.permute.xlu0 0
        %526 = vperm.xlu0 %525, %v520
        %v527 = vpop.permute.xlu0 %526
        %530 = vset.pattern.permute.xlu0 0
        %531 = vperm.xlu0 %530, %v521
        %v532 = vpop.permute.xlu0 %531
        %v534 = vmul.f32 %v516, %v527
        %v535 = vmul.f32 %v517, %v527
        %v536 = vmul.f32 %v518, %v532
        %v537 = vmul.f32 %v519, %v532
        %539 = vset.pattern.permute.xlu0 0
        %540 = vperm.xlu0 %539, %v522
        %v541 = vpop.permute.xlu0 %540
        %544 = vset.pattern.permute.xlu0 0
        %545 = vperm.xlu0 %544, %v523
        %v546 = vpop.permute.xlu0 %545
        %v548 = vadd.f32 %v534, %v541
        %v549 = vadd.f32 %v535, %v541
        %v550 = vadd.f32 %v536, %v546
        %v551 = vadd.f32 %v537, %v546
        %v552 = vmax.f32 %v548, 0.0
        %v553 = vmax.f32 %v549, 0.0
        %v554 = vmax.f32 %v550, 0.0
        %v555 = vmax.f32 %v551, 0.0
        %556 = vrot.lane.b32.xlu0 %v552, 17
        %v557 = vpop.permute.xlu0 %556
        %558 = vrot.lane.b32.xlu0 %v554, 17
        %v559 = vpop.permute.xlu0 %558
        %560 = vrot.lane.b32.xlu0 %v553, 17
        %v561 = vpop.permute.xlu0 %560
        %562 = vrot.lane.b32.xlu0 %v555, 17
        %v563 = vpop.permute.xlu0 %562
        %v564 = vlaneseq
        %v565 = vand.u32 %v564, 127
        %vm566 = vcmp.lt.s32.totalorder %v565, 17
        %v567 = vsel %vm566, %v557, %v561
        %v568 = vsel %vm566, %v559, %v563
        %v569 = vsel %vm566, %v561, %v557
        %v570 = vsel %vm566, %v563, %v559
        %v571 = vlaneseq
        %v572 = vshrl.u32 %v571, 7
        %v573 = vsub.s32 0, %v572
        %v574 = vrot.slane %v512, %v573
        %v575 = vlaneseq
        %v576 = vshrl.u32 %v575, 7
        %v577 = vsub.s32 0, %v576
        %v578 = vrot.slane %v513, %v577
        %v579 = vmul.f32 %v569, %v574
        %v580 = vmul.f32 %v567, %v578
        %v581 = vmul.f32 %v570, %v574
        %v582 = vmul.f32 %v568, %v578
        %v583 = vpack.c.bf16 %v581, %v579
        %v584 = vpack.c.bf16 %v582, %v580
        %585 = vst [vmem:[#allocation2] sm:$0xff] %v583
        %586 = vst [vmem:[#allocation2 + $0x8] sm:$0xff] %v584
        %587 = vrot.lane.b32.xlu0 %v552, 16
        %v588 = vpop.permute.xlu0 %587
        %589 = vrot.lane.b32.xlu0 %v554, 16
        %v590 = vpop.permute.xlu0 %589
        %591 = vrot.lane.b32.xlu0 %v553, 16
        %v592 = vpop.permute.xlu0 %591
        %593 = vrot.lane.b32.xlu0 %v555, 16
        %v594 = vpop.permute.xlu0 %593
        %vm595 = vcmp.lt.s32.totalorder %v565, 16
        %v596 = vsel %vm595, %v588, %v592
        %v597 = vsel %vm595, %v590, %v594
        %v598 = vsel %vm595, %v592, %v588
        %v599 = vsel %vm595, %v594, %v590
        %v600 = vlaneseq
        %v601 = vshrl.u32 %v600, 7
        %v602 = vsub.s32 1, %v601
        %v603 = vrot.slane %v512, %v602
        %v604 = vlaneseq
        %v605 = vshrl.u32 %v604, 7
        %v606 = vsub.s32 1, %v605
        %v607 = vrot.slane %v513, %v606
        %v608 = vmul.f32 %v598, %v603
        %v609 = vmul.f32 %v596, %v607
        %v610 = vmul.f32 %v599, %v603
        %v611 = vmul.f32 %v597, %v607
        %v612 = vpack.c.bf16 %v610, %v608
        %v613 = vpack.c.bf16 %v611, %v609
        %614 = vst [vmem:[#allocation2 + $0x10] sm:$0xff] %v612
        %615 = vst [vmem:[#allocation2 + $0x18] sm:$0xff] %v613
        %616 = vrot.lane.b32.xlu0 %v552, 15
        %v617 = vpop.permute.xlu0 %616
        %618 = vrot.lane.b32.xlu0 %v554, 15
        %v619 = vpop.permute.xlu0 %618
        %620 = vrot.lane.b32.xlu0 %v553, 15
        %v621 = vpop.permute.xlu0 %620
        %622 = vrot.lane.b32.xlu0 %v555, 15
        %v623 = vpop.permute.xlu0 %622
        %vm624 = vcmp.lt.s32.totalorder %v565, 15
        %v625 = vsel %vm624, %v617, %v621
        %v626 = vsel %vm624, %v619, %v623
        %v627 = vsel %vm624, %v621, %v617
        %v628 = vsel %vm624, %v623, %v619
        %v629 = vlaneseq
        %v630 = vshrl.u32 %v629, 7
        %v631 = vsub.s32 2, %v630
        %v632 = vrot.slane %v512, %v631
        %v633 = vlaneseq
        %v634 = vshrl.u32 %v633, 7
        %v635 = vsub.s32 2, %v634
        %v636 = vrot.slane %v513, %v635
        %v637 = vmul.f32 %v627, %v632
        %v638 = vmul.f32 %v625, %v636
        %v639 = vmul.f32 %v628, %v632
        %v640 = vmul.f32 %v626, %v636
        %v641 = vpack.c.bf16 %v639, %v637
        %v642 = vpack.c.bf16 %v640, %v638
        %643 = vst [vmem:[#allocation2 + $0x20] sm:$0xff] %v641
        %644 = vst [vmem:[#allocation2 + $0x28] sm:$0xff] %v642
        %645 = vrot.lane.b32.xlu0 %v552, 1
        %v646 = vpop.permute.xlu0 %645
        %647 = vrot.lane.b32.xlu0 %v554, 1
        %v648 = vpop.permute.xlu0 %647
        %649 = vrot.lane.b32.xlu0 %v553, 1
        %v650 = vpop.permute.xlu0 %649
        %651 = vrot.lane.b32.xlu0 %v555, 1
        %v652 = vpop.permute.xlu0 %651
        %vm653 = vcmp.lt.s32.totalorder %v565, 1
        %v654 = vsel %vm653, %v646, %v650
        %v655 = vsel %vm653, %v648, %v652
        %v656 = vsel %vm653, %v650, %v646
        %v657 = vsel %vm653, %v652, %v648
        %v658 = vlaneseq
        %v659 = vshrl.u32 %v658, 7
        %v660 = vsub.s32 3, %v659
        %v661 = vrot.slane %v512, %v660
        %v662 = vlaneseq
        %v663 = vshrl.u32 %v662, 7
        %v664 = vsub.s32 3, %v663
        %v665 = vrot.slane %v513, %v664
        %v666 = vmul.f32 %v656, %v661
        %v667 = vmul.f32 %v654, %v665
        %v668 = vmul.f32 %v657, %v661
        %v669 = vmul.f32 %v655, %v665
        %v670 = vpack.c.bf16 %v668, %v666
        %v671 = vpack.c.bf16 %v669, %v667
        %672 = vst [vmem:[#allocation2 + $0x30] sm:$0xff] %v670
        %673 = vst [vmem:[#allocation2 + $0x38] sm:$0xff] %v671
        %v674 = vpack.c.bf16 %v554, %v552
        %v675 = vpack.c.bf16 %v555, %v553
        %676 = vst [vmem:[#allocation2 + $0x40] sm:$0xff] %v674
        %677 = vst [vmem:[#allocation2 + $0x48] sm:$0xff] %v675
        %678 = vrot.lane.b32.xlu0 %v552, 127
        %v679 = vpop.permute.xlu0 %678
        %680 = vrot.lane.b32.xlu0 %v554, 127
        %v681 = vpop.permute.xlu0 %680
        %682 = vrot.lane.b32.xlu0 %v553, 127
        %v683 = vpop.permute.xlu0 %682
        %684 = vrot.lane.b32.xlu0 %v555, 127
        %v685 = vpop.permute.xlu0 %684
        %vm686 = vcmp.lt.s32.totalorder %v565, 127
        %v687 = vsel %vm686, %v679, %v683
        %v688 = vsel %vm686, %v681, %v685
        %v689 = vsel %vm686, %v683, %v679
        %v690 = vsel %vm686, %v685, %v681
        %v691 = vlaneseq
        %v692 = vshrl.u32 %v691, 7
        %v693 = vsub.s32 5, %v692
        %v694 = vrot.slane %v512, %v693
        %v695 = vlaneseq
        %v696 = vshrl.u32 %v695, 7
        %v697 = vsub.s32 5, %v696
        %v698 = vrot.slane %v513, %v697
        %v699 = vmul.f32 %v687, %v694
        %v700 = vmul.f32 %v689, %v698
        %v701 = vmul.f32 %v688, %v694
        %v702 = vmul.f32 %v690, %v698
        %v703 = vpack.c.bf16 %v701, %v699
        %v704 = vpack.c.bf16 %v702, %v700
        %705 = vst [vmem:[#allocation2 + $0x50] sm:$0xff] %v703
        %706 = vst [vmem:[#allocation2 + $0x58] sm:$0xff] %v704
        %707 = vrot.lane.b32.xlu0 %v552, 113
        %v708 = vpop.permute.xlu0 %707
        %709 = vrot.lane.b32.xlu0 %v554, 113
        %v710 = vpop.permute.xlu0 %709
        %711 = vrot.lane.b32.xlu0 %v553, 113
        %v712 = vpop.permute.xlu0 %711
        %713 = vrot.lane.b32.xlu0 %v555, 113
        %v714 = vpop.permute.xlu0 %713
        %vm715 = vcmp.lt.s32.totalorder %v565, 113
        %v716 = vsel %vm715, %v708, %v712
        %v717 = vsel %vm715, %v710, %v714
        %v718 = vsel %vm715, %v712, %v708
        %v719 = vsel %vm715, %v714, %v710
        %v720 = vlaneseq
        %v721 = vshrl.u32 %v720, 7
        %v722 = vsub.s32 6, %v721
        %v723 = vrot.slane %v512, %v722
        %v724 = vlaneseq
        %v725 = vshrl.u32 %v724, 7
        %v726 = vsub.s32 6, %v725
        %v727 = vrot.slane %v513, %v726
        %v728 = vmul.f32 %v716, %v723
        %v729 = vmul.f32 %v718, %v727
        %v730 = vmul.f32 %v717, %v723
        %v731 = vmul.f32 %v719, %v727
        %v732 = vpack.c.bf16 %v730, %v728
        %v733 = vpack.c.bf16 %v731, %v729
        %734 = vst [vmem:[#allocation2 + $0x60] sm:$0xff] %v732
        %735 = vst [vmem:[#allocation2 + $0x68] sm:$0xff] %v733
        %736 = vrot.lane.b32.xlu0 %v552, 112
        %v737 = vpop.permute.xlu0 %736
        %738 = vrot.lane.b32.xlu0 %v554, 112
        %v739 = vpop.permute.xlu0 %738
        %740 = vrot.lane.b32.xlu0 %v553, 112
        %v741 = vpop.permute.xlu0 %740
        %742 = vrot.lane.b32.xlu0 %v555, 112
        %v743 = vpop.permute.xlu0 %742
        %vm744 = vcmp.lt.s32.totalorder %v565, 112
        %v745 = vsel %vm744, %v737, %v741
        %v746 = vsel %vm744, %v739, %v743
        %v747 = vsel %vm744, %v741, %v737
        %v748 = vsel %vm744, %v743, %v739
        %v749 = vlaneseq
        %v750 = vshrl.u32 %v749, 7
        %v751 = vsub.s32 7, %v750
        %v752 = vrot.slane %v512, %v751
        %v753 = vlaneseq
        %v754 = vshrl.u32 %v753, 7
        %v755 = vsub.s32 7, %v754
        %v756 = vrot.slane %v513, %v755
        %v757 = vmul.f32 %v745, %v752
        %v758 = vmul.f32 %v747, %v756
        %v759 = vmul.f32 %v746, %v752
        %v760 = vmul.f32 %v748, %v756
        %v761 = vpack.c.bf16 %v759, %v757
        %v762 = vpack.c.bf16 %v760, %v758
        %763 = vst [vmem:[#allocation2 + $0x70] sm:$0xff] %v761
        %764 = vst [vmem:[#allocation2 + $0x78] sm:$0xff] %v762
        %765 = vrot.lane.b32.xlu0 %v552, 111
        %v766 = vpop.permute.xlu0 %765
        %767 = vrot.lane.b32.xlu0 %v554, 111
        %v768 = vpop.permute.xlu0 %767
        %769 = vrot.lane.b32.xlu0 %v553, 111
        %v770 = vpop.permute.xlu0 %769
        %771 = vrot.lane.b32.xlu0 %v555, 111
        %v772 = vpop.permute.xlu0 %771
        %vm773 = vcmp.lt.s32.totalorder %v565, 111
        %v774 = vsel %vm773, %v766, %v770
        %v775 = vsel %vm773, %v768, %v772
        %v776 = vsel %vm773, %v770, %v766
        %v777 = vsel %vm773, %v772, %v768
        %v778 = vlaneseq
        %v779 = vshrl.u32 %v778, 7
        %v780 = vsub.s32 0, %v779
        %v781 = vrot.slane %v514, %v780
        %v782 = vlaneseq
        %v783 = vshrl.u32 %v782, 7
        %v784 = vsub.s32 0, %v783
        %v785 = vrot.slane %v515, %v784
        %v786 = vmul.f32 %v774, %v781
        %v787 = vmul.f32 %v776, %v785
        %v788 = vmul.f32 %v775, %v781
        %v789 = vmul.f32 %v777, %v785
        %v790 = vpack.c.bf16 %v788, %v786
        %v791 = vpack.c.bf16 %v789, %v787
        %792 = vst [vmem:[#allocation2 + $0x80] sm:$0xff] %v790
        %793 = vst [vmem:[#allocation2 + $0x88] sm:$0xff] %v791
        %v794 = vld [vmem:[#allocation11] sm:$0xff]
        %v795 = vld [vmem:[#allocation11 + $0x8] sm:$0xff]
        %v796 = vld [vmem:[#allocation11 + $0x10] sm:$0xff]
        %v797 = vld [vmem:[#allocation11 + $0x18] sm:$0xff]
        %v798 = vld [vmem:[#allocation11 + $0x20] sm:$0xff]
        %v799 = vld [vmem:[#allocation11 + $0x28] sm:$0xff]
        %v800 = vld [vmem:[#allocation11 + $0x30] sm:$0xff]
        %v801 = vld [vmem:[#allocation11 + $0x38] sm:$0xff]
        %v802 = vld [vmem:[#allocation2] sm:$0xff]
        %v803 = vld [vmem:[#allocation2 + $0x8] sm:$0xff]
        %v804 = vld [vmem:[#allocation2 + $0x10] sm:$0xff]
        %v805 = vld [vmem:[#allocation2 + $0x18] sm:$0xff]
        %v806 = vld [vmem:[#allocation2 + $0x20] sm:$0xff]
        %v807 = vld [vmem:[#allocation2 + $0x28] sm:$0xff]
        %v808 = vld [vmem:[#allocation2 + $0x30] sm:$0xff]
        %v809 = vld [vmem:[#allocation2 + $0x38] sm:$0xff]
        %v810 = vld [vmem:[#allocation2 + $0x40] sm:$0xff]
        %v811 = vld [vmem:[#allocation2 + $0x48] sm:$0xff]
        %v812 = vld [vmem:[#allocation2 + $0x50] sm:$0xff]
        %v813 = vld [vmem:[#allocation2 + $0x58] sm:$0xff]
        %v814 = vld [vmem:[#allocation2 + $0x60] sm:$0xff]
        %v815 = vld [vmem:[#allocation2 + $0x68] sm:$0xff]
        %v816 = vld [vmem:[#allocation2 + $0x70] sm:$0xff]
        %v817 = vld [vmem:[#allocation2 + $0x78] sm:$0xff]
        %v818 = vld [vmem:[#allocation2 + $0x80] sm:$0xff]
        %v819 = vld [vmem:[#allocation2 + $0x88] sm:$0xff]
        %v828 = vunpack.c.l.b16 %v794
        %v829 = vunpack.c.h.b16 %v794
        %v830 = vunpack.c.l.b16 %v795
        %v831 = vunpack.c.h.b16 %v795
        %v832 = vunpack.c.l.b16 %v796
        %v833 = vunpack.c.h.b16 %v796
        %v834 = vunpack.c.l.b16 %v797
        %v835 = vunpack.c.h.b16 %v797
        %v836 = vunpack.c.l.b16 %v798
        %v837 = vunpack.c.h.b16 %v798
        %v838 = vunpack.c.l.b16 %v799
        %v839 = vunpack.c.h.b16 %v799
        %v840 = vunpack.c.l.b16 %v800
        %v841 = vunpack.c.h.b16 %v800
        %v842 = vunpack.c.l.b16 %v801
        %v843 = vunpack.c.h.b16 %v801
        %v844 = vpack.c.b16 %v830, %v828
        %v845 = vpack.c.b16 %v831, %v829
        %v846 = vpack.c.b16 %v834, %v832
        %v847 = vpack.c.b16 %v835, %v833
        %v848 = vpack.c.b16 %v838, %v836
        %v849 = vpack.c.b16 %v839, %v837
        %v850 = vpack.c.b16 %v842, %v840
        %v851 = vpack.c.b16 %v843, %v841
        %vm856 = vcmask 130048
        %v858 = vsel %vm856, %v845, 0
        %v861 = vsel %vm856, %v847, 0
        %v864 = vsel %vm856, %v849, 0
        %v867 = vsel %vm856, %v851, 0
        %869 = vmatprep.subr.bf16.mxu0 %v803
        %870 = vmatpush1.bf16.msra.mxu0 %v802
        %871 = vmatprep.subr.bf16.mxu0 %v805
        %872 = vmatpush1.bf16.msra.mxu0 %v804
        %873 = vmatprep.subr.bf16.mxu0 %v807
        %874 = vmatpush1.bf16.msra.mxu0 %v806
        %875 = vmatprep.subr.bf16.mxu0 %v809
        %876 = vmatpush1.bf16.msra.mxu0 %v808
        %877 = vmatprep.subr.bf16.mxu0 %v811
        %878 = vmatpush1.bf16.msra.mxu0 %v810
        %879 = vmatprep.subr.bf16.mxu0 %v813
        %880 = vmatpush1.bf16.msra.mxu0 %v812
        %881 = vmatprep.subr.bf16.mxu0 %v815
        %882 = vmatpush1.bf16.msra.mxu0 %v814
        %883 = vmatprep.subr.bf16.mxu0 %v817
        %884 = vmatpush1.bf16.msra.mxu0 %v816
        %885 = vmatprep.subr.bf16.mxu0 %v819
        %886 = vmatpush1.bf16.msra.mxu0 %v818
        %887 = vmatprep.subr.bf16.mxu0 0
        %888 = vmatpush1.bf16.msra.mxu0 0
        %889 = vmatprep.subr.bf16.mxu0 0
        %890 = vmatpush1.bf16.msra.mxu0 0
        %891 = vmatprep.subr.bf16.mxu0 0
        %892 = vmatpush1.bf16.msra.mxu0 0
        %893 = vmatprep.subr.bf16.mxu0 0
        %894 = vmatpush1.bf16.msra.mxu0 0
        %895 = vmatprep.subr.bf16.mxu0 0
        %896 = vmatpush1.bf16.msra.mxu0 0
        %897 = vmatprep.subr.bf16.mxu0 0
        %898 = vmatpush1.bf16.msra.mxu0 0
        %899 = vmatprep.subr.bf16.mxu0 0
        %900 = vmatpush1.bf16.msra.mxu0 0
        %901 = vmatprep.mubr.bf16.mxu0 %v858
        %902 = vmatmul.mubr.bf16.gmra.mrb[0].mxu0 %v844
        %v903 = vpop.f32.mrb[0].mxu0
        %v904 = vadd.f32 0.0, %v903
        %v905 = vpop.f32.mrb[0].mxu0
        %v906 = vadd.f32 0.0, %v905
        %v907 = vpop.f32.mrb[0].mxu0
        %v908 = vadd.f32 0.0, %v907
        %v909 = vpop.f32.mrb[0].mxu0
        %v910 = vadd.f32 0.0, %v909
        %911 = vmatprep.mubr.bf16.mxu0 %v861
        %912 = vmatmul.mubr.bf16.gmra.mrb[0].mxu0 %v846
        %v913 = vpop.f32.mrb[0].mxu0
        %v914 = vadd.f32 0.0, %v913
        %v915 = vpop.f32.mrb[0].mxu0
        %v916 = vadd.f32 0.0, %v915
        %v917 = vpop.f32.mrb[0].mxu0
        %v918 = vadd.f32 0.0, %v917
        %v919 = vpop.f32.mrb[0].mxu0
        %v920 = vadd.f32 0.0, %v919
        %921 = vmatprep.mubr.bf16.mxu0 %v864
        %922 = vmatmul.mubr.bf16.gmra.mrb[0].mxu0 %v848
        %v923 = vpop.f32.mrb[0].mxu0
        %v924 = vadd.f32 0.0, %v923
        %v925 = vpop.f32.mrb[0].mxu0
        %v926 = vadd.f32 0.0, %v925
        %v927 = vpop.f32.mrb[0].mxu0
        %v928 = vadd.f32 0.0, %v927
        %v929 = vpop.f32.mrb[0].mxu0
        %v930 = vadd.f32 0.0, %v929
        %931 = vmatprep.mubr.bf16.mxu0 %v867
        %932 = vmatmul.mubr.bf16.gmra.mrb[0].mxu0 %v850
        %v933 = vpop.f32.mrb[0].mxu0
        %v934 = vadd.f32 0.0, %v933
        %v935 = vpop.f32.mrb[0].mxu0
        %v936 = vadd.f32 0.0, %v935
        %v937 = vpop.f32.mrb[0].mxu0
        %v938 = vadd.f32 0.0, %v937
        %v939 = vpop.f32.mrb[0].mxu0
        %v940 = vadd.f32 0.0, %v939
        %941 = vdwg.mxu0
        %v942 = vld [vmem:[#allocation20] sm:$0xff]
        %v943 = vld [vmem:[#allocation20 + $0x8] sm:$0xff]
        %v944 = vld [vmem:[#allocation21] sm:$0xff]
        %v945 = vld [vmem:[#allocation21 + $0x8] sm:$0xff]
        %947 = vset.pattern.permute.xlu0 0
        %948 = vperm.xlu0 %947, %v942
        %v949 = vpop.permute.xlu0 %948
        %952 = vset.pattern.permute.xlu0 0
        %953 = vperm.xlu0 %952, %v943
        %v954 = vpop.permute.xlu0 %953
        %v956 = vmul.f32 %v904, %v949
        %v957 = vmul.f32 %v906, %v949
        %v958 = vmul.f32 %v908, %v954
        %v959 = vmul.f32 %v910, %v954
        %961 = vset.pattern.permute.xlu0 0
        %962 = vperm.xlu0 %961, %v944
        %v963 = vpop.permute.xlu0 %962
        %966 = vset.pattern.permute.xlu0 0
        %967 = vperm.xlu0 %966, %v945
        %v968 = vpop.permute.xlu0 %967
        %v970 = vadd.f32 %v956, %v963
        %v971 = vadd.f32 %v957, %v963
        %v972 = vadd.f32 %v958, %v968
        %v973 = vadd.f32 %v959, %v968
        %v974 = vmax.f32 %v970, 0.0
        %v975 = vmax.f32 %v971, 0.0
        %v976 = vmax.f32 %v972, 0.0
        %v977 = vmax.f32 %v973, 0.0
        %978 = vst [vmem:[#allocation3] sm:$0xff] %v974
        %979 = vst [vmem:[#allocation3 + $0x8] sm:$0xff] %v975
        %980 = vst [vmem:[#allocation3 + $0x10] sm:$0xff] %v976
        %981 = vst [vmem:[#allocation3 + $0x18] sm:$0xff] %v977
        %v982 = vmul.f32 %v914, %v949
        %v983 = vmul.f32 %v916, %v949
        %v984 = vmul.f32 %v918, %v954
        %v985 = vmul.f32 %v920, %v954
        %v986 = vadd.f32 %v982, %v963
        %v987 = vadd.f32 %v983, %v963
        %v988 = vadd.f32 %v984, %v968
        %v989 = vadd.f32 %v985, %v968
        %v990 = vmax.f32 %v986, 0.0
        %v991 = vmax.f32 %v987, 0.0
        %v992 = vmax.f32 %v988, 0.0
        %v993 = vmax.f32 %v989, 0.0
        %994 = vst [vmem:[#allocation3 + $0x20] sm:$0xff] %v990
        %995 = vst [vmem:[#allocation3 + $0x28] sm:$0xff] %v991
        %996 = vst [vmem:[#allocation3 + $0x30] sm:$0xff] %v992
        %997 = vst [vmem:[#allocation3 + $0x38] sm:$0xff] %v993
        %v998 = vmul.f32 %v924, %v949
        %v999 = vmul.f32 %v926, %v949
        %v1000 = vmul.f32 %v928, %v954
        %v1001 = vmul.f32 %v930, %v954
        %v1002 = vadd.f32 %v998, %v963
        %v1003 = vadd.f32 %v999, %v963
        %v1004 = vadd.f32 %v1000, %v968
        %v1005 = vadd.f32 %v1001, %v968
        %v1006 = vmax.f32 %v1002, 0.0
        %v1007 = vmax.f32 %v1003, 0.0
        %v1008 = vmax.f32 %v1004, 0.0
        %v1009 = vmax.f32 %v1005, 0.0
        %1010 = vst [vmem:[#allocation3 + $0x40] sm:$0xff] %v1006
        %1011 = vst [vmem:[#allocation3 + $0x48] sm:$0xff] %v1007
        %1012 = vst [vmem:[#allocation3 + $0x50] sm:$0xff] %v1008
        %1013 = vst [vmem:[#allocation3 + $0x58] sm:$0xff] %v1009
        %v1014 = vmul.f32 %v934, %v949
        %v1015 = vmul.f32 %v936, %v949
        %v1016 = vmul.f32 %v938, %v954
        %v1017 = vmul.f32 %v940, %v954
        %v1018 = vadd.f32 %v1014, %v963
        %v1019 = vadd.f32 %v1015, %v963
        %v1020 = vadd.f32 %v1016, %v968
        %v1021 = vadd.f32 %v1017, %v968
        %v1022 = vmax.f32 %v1018, 0.0
        %v1023 = vmax.f32 %v1019, 0.0
        %v1024 = vmax.f32 %v1020, 0.0
        %v1025 = vmax.f32 %v1021, 0.0
        %1026 = vst [vmem:[#allocation3 + $0x60] sm:$0xff] %v1022
        %1027 = vst [vmem:[#allocation3 + $0x68] sm:$0xff] %v1023
        %1028 = vst [vmem:[#allocation3 + $0x70] sm:$0xff] %v1024
        %1029 = vst [vmem:[#allocation3 + $0x78] sm:$0xff] %v1025
        %v1030 = vld [vmem:[#allocation3 + $0x60] sm:$0xff]
        %v1031 = vld [vmem:[#allocation3 + $0x68] sm:$0xff]
        %v1032 = vld [vmem:[#allocation3 + $0x70] sm:$0xff]
        %v1033 = vld [vmem:[#allocation3 + $0x78] sm:$0xff]
        %1034 = vrot.lane.b32.xlu0 %v1030, 17
        %v1035 = vpop.permute.xlu0 %1034
        %1036 = vrot.lane.b32.xlu0 %v1032, 17
        %v1037 = vpop.permute.xlu0 %1036
        %1038 = vrot.lane.b32.xlu0 %v1031, 17
        %v1039 = vpop.permute.xlu0 %1038
        %1040 = vrot.lane.b32.xlu0 %v1033, 17
        %v1041 = vpop.permute.xlu0 %1040
        %v1042 = vsel %vm566, %v1035, %v1039
        %v1043 = vsel %vm566, %v1037, %v1041
        %v1044 = vsel %vm566, %v1039, %v1035
        %v1045 = vsel %vm566, %v1041, %v1037
        %v1046 = vmul.f32 %v1044, %v574
        %v1047 = vmul.f32 %v1042, %v578
        %v1048 = vmul.f32 %v1045, %v574
        %v1049 = vmul.f32 %v1043, %v578
        %v1050 = vpack.c.bf16 %v1048, %v1046
        %v1051 = vpack.c.bf16 %v1049, %v1047
        %1052 = vst [vmem:[#allocation4] sm:$0xff] %v1050
        %1053 = vst [vmem:[#allocation4 + $0x8] sm:$0xff] %v1051
        %v1054 = vld [vmem:[#allocation3 + $0x40] sm:$0xff]
        %v1055 = vld [vmem:[#allocation3 + $0x48] sm:$0xff]
        %v1056 = vld [vmem:[#allocation3 + $0x50] sm:$0xff]
        %v1057 = vld [vmem:[#allocation3 + $0x58] sm:$0xff]
        %1058 = vrot.lane.b32.xlu0 %v1054, 16
        %v1059 = vpop.permute.xlu0 %1058
        %1060 = vrot.lane.b32.xlu0 %v1056, 16
        %v1061 = vpop.permute.xlu0 %1060
        %1062 = vrot.lane.b32.xlu0 %v1055, 16
        %v1063 = vpop.permute.xlu0 %1062
        %1064 = vrot.lane.b32.xlu0 %v1057, 16
        %v1065 = vpop.permute.xlu0 %1064
        %v1066 = vsel %vm595, %v1059, %v1063
        %v1067 = vsel %vm595, %v1061, %v1065
        %v1068 = vsel %vm595, %v1063, %v1059
        %v1069 = vsel %vm595, %v1065, %v1061
        %v1070 = vmul.f32 %v1068, %v603
        %v1071 = vmul.f32 %v1066, %v607
        %v1072 = vmul.f32 %v1069, %v603
        %v1073 = vmul.f32 %v1067, %v607
        %v1074 = vpack.c.bf16 %v1072, %v1070
        %v1075 = vpack.c.bf16 %v1073, %v1071
        %1076 = vst [vmem:[#allocation4 + $0x10] sm:$0xff] %v1074
        %1077 = vst [vmem:[#allocation4 + $0x18] sm:$0xff] %v1075
        %v1078 = vld [vmem:[#allocation3 + $0x60] sm:$0xff]
        %v1079 = vld [vmem:[#allocation3 + $0x68] sm:$0xff]
        %v1080 = vld [vmem:[#allocation3 + $0x70] sm:$0xff]
        %v1081 = vld [vmem:[#allocation3 + $0x78] sm:$0xff]
        %1082 = vrot.lane.b32.xlu0 %v1078, 16
        %v1083 = vpop.permute.xlu0 %1082
        %1084 = vrot.lane.b32.xlu0 %v1080, 16
        %v1085 = vpop.permute.xlu0 %1084
        %1086 = vrot.lane.b32.xlu0 %v1079, 16
        %v1087 = vpop.permute.xlu0 %1086
        %1088 = vrot.lane.b32.xlu0 %v1081, 16
        %v1089 = vpop.permute.xlu0 %1088
        %v1090 = vsel %vm595, %v1083, %v1087
        %v1091 = vsel %vm595, %v1085, %v1089
        %v1092 = vsel %vm595, %v1087, %v1083
        %v1093 = vsel %vm595, %v1089, %v1085
        %v1094 = vmul.f32 %v1092, %v603
        %v1095 = vmul.f32 %v1090, %v607
        %v1096 = vmul.f32 %v1093, %v603
        %v1097 = vmul.f32 %v1091, %v607
        %v1098 = vpack.c.bf16 %v1096, %v1094
        %v1099 = vpack.c.bf16 %v1097, %v1095
        %1100 = vst [vmem:[#allocation4 + $0x20] sm:$0xff] %v1098
        %1101 = vst [vmem:[#allocation4 + $0x28] sm:$0xff] %v1099
        %v1102 = vld [vmem:[#allocation3 + $0x40] sm:$0xff]
        %v1103 = vld [vmem:[#allocation3 + $0x48] sm:$0xff]
        %v1104 = vld [vmem:[#allocation3 + $0x50] sm:$0xff]
        %v1105 = vld [vmem:[#allocation3 + $0x58] sm:$0xff]
        %1106 = vrot.lane.b32.xlu0 %v1102, 15
        %v1107 = vpop.permute.xlu0 %1106
        %1108 = vrot.lane.b32.xlu0 %v1104, 15
        %v1109 = vpop.permute.xlu0 %1108
        %1110 = vrot.lane.b32.xlu0 %v1103, 15
        %v1111 = vpop.permute.xlu0 %1110
        %1112 = vrot.lane.b32.xlu0 %v1105, 15
        %v1113 = vpop.permute.xlu0 %1112
        %v1114 = vsel %vm624, %v1107, %v1111
        %v1115 = vsel %vm624, %v1109, %v1113
        %v1116 = vsel %vm624, %v1111, %v1107
        %v1117 = vsel %vm624, %v1113, %v1109
        %v1118 = vmul.f32 %v1116, %v632
        %v1119 = vmul.f32 %v1114, %v636
        %v1120 = vmul.f32 %v1117, %v632
        %v1121 = vmul.f32 %v1115, %v636
        %v1122 = vpack.c.bf16 %v1120, %v1118
        %v1123 = vpack.c.bf16 %v1121, %v1119
        %1124 = vst [vmem:[#allocation4 + $0x30] sm:$0xff] %v1122
        %1125 = vst [vmem:[#allocation4 + $0x38] sm:$0xff] %v1123
        %v1126 = vld [vmem:[#allocation12] sm:$0xf]
        %v1127 = vld [vmem:[#allocation12 + $0x4] sm:$0xf]
        %v1128 = vld [vmem:[#allocation12 + $0x8] sm:$0xf]
        %v1129 = vld [vmem:[#allocation12 + $0xc] sm:$0xf]
        %v1130 = vld [vmem:[#allocation12 + $0x10] sm:$0xf]
        %v1131 = vld [vmem:[#allocation12 + $0x14] sm:$0xf]
        %v1132 = vld [vmem:[#allocation12 + $0x18] sm:$0xf]
        %v1133 = vld [vmem:[#allocation12 + $0x1c] sm:$0xf]
        %v1134 = vld [vmem:[#allocation4] sm:$0xff]
        %v1135 = vld [vmem:[#allocation4 + $0x8] sm:$0xff]
        %v1136 = vld [vmem:[#allocation4 + $0x10] sm:$0xff]
        %v1137 = vld [vmem:[#allocation4 + $0x18] sm:$0xff]
        %v1138 = vld [vmem:[#allocation4 + $0x20] sm:$0xff]
        %v1139 = vld [vmem:[#allocation4 + $0x28] sm:$0xff]
        %v1140 = vld [vmem:[#allocation4 + $0x30] sm:$0xff]
        %v1141 = vld [vmem:[#allocation4 + $0x38] sm:$0xff]
        %v1150 = vunpack.c.l.b16 %v1126
        %v1151 = vunpack.c.l.b16 %v1127
        %v1152 = vunpack.c.l.b16 %v1128
        %v1153 = vunpack.c.l.b16 %v1129
        %v1154 = vunpack.c.l.b16 %v1130
        %v1155 = vunpack.c.l.b16 %v1131
        %v1156 = vunpack.c.l.b16 %v1132
        %v1157 = vunpack.c.l.b16 %v1133
        %v1158 = vpack.c.b16 %v1151, %v1150
        %v1159 = vpack.c.b16 %v1153, %v1152
        %v1160 = vpack.c.b16 %v1155, %v1154
        %v1161 = vpack.c.b16 %v1157, %v1156
        %vm1162 = vcmask 523264
        %v1164 = vsel %vm1162, %v1158, 0
        %v1167 = vsel %vm1162, %v1159, 0
        %v1170 = vsel %vm1162, %v1160, 0
        %v1173 = vsel %vm1162, %v1161, 0
        %1175 = vmatprep.subr.bf16.mxu0 %v1135
        %1176 = vmatpush1.bf16.msra.mxu0 %v1134
        %1177 = vmatprep.subr.bf16.mxu0 %v1137
        %1178 = vmatpush1.bf16.msra.mxu0 %v1136
        %1179 = vmatprep.subr.bf16.mxu0 %v1139
        %1180 = vmatpush1.bf16.msra.mxu0 %v1138
        %1181 = vmatprep.subr.bf16.mxu0 %v1141
        %1182 = vmatpush1.bf16.msra.mxu0 %v1140
        %1183 = vmatprep.subr.bf16.mxu0 0
        %1184 = vmatpush1.bf16.msra.mxu0 0
        %1185 = vmatprep.subr.bf16.mxu0 0
        %1186 = vmatpush1.bf16.msra.mxu0 0
        %1187 = vmatprep.subr.bf16.mxu0 0
        %1188 = vmatpush1.bf16.msra.mxu0 0
        %1189 = vmatprep.subr.bf16.mxu0 0
        %1190 = vmatpush1.bf16.msra.mxu0 0
        %1191 = vmatprep.subr.bf16.mxu0 0
        %1192 = vmatpush1.bf16.msra.mxu0 0
        %1193 = vmatprep.subr.bf16.mxu0 0
        %1194 = vmatpush1.bf16.msra.mxu0 0
        %1195 = vmatprep.subr.bf16.mxu0 0
        %1196 = vmatpush1.bf16.msra.mxu0 0
        %1197 = vmatprep.subr.bf16.mxu0 0
        %1198 = vmatpush1.bf16.msra.mxu0 0
        %1199 = vmatprep.subr.bf16.mxu0 0
        %1200 = vmatpush1.bf16.msra.mxu0 0
        %1201 = vmatprep.subr.bf16.mxu0 0
        %1202 = vmatpush1.bf16.msra.mxu0 0
        %1203 = vmatprep.subr.bf16.mxu0 0
        %1204 = vmatpush1.bf16.msra.mxu0 0
        %1205 = vmatprep.subr.bf16.mxu0 0
        %1206 = vmatpush1.bf16.msra.mxu0 0
        %1207 = vmatprep.mubr.bf16.mxu0 0
        %1208 = vmatmul.mubr.bf16.gmra.mrb[0].mxu0 %v1164
        %v1209 = vpop.f32.mrb[0].mxu0
        %v1210 = vadd.f32 0.0, %v1209
        %v1211 = vpop.f32.mrb[0].mxu0
        %v1212 = vadd.f32 0.0, %v1211
        %v1213 = vpop.f32.mrb[0].mxu0
        %v1214 = vadd.f32 0.0, %v1213
        %v1215 = vpop.f32.mrb[0].mxu0
        %v1216 = vadd.f32 0.0, %v1215
        %1217 = vmatprep.mubr.bf16.mxu0 0
        %1218 = vmatmul.mubr.bf16.gmra.mrb[0].mxu0 %v1167
        %v1219 = vpop.f32.mrb[0].mxu0
        %v1220 = vadd.f32 0.0, %v1219
        %v1221 = vpop.f32.mrb[0].mxu0
        %v1222 = vadd.f32 0.0, %v1221
        %v1223 = vpop.f32.mrb[0].mxu0
        %v1224 = vadd.f32 0.0, %v1223
        %v1225 = vpop.f32.mrb[0].mxu0
        %v1226 = vadd.f32 0.0, %v1225
        %1227 = vmatprep.mubr.bf16.mxu0 0
        %1228 = vmatmul.mubr.bf16.gmra.mrb[0].mxu0 %v1170
        %v1229 = vpop.f32.mrb[0].mxu0
        %v1230 = vadd.f32 0.0, %v1229
        %v1231 = vpop.f32.mrb[0].mxu0
        %v1232 = vadd.f32 0.0, %v1231
        %v1233 = vpop.f32.mrb[0].mxu0
        %v1234 = vadd.f32 0.0, %v1233
        %v1235 = vpop.f32.mrb[0].mxu0
        %v1236 = vadd.f32 0.0, %v1235
        %1237 = vmatprep.mubr.bf16.mxu0 0
        %1238 = vmatmul.mubr.bf16.gmra.mrb[0].mxu0 %v1173
        %v1239 = vpop.f32.mrb[0].mxu0
        %v1240 = vadd.f32 0.0, %v1239
        %v1241 = vpop.f32.mrb[0].mxu0
        %v1242 = vadd.f32 0.0, %v1241
        %v1243 = vpop.f32.mrb[0].mxu0
        %v1244 = vadd.f32 0.0, %v1243
        %v1245 = vpop.f32.mrb[0].mxu0
        %v1246 = vadd.f32 0.0, %v1245
        %1247 = vdwg.mxu0
        %1248 = vst [vmem:[#allocation5] sm:$0xff] %v1210
        %1249 = vst [vmem:[#allocation5 + $0x8] sm:$0xff] %v1212
        %1250 = vst [vmem:[#allocation5 + $0x10] sm:$0xff] %v1214
        %1251 = vst [vmem:[#allocation5 + $0x18] sm:$0xff] %v1216
        %1252 = vst [vmem:[#allocation5 + $0x20] sm:$0xff] %v1220
        %1253 = vst [vmem:[#allocation5 + $0x28] sm:$0xff] %v1222
        %1254 = vst [vmem:[#allocation5 + $0x30] sm:$0xff] %v1224
        %1255 = vst [vmem:[#allocation5 + $0x38] sm:$0xff] %v1226
        %1256 = vst [vmem:[#allocation5 + $0x40] sm:$0xff] %v1230
        %1257 = vst [vmem:[#allocation5 + $0x48] sm:$0xff] %v1232
        %1258 = vst [vmem:[#allocation5 + $0x50] sm:$0xff] %v1234
        %1259 = vst [vmem:[#allocation5 + $0x58] sm:$0xff] %v1236
        %1260 = vst [vmem:[#allocation5 + $0x60] sm:$0xff] %v1240
        %1261 = vst [vmem:[#allocation5 + $0x68] sm:$0xff] %v1242
        %1262 = vst [vmem:[#allocation5 + $0x70] sm:$0xff] %v1244
        %1263 = vst [vmem:[#allocation5 + $0x78] sm:$0xff] %v1246
        %v1264 = vld [vmem:[#allocation3 + $0x20] sm:$0xff]
        %v1265 = vld [vmem:[#allocation3 + $0x28] sm:$0xff]
        %v1266 = vld [vmem:[#allocation3 + $0x30] sm:$0xff]
        %v1267 = vld [vmem:[#allocation3 + $0x38] sm:$0xff]
        %1268 = vrot.lane.b32.xlu0 %v1264, 1
        %v1269 = vpop.permute.xlu0 %1268
        %1270 = vrot.lane.b32.xlu0 %v1266, 1
        %v1271 = vpop.permute.xlu0 %1270
        %1272 = vrot.lane.b32.xlu0 %v1265, 1
        %v1273 = vpop.permute.xlu0 %1272
        %1274 = vrot.lane.b32.xlu0 %v1267, 1
        %v1275 = vpop.permute.xlu0 %1274
        %v1276 = vsel %vm653, %v1269, %v1273
        %v1277 = vsel %vm653, %v1271, %v1275
        %v1278 = vsel %vm653, %v1273, %v1269
        %v1279 = vsel %vm653, %v1275, %v1271
        %v1280 = vmul.f32 %v1278, %v661
        %v1281 = vmul.f32 %v1276, %v665
        %v1282 = vmul.f32 %v1279, %v661
        %v1283 = vmul.f32 %v1277, %v665
        %v1284 = vpack.c.bf16 %v1282, %v1280
        %v1285 = vpack.c.bf16 %v1283, %v1281
        %1286 = vst [vmem:[#allocation4] sm:$0xff] %v1284
        %1287 = vst [vmem:[#allocation4 + $0x8] sm:$0xff] %v1285
        %v1288 = vld [vmem:[#allocation3] sm:$0xff]
        %v1289 = vld [vmem:[#allocation3 + $0x8] sm:$0xff]
        %v1290 = vld [vmem:[#allocation3 + $0x10] sm:$0xff]
        %v1291 = vld [vmem:[#allocation3 + $0x18] sm:$0xff]
        %v1292 = vpack.c.bf16 %v1290, %v1288
        %v1293 = vpack.c.bf16 %v1291, %v1289
        %1294 = vst [vmem:[#allocation4 + $0x10] sm:$0xff] %v1292
        %1295 = vst [vmem:[#allocation4 + $0x18] sm:$0xff] %v1293
        %v1296 = vld [vmem:[#allocation3 + $0x20] sm:$0xff]
        %v1297 = vld [vmem:[#allocation3 + $0x28] sm:$0xff]
        %v1298 = vld [vmem:[#allocation3 + $0x30] sm:$0xff]
        %v1299 = vld [vmem:[#allocation3 + $0x38] sm:$0xff]
        %v1300 = vpack.c.bf16 %v1298, %v1296
        %v1301 = vpack.c.bf16 %v1299, %v1297
        %1302 = vst [vmem:[#allocation4 + $0x20] sm:$0xff] %v1300
        %1303 = vst [vmem:[#allocation4 + $0x28] sm:$0xff] %v1301
        %v1304 = vld [vmem:[#allocation3] sm:$0xff]
        %v1305 = vld [vmem:[#allocation3 + $0x8] sm:$0xff]
        %v1306 = vld [vmem:[#allocation3 + $0x10] sm:$0xff]
        %v1307 = vld [vmem:[#allocation3 + $0x18] sm:$0xff]
        %1308 = vrot.lane.b32.xlu0 %v1304, 127
        %v1309 = vpop.permute.xlu0 %1308
        %1310 = vrot.lane.b32.xlu0 %v1306, 127
        %v1311 = vpop.permute.xlu0 %1310
        %1312 = vrot.lane.b32.xlu0 %v1305, 127
        %v1313 = vpop.permute.xlu0 %1312
        %1314 = vrot.lane.b32.xlu0 %v1307, 127
        %v1315 = vpop.permute.xlu0 %1314
        %v1316 = vsel %vm686, %v1309, %v1313
        %v1317 = vsel %vm686, %v1311, %v1315
        %v1318 = vsel %vm686, %v1313, %v1309
        %v1319 = vsel %vm686, %v1315, %v1311
        %v1320 = vmul.f32 %v1316, %v694
        %v1321 = vmul.f32 %v1318, %v698
        %v1322 = vmul.f32 %v1317, %v694
        %v1323 = vmul.f32 %v1319, %v698
        %v1324 = vpack.c.bf16 %v1322, %v1320
        %v1325 = vpack.c.bf16 %v1323, %v1321
        %1326 = vst [vmem:[#allocation4 + $0x30] sm:$0xff] %v1324
        %1327 = vst [vmem:[#allocation4 + $0x38] sm:$0xff] %v1325
        %s1328 = scalar_lea.vmem [#allocation12], 32
        %v1329 = vld [vmem:[%s1328] sm:$0xf]
        %v1330 = vld [vmem:[%s1328 + $0x4] sm:$0xf]
        %v1331 = vld [vmem:[%s1328 + $0x8] sm:$0xf]
        %v1332 = vld [vmem:[%s1328 + $0xc] sm:$0xf]
        %v1333 = vld [vmem:[%s1328 + $0x10] sm:$0xf]
        %v1334 = vld [vmem:[%s1328 + $0x14] sm:$0xf]
        %v1335 = vld [vmem:[%s1328 + $0x18] sm:$0xf]
        %v1336 = vld [vmem:[%s1328 + $0x1c] sm:$0xf]
        %v1337 = vld [vmem:[#allocation4] sm:$0xff]
        %v1338 = vld [vmem:[#allocation4 + $0x8] sm:$0xff]
        %v1339 = vld [vmem:[#allocation4 + $0x10] sm:$0xff]
        %v1340 = vld [vmem:[#allocation4 + $0x18] sm:$0xff]
        %v1341 = vld [vmem:[#allocation4 + $0x20] sm:$0xff]
        %v1342 = vld [vmem:[#allocation4 + $0x28] sm:$0xff]
        %v1343 = vld [vmem:[#allocation4 + $0x30] sm:$0xff]
        %v1344 = vld [vmem:[#allocation4 + $0x38] sm:$0xff]
        %v1353 = vunpack.c.l.b16 %v1329
        %v1354 = vunpack.c.l.b16 %v1330
        %v1355 = vunpack.c.l.b16 %v1331
        %v1356 = vunpack.c.l.b16 %v1332
        %v1357 = vunpack.c.l.b16 %v1333
        %v1358 = vunpack.c.l.b16 %v1334
        %v1359 = vunpack.c.l.b16 %v1335
        %v1360 = vunpack.c.l.b16 %v1336
        %v1361 = vpack.c.b16 %v1354, %v1353
        %v1362 = vpack.c.b16 %v1356, %v1355
        %v1363 = vpack.c.b16 %v1358, %v1357
        %v1364 = vpack.c.b16 %v1360, %v1359
        %v1366 = vsel %vm1162, %v1361, 0
        %v1369 = vsel %vm1162, %v1362, 0
        %v1372 = vsel %vm1162, %v1363, 0
        %v1375 = vsel %vm1162, %v1364, 0
        %1377 = vmatprep.subr.bf16.mxu0 %v1338
        %1378 = vmatpush1.bf16.msra.mxu0 %v1337
        %1379 = vmatprep.subr.bf16.mxu0 %v1340
        %1380 = vmatpush1.bf16.msra.mxu0 %v1339
        %1381 = vmatprep.subr.bf16.mxu0 %v1342
        %1382 = vmatpush1.bf16.msra.mxu0 %v1341
        %1383 = vmatprep.subr.bf16.mxu0 %v1344
        %1384 = vmatpush1.bf16.msra.mxu0 %v1343
        %1385 = vmatprep.subr.bf16.mxu0 0
        %1386 = vmatpush1.bf16.msra.mxu0 0
        %1387 = vmatprep.subr.bf16.mxu0 0
        %1388 = vmatpush1.bf16.msra.mxu0 0
        %1389 = vmatprep.subr.bf16.mxu0 0
        %1390 = vmatpush1.bf16.msra.mxu0 0
        %1391 = vmatprep.subr.bf16.mxu0 0
        %1392 = vmatpush1.bf16.msra.mxu0 0
        %1393 = vmatprep.subr.bf16.mxu0 0
        %1394 = vmatpush1.bf16.msra.mxu0 0
        %1395 = vmatprep.subr.bf16.mxu0 0
        %1396 = vmatpush1.bf16.msra.mxu0 0
        %1397 = vmatprep.subr.bf16.mxu0 0
        %1398 = vmatpush1.bf16.msra.mxu0 0
        %1399 = vmatprep.subr.bf16.mxu0 0
        %1400 = vmatpush1.bf16.msra.mxu0 0
        %1401 = vmatprep.subr.bf16.mxu0 0
        %1402 = vmatpush1.bf16.msra.mxu0 0
        %1403 = vmatprep.subr.bf16.mxu0 0
        %1404 = vmatpush1.bf16.msra.mxu0 0
        %1405 = vmatprep.subr.bf16.mxu0 0
        %1406 = vmatpush1.bf16.msra.mxu0 0
        %1407 = vmatprep.subr.bf16.mxu0 0
        %1408 = vmatpush1.bf16.msra.mxu0 0
        %1409 = vmatprep.mubr.bf16.mxu0 0
        %1410 = vmatmul.mubr.bf16.gmra.mrb[0].mxu0 %v1366
        %v1411 = vpop.f32.mrb[0].mxu0
        %v1412 = vadd.f32 0.0, %v1411
        %v1413 = vpop.f32.mrb[0].mxu0
        %v1414 = vadd.f32 0.0, %v1413
        %v1415 = vpop.f32.mrb[0].mxu0
        %v1416 = vadd.f32 0.0, %v1415
        %v1417 = vpop.f32.mrb[0].mxu0
        %v1418 = vadd.f32 0.0, %v1417
        %1419 = vmatprep.mubr.bf16.mxu0 0
        %1420 = vmatmul.mubr.bf16.gmra.mrb[0].mxu0 %v1369
        %v1421 = vpop.f32.mrb[0].mxu0
        %v1422 = vadd.f32 0.0, %v1421
        %v1423 = vpop.f32.mrb[0].mxu0
        %v1424 = vadd.f32 0.0, %v1423
        %v1425 = vpop.f32.mrb[0].mxu0
        %v1426 = vadd.f32 0.0, %v1425
        %v1427 = vpop.f32.mrb[0].mxu0
        %v1428 = vadd.f32 0.0, %v1427
        %1429 = vmatprep.mubr.bf16.mxu0 0
        %1430 = vmatmul.mubr.bf16.gmra.mrb[0].mxu0 %v1372
        %v1431 = vpop.f32.mrb[0].mxu0
        %v1432 = vadd.f32 0.0, %v1431
        %v1433 = vpop.f32.mrb[0].mxu0
        %v1434 = vadd.f32 0.0, %v1433
        %v1435 = vpop.f32.mrb[0].mxu0
        %v1436 = vadd.f32 0.0, %v1435
        %v1437 = vpop.f32.mrb[0].mxu0
        %v1438 = vadd.f32 0.0, %v1437
        %1439 = vmatprep.mubr.bf16.mxu0 0
        %1440 = vmatmul.mubr.bf16.gmra.mrb[0].mxu0 %v1375
        %v1441 = vpop.f32.mrb[0].mxu0
        %v1442 = vadd.f32 0.0, %v1441
        %v1443 = vpop.f32.mrb[0].mxu0
        %v1444 = vadd.f32 0.0, %v1443
        %v1445 = vpop.f32.mrb[0].mxu0
        %v1446 = vadd.f32 0.0, %v1445
        %v1447 = vpop.f32.mrb[0].mxu0
        %v1448 = vadd.f32 0.0, %v1447
        %1449 = vdwg.mxu0
        %v1450 = vld [vmem:[#allocation5] sm:$0xff]
        %v1451 = vld [vmem:[#allocation5 + $0x8] sm:$0xff]
        %v1452 = vld [vmem:[#allocation5 + $0x10] sm:$0xff]
        %v1453 = vld [vmem:[#allocation5 + $0x18] sm:$0xff]
        %v1454 = vld [vmem:[#allocation5 + $0x20] sm:$0xff]
        %v1455 = vld [vmem:[#allocation5 + $0x28] sm:$0xff]
        %v1456 = vld [vmem:[#allocation5 + $0x30] sm:$0xff]
        %v1457 = vld [vmem:[#allocation5 + $0x38] sm:$0xff]
        %v1458 = vld [vmem:[#allocation5 + $0x40] sm:$0xff]
        %v1459 = vld [vmem:[#allocation5 + $0x48] sm:$0xff]
        %v1460 = vld [vmem:[#allocation5 + $0x50] sm:$0xff]
        %v1461 = vld [vmem:[#allocation5 + $0x58] sm:$0xff]
        %v1462 = vld [vmem:[#allocation5 + $0x60] sm:$0xff]
        %v1463 = vld [vmem:[#allocation5 + $0x68] sm:$0xff]
        %v1464 = vld [vmem:[#allocation5 + $0x70] sm:$0xff]
        %v1465 = vld [vmem:[#allocation5 + $0x78] sm:$0xff]
        %v1466 = vadd.f32 %v1450, %v1412
        %v1467 = vadd.f32 %v1451, %v1414
        %v1468 = vadd.f32 %v1452, %v1416
        %v1469 = vadd.f32 %v1453, %v1418
        %v1470 = vadd.f32 %v1454, %v1422
        %v1471 = vadd.f32 %v1455, %v1424
        %v1472 = vadd.f32 %v1456, %v1426
        %v1473 = vadd.f32 %v1457, %v1428
        %v1474 = vadd.f32 %v1458, %v1432
        %v1475 = vadd.f32 %v1459, %v1434
        %v1476 = vadd.f32 %v1460, %v1436
        %v1477 = vadd.f32 %v1461, %v1438
        %v1478 = vadd.f32 %v1462, %v1442
        %v1479 = vadd.f32 %v1463, %v1444
        %v1480 = vadd.f32 %v1464, %v1446
        %v1481 = vadd.f32 %v1465, %v1448
        %1482 = vst [vmem:[#allocation5] sm:$0xff] %v1466
        %1483 = vst [vmem:[#allocation5 + $0x8] sm:$0xff] %v1467
        %1484 = vst [vmem:[#allocation5 + $0x10] sm:$0xff] %v1468
        %1485 = vst [vmem:[#allocation5 + $0x18] sm:$0xff] %v1469
        %1486 = vst [vmem:[#allocation5 + $0x20] sm:$0xff] %v1470
        %1487 = vst [vmem:[#allocation5 + $0x28] sm:$0xff] %v1471
        %1488 = vst [vmem:[#allocation5 + $0x30] sm:$0xff] %v1472
        %1489 = vst [vmem:[#allocation5 + $0x38] sm:$0xff] %v1473
        %1490 = vst [vmem:[#allocation5 + $0x40] sm:$0xff] %v1474
        %1491 = vst [vmem:[#allocation5 + $0x48] sm:$0xff] %v1475
        %1492 = vst [vmem:[#allocation5 + $0x50] sm:$0xff] %v1476
        %1493 = vst [vmem:[#allocation5 + $0x58] sm:$0xff] %v1477
        %1494 = vst [vmem:[#allocation5 + $0x60] sm:$0xff] %v1478
        %1495 = vst [vmem:[#allocation5 + $0x68] sm:$0xff] %v1479
        %1496 = vst [vmem:[#allocation5 + $0x70] sm:$0xff] %v1480
        %1497 = vst [vmem:[#allocation5 + $0x78] sm:$0xff] %v1481
        %v1498 = vld [vmem:[#allocation3 + $0x60] sm:$0xff]
        %v1499 = vld [vmem:[#allocation3 + $0x68] sm:$0xff]
        %v1500 = vld [vmem:[#allocation3 + $0x70] sm:$0xff]
        %v1501 = vld [vmem:[#allocation3 + $0x78] sm:$0xff]
        %1502 = vrot.lane.b32.xlu0 %v1498, 1
        %v1503 = vpop.permute.xlu0 %1502
        %1504 = vrot.lane.b32.xlu0 %v1500, 1
        %v1505 = vpop.permute.xlu0 %1504
        %1506 = vrot.lane.b32.xlu0 %v1499, 1
        %v1507 = vpop.permute.xlu0 %1506
        %1508 = vrot.lane.b32.xlu0 %v1501, 1
        %v1509 = vpop.permute.xlu0 %1508
        %v1510 = vsel %vm653, %v1503, %v1507
        %v1511 = vsel %vm653, %v1505, %v1509
        %v1512 = vsel %vm653, %v1507, %v1503
        %v1513 = vsel %vm653, %v1509, %v1505
        %v1514 = vmul.f32 %v1512, %v661
        %v1515 = vmul.f32 %v1510, %v665
        %v1516 = vmul.f32 %v1513, %v661
        %v1517 = vmul.f32 %v1511, %v665
        %v1518 = vpack.c.bf16 %v1516, %v1514
        %v1519 = vpack.c.bf16 %v1517, %v1515
        %1520 = vst [vmem:[#allocation4] sm:$0xff] %v1518
        %1521 = vst [vmem:[#allocation4 + $0x8] sm:$0xff] %v1519
        %v1522 = vld [vmem:[#allocation3 + $0x40] sm:$0xff]
        %v1523 = vld [vmem:[#allocation3 + $0x48] sm:$0xff]
        %v1524 = vld [vmem:[#allocation3 + $0x50] sm:$0xff]
        %v1525 = vld [vmem:[#allocation3 + $0x58] sm:$0xff]
        %v1526 = vpack.c.bf16 %v1524, %v1522
        %v1527 = vpack.c.bf16 %v1525, %v1523
        %1528 = vst [vmem:[#allocation4 + $0x10] sm:$0xff] %v1526
        %1529 = vst [vmem:[#allocation4 + $0x18] sm:$0xff] %v1527
        %v1530 = vld [vmem:[#allocation3 + $0x60] sm:$0xff]
        %v1531 = vld [vmem:[#allocation3 + $0x68] sm:$0xff]
        %v1532 = vld [vmem:[#allocation3 + $0x70] sm:$0xff]
        %v1533 = vld [vmem:[#allocation3 + $0x78] sm:$0xff]
        %v1534 = vpack.c.bf16 %v1532, %v1530
        %v1535 = vpack.c.bf16 %v1533, %v1531
        %1536 = vst [vmem:[#allocation4 + $0x20] sm:$0xff] %v1534
        %1537 = vst [vmem:[#allocation4 + $0x28] sm:$0xff] %v1535
        %v1538 = vld [vmem:[#allocation3 + $0x40] sm:$0xff]
        %v1539 = vld [vmem:[#allocation3 + $0x48] sm:$0xff]
        %v1540 = vld [vmem:[#allocation3 + $0x50] sm:$0xff]
        %v1541 = vld [vmem:[#allocation3 + $0x58] sm:$0xff]
        %1542 = vrot.lane.b32.xlu0 %v1538, 127
        %v1543 = vpop.permute.xlu0 %1542
        %1544 = vrot.lane.b32.xlu0 %v1540, 127
        %v1545 = vpop.permute.xlu0 %1544
        %1546 = vrot.lane.b32.xlu0 %v1539, 127
        %v1547 = vpop.permute.xlu0 %1546
        %1548 = vrot.lane.b32.xlu0 %v1541, 127
        %v1549 = vpop.permute.xlu0 %1548
        %v1550 = vsel %vm686, %v1543, %v1547
        %v1551 = vsel %vm686, %v1545, %v1549
        %v1552 = vsel %vm686, %v1547, %v1543
        %v1553 = vsel %vm686, %v1549, %v1545
        %v1554 = vmul.f32 %v1550, %v694
        %v1555 = vmul.f32 %v1552, %v698
        %v1556 = vmul.f32 %v1551, %v694
        %v1557 = vmul.f32 %v1553, %v698
        %v1558 = vpack.c.bf16 %v1556, %v1554
        %v1559 = vpack.c.bf16 %v1557, %v1555
        %1560 = vst [vmem:[#allocation4 + $0x30] sm:$0xff] %v1558
        %1561 = vst [vmem:[#allocation4 + $0x38] sm:$0xff] %v1559
        %s1562 = scalar_lea.vmem [#allocation12], 64
        %v1563 = vld [vmem:[%s1562] sm:$0xf]
        %v1564 = vld [vmem:[%s1562 + $0x4] sm:$0xf]
        %v1565 = vld [vmem:[%s1562 + $0x8] sm:$0xf]
        %v1566 = vld [vmem:[%s1562 + $0xc] sm:$0xf]
        %v1567 = vld [vmem:[%s1562 + $0x10] sm:$0xf]
        %v1568 = vld [vmem:[%s1562 + $0x14] sm:$0xf]
        %v1569 = vld [vmem:[%s1562 + $0x18] sm:$0xf]
        %v1570 = vld [vmem:[%s1562 + $0x1c] sm:$0xf]
        %v1571 = vld [vmem:[#allocation4] sm:$0xff]
        %v1572 = vld [vmem:[#allocation4 + $0x8] sm:$0xff]
        %v1573 = vld [vmem:[#allocation4 + $0x10] sm:$0xff]
        %v1574 = vld [vmem:[#allocation4 + $0x18] sm:$0xff]
        %v1575 = vld [vmem:[#allocation4 + $0x20] sm:$0xff]
        %v1576 = vld [vmem:[#allocation4 + $0x28] sm:$0xff]
        %v1577 = vld [vmem:[#allocation4 + $0x30] sm:$0xff]
        %v1578 = vld [vmem:[#allocation4 + $0x38] sm:$0xff]
        %v1587 = vunpack.c.l.b16 %v1563
        %v1588 = vunpack.c.l.b16 %v1564
        %v1589 = vunpack.c.l.b16 %v1565
        %v1590 = vunpack.c.l.b16 %v1566
        %v1591 = vunpack.c.l.b16 %v1567
        %v1592 = vunpack.c.l.b16 %v1568
        %v1593 = vunpack.c.l.b16 %v1569
        %v1594 = vunpack.c.l.b16 %v1570
        %v1595 = vpack.c.b16 %v1588, %v1587
        %v1596 = vpack.c.b16 %v1590, %v1589
        %v1597 = vpack.c.b16 %v1592, %v1591
        %v1598 = vpack.c.b16 %v1594, %v1593
        %v1600 = vsel %vm1162, %v1595, 0
        %v1603 = vsel %vm1162, %v1596, 0
        %v1606 = vsel %vm1162, %v1597, 0
        %v1609 = vsel %vm1162, %v1598, 0
        %1611 = vmatprep.subr.bf16.mxu0 %v1572
        %1612 = vmatpush1.bf16.msra.mxu0 %v1571
        %1613 = vmatprep.subr.bf16.mxu0 %v1574
        %1614 = vmatpush1.bf16.msra.mxu0 %v1573
        %1615 = vmatprep.subr.bf16.mxu0 %v1576
        %1616 = vmatpush1.bf16.msra.mxu0 %v1575
        %1617 = vmatprep.subr.bf16.mxu0 %v1578
        %1618 = vmatpush1.bf16.msra.mxu0 %v1577
        %1619 = vmatprep.subr.bf16.mxu0 0
        %1620 = vmatpush1.bf16.msra.mxu0 0
        %1621 = vmatprep.subr.bf16.mxu0 0
        %1622 = vmatpush1.bf16.msra.mxu0 0
        %1623 = vmatprep.subr.bf16.mxu0 0
        %1624 = vmatpush1.bf16.msra.mxu0 0
        %1625 = vmatprep.subr.bf16.mxu0 0
        %1626 = vmatpush1.bf16.msra.mxu0 0
        %1627 = vmatprep.subr.bf16.mxu0 0
        %1628 = vmatpush1.bf16.msra.mxu0 0
        %1629 = vmatprep.subr.bf16.mxu0 0
        %1630 = vmatpush1.bf16.msra.mxu0 0
        %1631 = vmatprep.subr.bf16.mxu0 0
        %1632 = vmatpush1.bf16.msra.mxu0 0
        %1633 = vmatprep.subr.bf16.mxu0 0
        %1634 = vmatpush1.bf16.msra.mxu0 0
        %1635 = vmatprep.subr.bf16.mxu0 0
        %1636 = vmatpush1.bf16.msra.mxu0 0
        %1637 = vmatprep.subr.bf16.mxu0 0
        %1638 = vmatpush1.bf16.msra.mxu0 0
        %1639 = vmatprep.subr.bf16.mxu0 0
        %1640 = vmatpush1.bf16.msra.mxu0 0
        %1641 = vmatprep.subr.bf16.mxu0 0
        %1642 = vmatpush1.bf16.msra.mxu0 0
        %1643 = vmatprep.mubr.bf16.mxu0 0
        %1644 = vmatmul.mubr.bf16.gmra.mrb[0].mxu0 %v1600
        %v1645 = vpop.f32.mrb[0].mxu0
        %v1646 = vadd.f32 0.0, %v1645
        %v1647 = vpop.f32.mrb[0].mxu0
        %v1648 = vadd.f32 0.0, %v1647
        %v1649 = vpop.f32.mrb[0].mxu0
        %v1650 = vadd.f32 0.0, %v1649
        %v1651 = vpop.f32.mrb[0].mxu0
        %v1652 = vadd.f32 0.0, %v1651
        %1653 = vmatprep.mubr.bf16.mxu0 0
        %1654 = vmatmul.mubr.bf16.gmra.mrb[0].mxu0 %v1603
        %v1655 = vpop.f32.mrb[0].mxu0
        %v1656 = vadd.f32 0.0, %v1655
        %v1657 = vpop.f32.mrb[0].mxu0
        %v1658 = vadd.f32 0.0, %v1657
        %v1659 = vpop.f32.mrb[0].mxu0
        %v1660 = vadd.f32 0.0, %v1659
        %v1661 = vpop.f32.mrb[0].mxu0
        %v1662 = vadd.f32 0.0, %v1661
        %1663 = vmatprep.mubr.bf16.mxu0 0
        %1664 = vmatmul.mubr.bf16.gmra.mrb[0].mxu0 %v1606
        %v1665 = vpop.f32.mrb[0].mxu0
        %v1666 = vadd.f32 0.0, %v1665
        %v1667 = vpop.f32.mrb[0].mxu0
        %v1668 = vadd.f32 0.0, %v1667
        %v1669 = vpop.f32.mrb[0].mxu0
        %v1670 = vadd.f32 0.0, %v1669
        %v1671 = vpop.f32.mrb[0].mxu0
        %v1672 = vadd.f32 0.0, %v1671
        %1673 = vmatprep.mubr.bf16.mxu0 0
        %1674 = vmatmul.mubr.bf16.gmra.mrb[0].mxu0 %v1609
        %v1675 = vpop.f32.mrb[0].mxu0
        %v1676 = vadd.f32 0.0, %v1675
        %v1677 = vpop.f32.mrb[0].mxu0
        %v1678 = vadd.f32 0.0, %v1677
        %v1679 = vpop.f32.mrb[0].mxu0
        %v1680 = vadd.f32 0.0, %v1679
        %v1681 = vpop.f32.mrb[0].mxu0
        %v1682 = vadd.f32 0.0, %v1681
        %1683 = vdwg.mxu0
        %v1684 = vld [vmem:[#allocation5] sm:$0xff]
        %v1685 = vld [vmem:[#allocation5 + $0x8] sm:$0xff]
        %v1686 = vld [vmem:[#allocation5 + $0x10] sm:$0xff]
        %v1687 = vld [vmem:[#allocation5 + $0x18] sm:$0xff]
        %v1688 = vld [vmem:[#allocation5 + $0x20] sm:$0xff]
        %v1689 = vld [vmem:[#allocation5 + $0x28] sm:$0xff]
        %v1690 = vld [vmem:[#allocation5 + $0x30] sm:$0xff]
        %v1691 = vld [vmem:[#allocation5 + $0x38] sm:$0xff]
        %v1692 = vld [vmem:[#allocation5 + $0x40] sm:$0xff]
        %v1693 = vld [vmem:[#allocation5 + $0x48] sm:$0xff]
        %v1694 = vld [vmem:[#allocation5 + $0x50] sm:$0xff]
        %v1695 = vld [vmem:[#allocation5 + $0x58] sm:$0xff]
        %v1696 = vld [vmem:[#allocation5 + $0x60] sm:$0xff]
        %v1697 = vld [vmem:[#allocation5 + $0x68] sm:$0xff]
        %v1698 = vld [vmem:[#allocation5 + $0x70] sm:$0xff]
        %v1699 = vld [vmem:[#allocation5 + $0x78] sm:$0xff]
        %v1700 = vadd.f32 %v1684, %v1646
        %v1701 = vadd.f32 %v1685, %v1648
        %v1702 = vadd.f32 %v1686, %v1650
        %v1703 = vadd.f32 %v1687, %v1652
        %v1704 = vadd.f32 %v1688, %v1656
        %v1705 = vadd.f32 %v1689, %v1658
        %v1706 = vadd.f32 %v1690, %v1660
        %v1707 = vadd.f32 %v1691, %v1662
        %v1708 = vadd.f32 %v1692, %v1666
        %v1709 = vadd.f32 %v1693, %v1668
        %v1710 = vadd.f32 %v1694, %v1670
        %v1711 = vadd.f32 %v1695, %v1672
        %v1712 = vadd.f32 %v1696, %v1676
        %v1713 = vadd.f32 %v1697, %v1678
        %v1714 = vadd.f32 %v1698, %v1680
        %v1715 = vadd.f32 %v1699, %v1682
        %1716 = vst [vmem:[#allocation5] sm:$0xff] %v1700
        %1717 = vst [vmem:[#allocation5 + $0x8] sm:$0xff] %v1701
        %1718 = vst [vmem:[#allocation5 + $0x10] sm:$0xff] %v1702
        %1719 = vst [vmem:[#allocation5 + $0x18] sm:$0xff] %v1703
        %1720 = vst [vmem:[#allocation5 + $0x20] sm:$0xff] %v1704
        %1721 = vst [vmem:[#allocation5 + $0x28] sm:$0xff] %v1705
        %1722 = vst [vmem:[#allocation5 + $0x30] sm:$0xff] %v1706
        %1723 = vst [vmem:[#allocation5 + $0x38] sm:$0xff] %v1707
        %1724 = vst [vmem:[#allocation5 + $0x40] sm:$0xff] %v1708
        %1725 = vst [vmem:[#allocation5 + $0x48] sm:$0xff] %v1709
        %1726 = vst [vmem:[#allocation5 + $0x50] sm:$0xff] %v1710
        %1727 = vst [vmem:[#allocation5 + $0x58] sm:$0xff] %v1711
        %1728 = vst [vmem:[#allocation5 + $0x60] sm:$0xff] %v1712
        %1729 = vst [vmem:[#allocation5 + $0x68] sm:$0xff] %v1713
        %1730 = vst [vmem:[#allocation5 + $0x70] sm:$0xff] %v1714
        %1731 = vst [vmem:[#allocation5 + $0x78] sm:$0xff] %v1715
        %v1732 = vld [vmem:[#allocation3 + $0x20] sm:$0xff]
        %v1733 = vld [vmem:[#allocation3 + $0x28] sm:$0xff]
        %v1734 = vld [vmem:[#allocation3 + $0x30] sm:$0xff]
        %v1735 = vld [vmem:[#allocation3 + $0x38] sm:$0xff]
        %1736 = vrot.lane.b32.xlu0 %v1732, 113
        %v1737 = vpop.permute.xlu0 %1736
        %1738 = vrot.lane.b32.xlu0 %v1734, 113
        %v1739 = vpop.permute.xlu0 %1738
        %1740 = vrot.lane.b32.xlu0 %v1733, 113
        %v1741 = vpop.permute.xlu0 %1740
        %1742 = vrot.lane.b32.xlu0 %v1735, 113
        %v1743 = vpop.permute.xlu0 %1742
        %v1744 = vsel %vm715, %v1737, %v1741
        %v1745 = vsel %vm715, %v1739, %v1743
        %v1746 = vsel %vm715, %v1741, %v1737
        %v1747 = vsel %vm715, %v1743, %v1739
        %v1748 = vmul.f32 %v1744, %v723
        %v1749 = vmul.f32 %v1746, %v727
        %v1750 = vmul.f32 %v1745, %v723
        %v1751 = vmul.f32 %v1747, %v727
        %v1752 = vpack.c.bf16 %v1750, %v1748
        %v1753 = vpack.c.bf16 %v1751, %v1749
        %1754 = vst [vmem:[#allocation4] sm:$0xff] %v1752
        %1755 = vst [vmem:[#allocation4 + $0x8] sm:$0xff] %v1753
        %v1756 = vld [vmem:[#allocation3] sm:$0xff]
        %v1757 = vld [vmem:[#allocation3 + $0x8] sm:$0xff]
        %v1758 = vld [vmem:[#allocation3 + $0x10] sm:$0xff]
        %v1759 = vld [vmem:[#allocation3 + $0x18] sm:$0xff]
        %1760 = vrot.lane.b32.xlu0 %v1756, 112
        %v1761 = vpop.permute.xlu0 %1760
        %1762 = vrot.lane.b32.xlu0 %v1758, 112
        %v1763 = vpop.permute.xlu0 %1762
        %1764 = vrot.lane.b32.xlu0 %v1757, 112
        %v1765 = vpop.permute.xlu0 %1764
        %1766 = vrot.lane.b32.xlu0 %v1759, 112
        %v1767 = vpop.permute.xlu0 %1766
        %v1768 = vsel %vm744, %v1761, %v1765
        %v1769 = vsel %vm744, %v1763, %v1767
        %v1770 = vsel %vm744, %v1765, %v1761
        %v1771 = vsel %vm744, %v1767, %v1763
        %v1772 = vmul.f32 %v1768, %v752
        %v1773 = vmul.f32 %v1770, %v756
        %v1774 = vmul.f32 %v1769, %v752
        %v1775 = vmul.f32 %v1771, %v756
        %v1776 = vpack.c.bf16 %v1774, %v1772
        %v1777 = vpack.c.bf16 %v1775, %v1773
        %1778 = vst [vmem:[#allocation4 + $0x10] sm:$0xff] %v1776
        %1779 = vst [vmem:[#allocation4 + $0x18] sm:$0xff] %v1777
        %v1780 = vld [vmem:[#allocation3 + $0x20] sm:$0xff]
        %v1781 = vld [vmem:[#allocation3 + $0x28] sm:$0xff]
        %v1782 = vld [vmem:[#allocation3 + $0x30] sm:$0xff]
        %v1783 = vld [vmem:[#allocation3 + $0x38] sm:$0xff]
        %1784 = vrot.lane.b32.xlu0 %v1780, 112
        %v1785 = vpop.permute.xlu0 %1784
        %1786 = vrot.lane.b32.xlu0 %v1782, 112
        %v1787 = vpop.permute.xlu0 %1786
        %1788 = vrot.lane.b32.xlu0 %v1781, 112
        %v1789 = vpop.permute.xlu0 %1788
        %1790 = vrot.lane.b32.xlu0 %v1783, 112
        %v1791 = vpop.permute.xlu0 %1790
        %v1792 = vsel %vm744, %v1785, %v1789
        %v1793 = vsel %vm744, %v1787, %v1791
        %v1794 = vsel %vm744, %v1789, %v1785
        %v1795 = vsel %vm744, %v1791, %v1787
        %v1796 = vmul.f32 %v1792, %v752
        %v1797 = vmul.f32 %v1794, %v756
        %v1798 = vmul.f32 %v1793, %v752
        %v1799 = vmul.f32 %v1795, %v756
        %v1800 = vpack.c.bf16 %v1798, %v1796
        %v1801 = vpack.c.bf16 %v1799, %v1797
        %1802 = vst [vmem:[#allocation4 + $0x20] sm:$0xff] %v1800
        %1803 = vst [vmem:[#allocation4 + $0x28] sm:$0xff] %v1801
        %v1804 = vld [vmem:[#allocation3] sm:$0xff]
        %v1805 = vld [vmem:[#allocation3 + $0x8] sm:$0xff]
        %v1806 = vld [vmem:[#allocation3 + $0x10] sm:$0xff]
        %v1807 = vld [vmem:[#allocation3 + $0x18] sm:$0xff]
        %1808 = vrot.lane.b32.xlu0 %v1804, 111
        %v1809 = vpop.permute.xlu0 %1808
        %1810 = vrot.lane.b32.xlu0 %v1806, 111
        %v1811 = vpop.permute.xlu0 %1810
        %1812 = vrot.lane.b32.xlu0 %v1805, 111
        %v1813 = vpop.permute.xlu0 %1812
        %1814 = vrot.lane.b32.xlu0 %v1807, 111
        %v1815 = vpop.permute.xlu0 %1814
        %v1816 = vsel %vm773, %v1809, %v1813
        %v1817 = vsel %vm773, %v1811, %v1815
        %v1818 = vsel %vm773, %v1813, %v1809
        %v1819 = vsel %vm773, %v1815, %v1811
        %v1820 = vmul.f32 %v1816, %v781
        %v1821 = vmul.f32 %v1818, %v785
        %v1822 = vmul.f32 %v1817, %v781
        %v1823 = vmul.f32 %v1819, %v785
        %v1824 = vpack.c.bf16 %v1822, %v1820
        %v1825 = vpack.c.bf16 %v1823, %v1821
        %1826 = vst [vmem:[#allocation4 + $0x30] sm:$0xff] %v1824
        %1827 = vst [vmem:[#allocation4 + $0x38] sm:$0xff] %v1825
        %s1828 = scalar_lea.vmem [#allocation12], 96
        %v1829 = vld [vmem:[%s1828] sm:$0xf]
        %v1830 = vld [vmem:[%s1828 + $0x4] sm:$0xf]
        %v1831 = vld [vmem:[%s1828 + $0x8] sm:$0xf]
        %v1832 = vld [vmem:[%s1828 + $0xc] sm:$0xf]
        %v1833 = vld [vmem:[%s1828 + $0x10] sm:$0xf]
        %v1834 = vld [vmem:[%s1828 + $0x14] sm:$0xf]
        %v1835 = vld [vmem:[%s1828 + $0x18] sm:$0xf]
        %v1836 = vld [vmem:[%s1828 + $0x1c] sm:$0xf]
        %v1837 = vld [vmem:[#allocation4] sm:$0xff]
        %v1838 = vld [vmem:[#allocation4 + $0x8] sm:$0xff]
        %v1839 = vld [vmem:[#allocation4 + $0x10] sm:$0xff]
        %v1840 = vld [vmem:[#allocation4 + $0x18] sm:$0xff]
        %v1841 = vld [vmem:[#allocation4 + $0x20] sm:$0xff]
        %v1842 = vld [vmem:[#allocation4 + $0x28] sm:$0xff]
        %v1843 = vld [vmem:[#allocation4 + $0x30] sm:$0xff]
        %v1844 = vld [vmem:[#allocation4 + $0x38] sm:$0xff]
        %v1853 = vunpack.c.l.b16 %v1829
        %v1854 = vunpack.c.l.b16 %v1830
        %v1855 = vunpack.c.l.b16 %v1831
        %v1856 = vunpack.c.l.b16 %v1832
        %v1857 = vunpack.c.l.b16 %v1833
        %v1858 = vunpack.c.l.b16 %v1834
        %v1859 = vunpack.c.l.b16 %v1835
        %v1860 = vunpack.c.l.b16 %v1836
        %v1861 = vpack.c.b16 %v1854, %v1853
        %v1862 = vpack.c.b16 %v1856, %v1855
        %v1863 = vpack.c.b16 %v1858, %v1857
        %v1864 = vpack.c.b16 %v1860, %v1859
        %v1866 = vsel %vm1162, %v1861, 0
        %v1869 = vsel %vm1162, %v1862, 0
        %v1872 = vsel %vm1162, %v1863, 0
        %v1875 = vsel %vm1162, %v1864, 0
        %1877 = vmatprep.subr.bf16.mxu0 %v1838
        %1878 = vmatpush1.bf16.msra.mxu0 %v1837
        %1879 = vmatprep.subr.bf16.mxu0 %v1840
        %1880 = vmatpush1.bf16.msra.mxu0 %v1839
        %1881 = vmatprep.subr.bf16.mxu0 %v1842
        %1882 = vmatpush1.bf16.msra.mxu0 %v1841
        %1883 = vmatprep.subr.bf16.mxu0 %v1844
        %1884 = vmatpush1.bf16.msra.mxu0 %v1843
        %1885 = vmatprep.subr.bf16.mxu0 0
        %1886 = vmatpush1.bf16.msra.mxu0 0
        %1887 = vmatprep.subr.bf16.mxu0 0
        %1888 = vmatpush1.bf16.msra.mxu0 0
        %1889 = vmatprep.subr.bf16.mxu0 0
        %1890 = vmatpush1.bf16.msra.mxu0 0
        %1891 = vmatprep.subr.bf16.mxu0 0
        %1892 = vmatpush1.bf16.msra.mxu0 0
        %1893 = vmatprep.subr.bf16.mxu0 0
        %1894 = vmatpush1.bf16.msra.mxu0 0
        %1895 = vmatprep.subr.bf16.mxu0 0
        %1896 = vmatpush1.bf16.msra.mxu0 0
        %1897 = vmatprep.subr.bf16.mxu0 0
        %1898 = vmatpush1.bf16.msra.mxu0 0
        %1899 = vmatprep.subr.bf16.mxu0 0
        %1900 = vmatpush1.bf16.msra.mxu0 0
        %1901 = vmatprep.subr.bf16.mxu0 0
        %1902 = vmatpush1.bf16.msra.mxu0 0
        %1903 = vmatprep.subr.bf16.mxu0 0
        %1904 = vmatpush1.bf16.msra.mxu0 0
        %1905 = vmatprep.subr.bf16.mxu0 0
        %1906 = vmatpush1.bf16.msra.mxu0 0
        %1907 = vmatprep.subr.bf16.mxu0 0
        %1908 = vmatpush1.bf16.msra.mxu0 0
        %1909 = vmatprep.mubr.bf16.mxu0 0
        %1910 = vmatmul.mubr.bf16.gmra.mrb[0].mxu0 %v1866
        %v1911 = vpop.f32.mrb[0].mxu0
        %v1912 = vadd.f32 0.0, %v1911
        %v1913 = vpop.f32.mrb[0].mxu0
        %v1914 = vadd.f32 0.0, %v1913
        %v1915 = vpop.f32.mrb[0].mxu0
        %v1916 = vadd.f32 0.0, %v1915
        %v1917 = vpop.f32.mrb[0].mxu0
        %v1918 = vadd.f32 0.0, %v1917
        %1919 = vmatprep.mubr.bf16.mxu0 0
        %1920 = vmatmul.mubr.bf16.gmra.mrb[0].mxu0 %v1869
        %v1921 = vpop.f32.mrb[0].mxu0
        %v1922 = vadd.f32 0.0, %v1921
        %v1923 = vpop.f32.mrb[0].mxu0
        %v1924 = vadd.f32 0.0, %v1923
        %v1925 = vpop.f32.mrb[0].mxu0
        %v1926 = vadd.f32 0.0, %v1925
        %v1927 = vpop.f32.mrb[0].mxu0
        %v1928 = vadd.f32 0.0, %v1927
        %1929 = vmatprep.mubr.bf16.mxu0 0
        %1930 = vmatmul.mubr.bf16.gmra.mrb[0].mxu0 %v1872
        %v1931 = vpop.f32.mrb[0].mxu0
        %v1932 = vadd.f32 0.0, %v1931
        %v1933 = vpop.f32.mrb[0].mxu0
        %v1934 = vadd.f32 0.0, %v1933
        %v1935 = vpop.f32.mrb[0].mxu0
        %v1936 = vadd.f32 0.0, %v1935
        %v1937 = vpop.f32.mrb[0].mxu0
        %v1938 = vadd.f32 0.0, %v1937
        %1939 = vmatprep.mubr.bf16.mxu0 0
        %1940 = vmatmul.mubr.bf16.gmra.mrb[0].mxu0 %v1875
        %v1941 = vpop.f32.mrb[0].mxu0
        %v1942 = vadd.f32 0.0, %v1941
        %v1943 = vpop.f32.mrb[0].mxu0
        %v1944 = vadd.f32 0.0, %v1943
        %v1945 = vpop.f32.mrb[0].mxu0
        %v1946 = vadd.f32 0.0, %v1945
        %v1947 = vpop.f32.mrb[0].mxu0
        %v1948 = vadd.f32 0.0, %v1947
        %1949 = vdwg.mxu0
        %v1950 = vld [vmem:[#allocation5] sm:$0xff]
        %v1951 = vld [vmem:[#allocation5 + $0x8] sm:$0xff]
        %v1952 = vld [vmem:[#allocation5 + $0x10] sm:$0xff]
        %v1953 = vld [vmem:[#allocation5 + $0x18] sm:$0xff]
        %v1954 = vld [vmem:[#allocation5 + $0x20] sm:$0xff]
        %v1955 = vld [vmem:[#allocation5 + $0x28] sm:$0xff]
        %v1956 = vld [vmem:[#allocation5 + $0x30] sm:$0xff]
        %v1957 = vld [vmem:[#allocation5 + $0x38] sm:$0xff]
        %v1958 = vld [vmem:[#allocation5 + $0x40] sm:$0xff]
        %v1959 = vld [vmem:[#allocation5 + $0x48] sm:$0xff]
        %v1960 = vld [vmem:[#allocation5 + $0x50] sm:$0xff]
        %v1961 = vld [vmem:[#allocation5 + $0x58] sm:$0xff]
        %v1962 = vld [vmem:[#allocation5 + $0x60] sm:$0xff]
        %v1963 = vld [vmem:[#allocation5 + $0x68] sm:$0xff]
        %v1964 = vld [vmem:[#allocation5 + $0x70] sm:$0xff]
        %v1965 = vld [vmem:[#allocation5 + $0x78] sm:$0xff]
        %v1966 = vadd.f32 %v1950, %v1912
        %v1967 = vadd.f32 %v1951, %v1914
        %v1968 = vadd.f32 %v1952, %v1916
        %v1969 = vadd.f32 %v1953, %v1918
        %v1970 = vadd.f32 %v1954, %v1922
        %v1971 = vadd.f32 %v1955, %v1924
        %v1972 = vadd.f32 %v1956, %v1926
        %v1973 = vadd.f32 %v1957, %v1928
        %v1974 = vadd.f32 %v1958, %v1932
        %v1975 = vadd.f32 %v1959, %v1934
        %v1976 = vadd.f32 %v1960, %v1936
        %v1977 = vadd.f32 %v1961, %v1938
        %v1978 = vadd.f32 %v1962, %v1942
        %v1979 = vadd.f32 %v1963, %v1944
        %v1980 = vadd.f32 %v1964, %v1946
        %v1981 = vadd.f32 %v1965, %v1948
        %1982 = vst [vmem:[#allocation5] sm:$0xff] %v1966
        %1983 = vst [vmem:[#allocation5 + $0x8] sm:$0xff] %v1967
        %1984 = vst [vmem:[#allocation5 + $0x10] sm:$0xff] %v1968
        %1985 = vst [vmem:[#allocation5 + $0x18] sm:$0xff] %v1969
        %1986 = vst [vmem:[#allocation5 + $0x20] sm:$0xff] %v1970
        %1987 = vst [vmem:[#allocation5 + $0x28] sm:$0xff] %v1971
        %1988 = vst [vmem:[#allocation5 + $0x30] sm:$0xff] %v1972
        %1989 = vst [vmem:[#allocation5 + $0x38] sm:$0xff] %v1973
        %1990 = vst [vmem:[#allocation5 + $0x40] sm:$0xff] %v1974
        %1991 = vst [vmem:[#allocation5 + $0x48] sm:$0xff] %v1975
        %1992 = vst [vmem:[#allocation5 + $0x50] sm:$0xff] %v1976
        %1993 = vst [vmem:[#allocation5 + $0x58] sm:$0xff] %v1977
        %1994 = vst [vmem:[#allocation5 + $0x60] sm:$0xff] %v1978
        %1995 = vst [vmem:[#allocation5 + $0x68] sm:$0xff] %v1979
        %1996 = vst [vmem:[#allocation5 + $0x70] sm:$0xff] %v1980
        %1997 = vst [vmem:[#allocation5 + $0x78] sm:$0xff] %v1981
        %v1998 = vld [vmem:[#allocation14] sm:$0xf]
        %v1999 = vld [vmem:[#allocation14 + $0x4] sm:$0xf]
        %v2000 = vpack.c.bf16 %v518, %v516
        %v2001 = vpack.c.bf16 %v519, %v517
        %v2002 = vld [vmem:[#allocation15] sm:$0xff]
        %v2003 = vld [vmem:[#allocation15 + $0x8] sm:$0xff]
        %2005 = vset.pattern.permute.xlu0 0
        %2006 = vperm.xlu0 %2005, %v2002
        %v2007 = vpop.permute.xlu0 %2006
        %2010 = vset.pattern.permute.xlu0 0
        %2011 = vperm.xlu0 %2010, %v2003
        %v2012 = vpop.permute.xlu0 %2011
        %v2016 = vunpack.c.l.b16 %v1998
        %v2017 = vunpack.c.l.b16 %v1999
        %v2018 = vpack.c.b16 %v2017, %v2016
        %v2020 = vsel %vm856, %v2018, 0
        %2022 = vmatprep.subr.bf16.mxu0 %v2001
        %2023 = vmatpush1.bf16.msra.mxu0 %v2000
        %2024 = vmatprep.subr.bf16.mxu0 0
        %2025 = vmatpush1.bf16.msra.mxu0 0
        %2026 = vmatprep.subr.bf16.mxu0 0
        %2027 = vmatpush1.bf16.msra.mxu0 0
        %2028 = vmatprep.subr.bf16.mxu0 0
        %2029 = vmatpush1.bf16.msra.mxu0 0
        %2030 = vmatprep.subr.bf16.mxu0 0
        %2031 = vmatpush1.bf16.msra.mxu0 0
        %2032 = vmatprep.subr.bf16.mxu0 0
        %2033 = vmatpush1.bf16.msra.mxu0 0
        %2034 = vmatprep.subr.bf16.mxu0 0
        %2035 = vmatpush1.bf16.msra.mxu0 0
        %2036 = vmatprep.subr.bf16.mxu0 0
        %2037 = vmatpush1.bf16.msra.mxu0 0
        %2038 = vmatprep.subr.bf16.mxu0 0
        %2039 = vmatpush1.bf16.msra.mxu0 0
        %2040 = vmatprep.subr.bf16.mxu0 0
        %2041 = vmatpush1.bf16.msra.mxu0 0
        %2042 = vmatprep.subr.bf16.mxu0 0
        %2043 = vmatpush1.bf16.msra.mxu0 0
        %2044 = vmatprep.subr.bf16.mxu0 0
        %2045 = vmatpush1.bf16.msra.mxu0 0
        %2046 = vmatprep.subr.bf16.mxu0 0
        %2047 = vmatpush1.bf16.msra.mxu0 0
        %2048 = vmatprep.subr.bf16.mxu0 0
        %2049 = vmatpush1.bf16.msra.mxu0 0
        %2050 = vmatprep.subr.bf16.mxu0 0
        %2051 = vmatpush1.bf16.msra.mxu0 0
        %2052 = vmatprep.subr.bf16.mxu0 0
        %2053 = vmatpush1.bf16.msra.mxu0 0
        %2054 = vmatprep.mubr.bf16.mxu0 0
        %2055 = vmatmul.mubr.bf16.gmra.mrb[0].mxu0 %v2020
        %v2056 = vpop.f32.mrb[0].mxu0
        %v2057 = vadd.f32 %v2007, %v2056
        %v2058 = vpop.f32.mrb[0].mxu0
        %v2059 = vadd.f32 %v2007, %v2058
        %v2060 = vpop.f32.mrb[0].mxu0
        %v2061 = vadd.f32 %v2012, %v2060
        %v2062 = vpop.f32.mrb[0].mxu0
        %v2063 = vadd.f32 %v2012, %v2062
        %2064 = vdwg.mxu0
        %v2065 = vld [vmem:[#allocation5] sm:$0xff]
        %v2066 = vld [vmem:[#allocation5 + $0x8] sm:$0xff]
        %v2067 = vld [vmem:[#allocation5 + $0x10] sm:$0xff]
        %v2068 = vld [vmem:[#allocation5 + $0x18] sm:$0xff]
        %v2069 = vadd.f32 %v2065, %v2057
        %v2070 = vadd.f32 %v2066, %v2059
        %v2071 = vadd.f32 %v2067, %v2061
        %v2072 = vadd.f32 %v2068, %v2063
        %2073 = vst [vmem:[%s508] sm:$0xff] %v2069
        %2074 = vst [vmem:[%s508 + $0x8] sm:$0xff] %v2070
        %2075 = vst [vmem:[%s508 + $0x10] sm:$0xff] %v2071
        %2076 = vst [vmem:[%s508 + $0x18] sm:$0xff] %v2072
        %v2077 = vld [vmem:[#allocation5 + $0x20] sm:$0xff]
        %v2078 = vld [vmem:[#allocation5 + $0x28] sm:$0xff]
        %v2079 = vld [vmem:[#allocation5 + $0x30] sm:$0xff]
        %v2080 = vld [vmem:[#allocation5 + $0x38] sm:$0xff]
        %v2081 = vadd.f32 %v2077, %v2057
        %v2082 = vadd.f32 %v2078, %v2059
        %v2083 = vadd.f32 %v2079, %v2061
        %v2084 = vadd.f32 %v2080, %v2063
        %2085 = vst [vmem:[%s508 + $0x20] sm:$0xff] %v2081
        %2086 = vst [vmem:[%s508 + $0x28] sm:$0xff] %v2082
        %2087 = vst [vmem:[%s508 + $0x30] sm:$0xff] %v2083
        %2088 = vst [vmem:[%s508 + $0x38] sm:$0xff] %v2084
        %v2089 = vld [vmem:[#allocation5 + $0x40] sm:$0xff]
        %v2090 = vld [vmem:[#allocation5 + $0x48] sm:$0xff]
        %v2091 = vld [vmem:[#allocation5 + $0x50] sm:$0xff]
        %v2092 = vld [vmem:[#allocation5 + $0x58] sm:$0xff]
        %v2093 = vadd.f32 %v2089, %v2057
        %v2094 = vadd.f32 %v2090, %v2059
        %v2095 = vadd.f32 %v2091, %v2061
        %v2096 = vadd.f32 %v2092, %v2063
        %2097 = vst [vmem:[%s508 + $0x40] sm:$0xff] %v2093
        %2098 = vst [vmem:[%s508 + $0x48] sm:$0xff] %v2094
        %2099 = vst [vmem:[%s508 + $0x50] sm:$0xff] %v2095
        %2100 = vst [vmem:[%s508 + $0x58] sm:$0xff] %v2096
        %v2101 = vld [vmem:[#allocation5 + $0x60] sm:$0xff]
        %v2102 = vld [vmem:[#allocation5 + $0x68] sm:$0xff]
        %v2103 = vld [vmem:[#allocation5 + $0x70] sm:$0xff]
        %v2104 = vld [vmem:[#allocation5 + $0x78] sm:$0xff]
        %v2105 = vadd.f32 %v2101, %v2057
        %v2106 = vadd.f32 %v2102, %v2059
        %v2107 = vadd.f32 %v2103, %v2061
        %v2108 = vadd.f32 %v2104, %v2063
        %2109 = vst [vmem:[%s508 + $0x60] sm:$0xff] %v2105
        %2110 = vst [vmem:[%s508 + $0x68] sm:$0xff] %v2106
        %2111 = vst [vmem:[%s508 + $0x70] sm:$0xff] %v2107
        %2112 = vst [vmem:[%s508 + $0x78] sm:$0xff] %v2108
        %s2113 = sand.u32 %s255, 1
        %s2114 = scalar_lea.sflag [#allocation8], %s2113
        %s2115 = sand.u32 %s255, 1
        %s2116 = smul.addr %s2115, 128
        %s2117 = scalar_lea.vmem [#allocation23], %s2116
        // Predicated region
        $region101: #{resblock_forward.3} parent=59 // pred_check
          %p2118 = pneg %p265
        $region102: #{resblock_forward.3} parent=59 // pred_check_branch
          %2120 = sbr.rel (%p2118) target = $region104
        $region103: #{resblock_forward.3} parent=59 // pred_region
          %s2121 = smul.u32 2, %s32
          %s2123 = ssub.s32 2048, 2048
          %2124 = vsyncadd %s2114, %s2123
          %s2125 = smul.addr %s2121, 128
          %s2126 = scalar_lea.hbm %s10, %s2125
          %s2127 = sshll.u32 %s2117, 4
          %s2128 = int_to_ptr.vmem [resolvable:$true] %s2127
          %2133 = dma.vmem_to_hbm [thread:$0]  %s2128, 2048, %s2126, %s2114, 256, 512, 16
        $region104: #{resblock_forward.3} parent=59 // pred_fallthru
          _
      $region60: #{resblock_forward.3} parent=5 // pred_fallthru
        _
      %p2134 = scmp.le.s32.totalorder 2, %s27
      // Predicated region
      $region105: #{resblock_forward.3} parent=5 // pred_check
        %p2135 = pneg %p2134
      $region106: #{resblock_forward.3} parent=5 // pred_check_branch
        %2137 = sbr.rel (%p2135) target = $region108
      $region107: #{resblock_forward.3} parent=5 // pred_region
        %s2138 = ssub.s32 %s27, 2
        // Predicated region
        $region109: #{resblock_forward.3} parent=107 // pred_check
          %p2139 = pneg %p271
        $region110: #{resblock_forward.3} parent=107 // pred_check_branch
          %2141 = sbr.rel (%p2139) target = $region112
        $region111: #{resblock_forward.3} parent=107 // pred_region
          %s2142 = sand.u32 %s256, 1
          %s2143 = scalar_lea.sflag [#allocation8], %s2142
          %s2144 = sand.u32 %s256, 1
          %s2145 = smul.addr %s2144, 128
          %s2146 = scalar_lea.vmem [#allocation23], %s2145
          %2147 = dma.done %s2143, 2048
        $region112: #{resblock_forward.3} parent=107 // pred_fallthru
          _
      $region108: #{resblock_forward.3} parent=5 // pred_fallthru
        _
    $region6: #{resblock_forward.3} parent=1 // loop_footer
      %s31 = sadd.s32 1, %s27
    $region7: #{resblock_forward.3} parent=1 // loop_footer_branch
      %26 = sbr.rel target = $region3
    $region8: #{resblock_forward.3} parent=1 // loop_exit
      _
    %2148 = vsyncpa [#allocation7], 1
    %s2149 = scalar_lea.sflag [#allocation7], 1
    %2150 = vsyncpa %s2149, 1
    %2151 = vsyncpa [#allocation10], 1
    %2152 = vsyncpa [#allocation13], 1
    %2153 = vsyncpa [#allocation16], 1
    %2154 = vsyncpa [#allocation19], 1
    %2155 = vsyncpa [#allocation22], 1
    %2156 = vsyncpa [#allocation8], 1
    %s2157 = scalar_lea.sflag [#allocation8], 1
    %2158 = vsyncpa %s2157, 1

</llo_original>
